<compile_context>
chip_gen: v5e
topology: v5e:2x2
jax: 0.10.0
libtpu: 0.0.40
codegen_flags: <defaults>
</compile_context>

<pallas_src>
import functools

import jax
import jax.numpy as jnp
import numpy as np
from jax.experimental import pallas as pl
from jax.experimental.pallas import tpu as pltpu


def _attention_kernel(x_ref, w_ref, b_ref, gamma_ref, out_ref, *, o_dim, o4_dim):
    x = x_ref[...]                                                   # (TB, I) f32

    # Fused q/k/v projection: one MXU pass for all three linears.
    qkv = jnp.dot(x, w_ref[...], preferred_element_type=jnp.float32) + b_ref[...]  # (TB, O+2*O4)
    q = qkv[:, :o_dim]                                               # (TB, O)
    k = qkv[:, o_dim:o_dim + o4_dim]                                 # (TB, O4)
    v = qkv[:, o_dim + o4_dim:]                                      # (TB, O4)

    # scores[b, j, w] = k[b, j] * q[b, w]  -> softmax axis j lives on sublanes.
    scores = k[:, :, None] * q[:, None, :]                           # (TB, O4, O)

    # Numerically-stabilized softmax over j (axis=1), but never materialize
    # attn = e / s: reduce first, divide once on the (TB, O) result.
    m = jnp.max(scores, axis=1, keepdims=True)                       # (TB, 1, O)
    e = jnp.exp(scores - m)                                          # (TB, O4, O)
    den = jnp.sum(e, axis=1)                                         # (TB, O)
    num = jnp.sum(e * v[:, :, None], axis=1)                         # (TB, O)
    o = num * pl.reciprocal(den)   # exact reciprocal keeps the 1e-5 tolerance

    gamma = gamma_ref[0, 0]
    # NOTE: the 32-wide output store stays a masked vst because the model's
    # feature dim is 32; packing 4 row-groups per 128 lanes would need an
    # in-kernel relayout that costs more than it saves at these sizes.
    out_ref[...] = gamma * o + x                                     # residual (requires I == O)


def attention_forward(x, w1, b1, w2, b2, w3, b3, gamma, *, tb=64):
    B, I = x.shape
    O = w1.shape[1]
    O4 = w2.shape[1]
    assert I == O, "residual gamma*o + x requires in_features == out_features"
    assert O4 == O // 4 and w3.shape[1] == O4
    assert B % tb == 0 and tb % 8 == 0, "batch tile must be a multiple of 8 and divide B"

    # Fuse the three projections into a single weight / bias.
    w_qkv = jnp.concatenate([w1, w2, w3], axis=1)                    # (I, O + 2*O4)
    b_qkv = jnp.concatenate([b1, b2, b3], axis=1)                    # (1, O + 2*O4)
    F = O + 2 * O4

    kernel = functools.partial(_attention_kernel, o_dim=O, o4_dim=O4)
    grid = (B // tb,)
    return pl.pallas_call(
        kernel,
        out_shape=jax.ShapeDtypeStruct((B, O), x.dtype),
        grid=grid,
        in_specs=[
            pl.BlockSpec((tb, I), lambda i: (i, 0)),                 # x: tiled over batch
            pl.BlockSpec((I, F), lambda i: (0, 0)),                  # fused weights: VMEM-resident
            pl.BlockSpec((1, F), lambda i: (0, 0)),                  # fused bias: VMEM-resident
            pl.BlockSpec((1, 1), lambda i: (0, 0),
                         memory_space=pltpu.MemorySpace.SMEM),       # gamma scalar in SMEM
        ],
        out_specs=pl.BlockSpec((tb, O), lambda i: (i, 0)),
        compiler_params=pltpu.CompilerParams(
            dimension_semantics=("parallel",)),                      # shards batch across TCs on v7x
    )(x, w_qkv, b_qkv, gamma)


def attention_ref(x, w1, b1, w2, b2, w3, b3, gamma):
    # pure-JAX reference mirroring the PyTorch forward
    q = x @ w1 + b1
    k = x @ w2 + b2
    v = x @ w3 + b3
    scores = q[:, :, None] * k[:, None, :]
    attn = jax.nn.softmax(scores, axis=-1)
    o = jnp.einsum('bwj,bj->bw', attn, v)
    return gamma[0, 0] * o + x


if __name__ == "__main__":
    B = 256         # batch (gridded over tiles of TB=64 rows)
    I = 32          # in_features
    O = 32          # out_features (must equal I for the residual add)
    O4 = O // 4

    key = jax.random.PRNGKey(0)
    ks = jax.random.split(key, 7)
    x  = jax.random.normal(ks[0], (B, I), jnp.float32)
    w1 = jax.random.normal(ks[1], (I, O), jnp.float32) * (1.0 / np.sqrt(I))
    b1 = jax.random.normal(ks[2], (1, O), jnp.float32) * 0.1
    w2 = jax.random.normal(ks[3], (I, O4), jnp.float32) * (1.0 / np.sqrt(I))
    b2 = jax.random.normal(ks[4], (1, O4), jnp.float32) * 0.1
    w3 = jax.random.normal(ks[5], (I, O4), jnp.float32) * (1.0 / np.sqrt(I))
    b3 = jax.random.normal(ks[6], (1, O4), jnp.float32) * 0.1
    # PyTorch inits gamma = 0.0 (which would reduce forward to identity);
    # use a deterministic nonzero value here to exercise the attention path.
    gamma = jnp.full((1, 1), 0.5, jnp.float32)

    out = attention_forward(x, w1, b1, w2, b2, w3, b3, gamma, tb=64)
    jax.block_until_ready(out)

    ref = attention_ref(x, w1, b1, w2, b2, w3, b3, gamma)
    assert out.shape == (B, O) and out.dtype == jnp.float32
    assert jnp.allclose(out, ref, atol=1e-5, rtol=1e-5), "mismatch vs JAX reference"
    print("KERNEL_OK")
</pallas_src>

<mosaic_0001>
module attributes {stable_mosaic.version = 11 : i64} {
  func.func @_attention_kernel(%arg0: i32, %arg1: memref<64x32xf32, #tpu.memory_space<vmem>>, %arg2: memref<32x48xf32, #tpu.memory_space<vmem>>, %arg3: memref<1x48xf32, #tpu.memory_space<vmem>>, %arg4: memref<1x1xf32, #tpu.memory_space<smem>>, %arg5: memref<64x32xf32, #tpu.memory_space<vmem>>) attributes {dimension_semantics = [#tpu.dimension_semantics<parallel>], iteration_bounds = array<i64: 4>, scalar_prefetch = 0 : i64, scratch_operands = 0 : i64, tpu.core_type = #tpu.core_type<tc>, window_params = [{transform_indices = @transform_0, window_bounds = array<i64: 64, 32>}, {pipeline_mode = #tpu.pipeline_mode<synchronous>, transform_indices = @transform_1, window_bounds = array<i64: 32, 48>}, {pipeline_mode = #tpu.pipeline_mode<synchronous>, transform_indices = @transform_2, window_bounds = array<i64: 1, 48>}, {transform_indices = @transform_3, window_bounds = array<i64: 1, 1>}, {transform_indices = @transform_4, window_bounds = array<i64: 64, 32>}]} {
    %c0 = arith.constant 0 : index
    %c0_0 = arith.constant 0 : index
    %0 = vector.load %arg1[%c0, %c0_0] : memref<64x32xf32, #tpu.memory_space<vmem>>, vector<64x32xf32>
    %c0_1 = arith.constant 0 : index
    %c0_2 = arith.constant 0 : index
    %1 = vector.load %arg2[%c0_1, %c0_2] : memref<32x48xf32, #tpu.memory_space<vmem>>, vector<32x48xf32>
    %cst = arith.constant dense<0.000000e+00> : vector<64x48xf32>
    %2 = tpu.matmul %0, %1, %cst {dimension_numbers = #tpu.dot_dimension_numbers<[1], [0], [0], [1], [0, 0, 1, 1], [], []>} : vector<64x32xf32>, vector<32x48xf32>, vector<64x48xf32> -> vector<64x48xf32>
    %c0_3 = arith.constant 0 : index
    %c0_4 = arith.constant 0 : index
    %3 = vector.load %arg3[%c0_3, %c0_4] : memref<1x48xf32, #tpu.memory_space<vmem>>, vector<1x48xf32>
    %4 = vector.broadcast %3 : vector<1x48xf32> to vector<64x48xf32>
    %5 = arith.addf %2, %4 : vector<64x48xf32>
    %6 = vector.extract_strided_slice %5 {offsets = [0, 0], sizes = [64, 32], strides = [1, 1]} : vector<64x48xf32> to vector<64x32xf32>
    %7 = vector.extract_strided_slice %5 {offsets = [0, 32], sizes = [64, 8], strides = [1, 1]} : vector<64x48xf32> to vector<64x8xf32>
    %8 = vector.extract_strided_slice %5 {offsets = [0, 40], sizes = [64, 8], strides = [1, 1]} : vector<64x48xf32> to vector<64x8xf32>
    %9 = vector.shape_cast %7 : vector<64x8xf32> to vector<64x8x1xf32>
    %10 = vector.shape_cast %6 : vector<64x32xf32> to vector<64x1x32xf32>
    %11 = vector.broadcast %9 : vector<64x8x1xf32> to vector<64x8x32xf32>
    %12 = vector.broadcast %10 : vector<64x1x32xf32> to vector<64x8x32xf32>
    %13 = arith.mulf %11, %12 : vector<64x8x32xf32>
    %cst_5 = arith.constant dense<0xFF800000> : vector<64x32xf32>
    %14 = vector.multi_reduction <maximumf>, %13, %cst_5 [1] : vector<64x8x32xf32> to vector<64x32xf32>
    %15 = vector.shape_cast %14 : vector<64x32xf32> to vector<64x1x32xf32>
    %16 = vector.broadcast %15 : vector<64x1x32xf32> to vector<64x8x32xf32>
    %17 = arith.subf %13, %16 : vector<64x8x32xf32>
    %18 = math.exp %17 : vector<64x8x32xf32>
    %cst_6 = arith.constant dense<0.000000e+00> : vector<64x32xf32>
    %19 = vector.multi_reduction <add>, %18, %cst_6 [1] : vector<64x8x32xf32> to vector<64x32xf32>
    %20 = vector.shape_cast %8 : vector<64x8xf32> to vector<64x8x1xf32>
    %21 = vector.broadcast %20 : vector<64x8x1xf32> to vector<64x8x32xf32>
    %22 = arith.mulf %18, %21 : vector<64x8x32xf32>
    %cst_7 = arith.constant dense<0.000000e+00> : vector<64x32xf32>
    %23 = vector.multi_reduction <add>, %22, %cst_7 [1] : vector<64x8x32xf32> to vector<64x32xf32>
    %24 = tpu.reciprocal %19 : vector<64x32xf32> -> vector<64x32xf32>
    %25 = arith.mulf %23, %24 : vector<64x32xf32>
    %c0_8 = arith.constant 0 : index
    %c0_9 = arith.constant 0 : index
    %26 = memref.load %arg4[%c0_8, %c0_9] : memref<1x1xf32, #tpu.memory_space<smem>>
    %27 = vector.broadcast %26 : f32 to vector<64x32xf32>
    %28 = arith.mulf %27, %25 : vector<64x32xf32>
    %29 = arith.addf %28, %0 : vector<64x32xf32>
    %c0_10 = arith.constant 0 : index
    %c0_11 = arith.constant 0 : index
    %30 = vector.load %arg5[%c0_10, %c0_11] : memref<64x32xf32, #tpu.memory_space<vmem>>, vector<64x32xf32>
    tpu.vector_store %arg5[%c0_10, %c0_11], %29 {strides = array<i32>} : memref<64x32xf32, #tpu.memory_space<vmem>>, vector<64x32xf32>,
    return
  }
  func.func @transform_0(%arg0: i32) -> (i32, i32) {
    %c0_i32 = arith.constant 0 : i32
    %c0_i32_0 = arith.constant 0 : i32
    return %arg0, %c0_i32 : i32, i32
  }
  func.func @transform_1(%arg0: i32) -> (i32, i32) {
    %c0_i32 = arith.constant 0 : i32
    %c0_i32_0 = arith.constant 0 : i32
    %c0_i32_1 = arith.constant 0 : i32
    return %c0_i32, %c0_i32_0 : i32, i32
  }
  func.func @transform_2(%arg0: i32) -> (i32, i32) {
    %c0_i32 = arith.constant 0 : i32
    %c0_i32_0 = arith.constant 0 : i32
    %c0_i32_1 = arith.constant 0 : i32
    return %c0_i32, %c0_i32_0 : i32, i32
  }
  func.func @transform_3(%arg0: i32) -> (i32, i32) {
    %c0_i32 = arith.constant 0 : i32
    %c0_i32_0 = arith.constant 0 : i32
    %c0_i32_1 = arith.constant 0 : i32
    return %c0_i32, %c0_i32_0 : i32, i32
  }
  func.func @transform_4(%arg0: i32) -> (i32, i32) {
    %c0_i32 = arith.constant 0 : i32
    %c0_i32_0 = arith.constant 0 : i32
    return %arg0, %c0_i32 : i32, i32
  }
}

</mosaic_0001>

<llo_original>
// kernel: tpu_custom_call.1
$region0: #{tpu_custom_call.1}
  #allocation0 [shape = 'u32[]', space=smem, size = 0x4, offset = 0x4, fixed_abs, tag = 'smem constant byte address 0x4 - core index']
  #allocation1 [shape = 'u32[72,128]{1,0:T(1,128)}', space=vmem, size = 0x9000, scoped, tag = 'internal scratch']
  #allocation2 [shape = 'f32[1,1]{1,0:T(1,128)S(6)}', space=smem, size = 0x200, scoped, tag = 'scoped memory for tpu_custom_call.1']
  %s0 = inlined_call_operand.vmem [shape: f32[256,32], index: 0, kind: input, shape index: {}]
  %s1 = inlined_call_operand.vmem [shape: f32[32,48], index: 1, kind: input, shape index: {}]
  %s2 = inlined_call_operand.vmem [shape: f32[1,48], index: 2, kind: input, shape index: {}]
  %s3 = inlined_call_operand.<no memory space> [shape: f32[1,1], index: 3, kind: input, shape index: {}]
  %s4 = inlined_call_operand.vmem [shape: f32[256,32], index: 4, kind: output, shape index: {}]
  %s5 = sld [smem:[#allocation0]]
  $region49: #{tpu_custom_call.1} parent=0
    _
  %s7 = ssub.s32 1, %s5
  %s8 = scalar_select 0, %s7, %s5
  %9 = sst [smem:[#allocation2]] %s3
  loop: start=0, step=1, limit=6
  $region2: #{tpu_custom_call.1} parent=0 // loop_pre_header
    _
  $region3: #{tpu_custom_call.1} parent=0 // loop_header
    %s11 = sphi 0, %s15
    %p12 = scmp.ge.s32.totalorder %s11, 6
    %s21 = sphi 0, %s23
    %s24 = sphi 0, %s21
    %s25 = sphi 0, %s24
    %s41 = sphi 0, %s25
    %s45 = sphi 0, %s45
    %s47 = sphi 0, %s45
    %s48 = sphi 0, %s47
    %s62 = sphi 0, %s48
    %s66 = sphi 0, %s66
    %s68 = sphi 0, %s66
    %s69 = sphi 0, %s68
    %s83 = sphi 0, %s69
    %s87 = sphi 0, %s87
    %s89 = sphi 0, %s87
    %s90 = sphi 0, %s89
    %s104 = sphi 0, %s90
    %s110 = sphi 0, %s112
    %s113 = sphi 0, %s110
    %s114 = sphi 0, %s113
    %s130 = sphi 0, %s114
  $region4: #{tpu_custom_call.1} parent=0 // loop_header_branch
    %14 = sbr.rel (%p12) target = $region8
  $region5: #{tpu_custom_call.1} parent=0 // loop_body
    %s16 = ssub.s32 %s11, 1
    %s17 = ssub.s32 %s11, 2
    %s18 = sadd.s32 %s11, 1
    %s19 = ssub.s32 %s11, %s18
    %p20 = scmp.eq.s32.totalorder %s19, 0
    %s22 = sadd.s32 %s21, 1
    %s23 = scalar_select %p20, %s21, %s22
    %p26 = pneg %p20
    %p27 = scmp.eq.s32.totalorder %s11, 3
    %p28 = por %p26, %p27
    %p29 = scmp.ne.s32.totalorder %s21, %s24
    %p30 = scmp.eq.s32.totalorder %s11, 0
    %p31 = por %p29, %p30
    %p32 = scmp.ne.s32.totalorder %s21, %s24
    %p33 = scmp.eq.s32.totalorder %s16, 3
    %p34 = por %p32, %p33
    %p35 = scmp.ne.s32.totalorder %s24, %s25
    %p36 = scmp.eq.s32.totalorder %s16, 0
    %p37 = por %p35, %p36
    %p38 = scmp.ne.s32.totalorder %s24, %s25
    %p39 = scmp.eq.s32.totalorder %s17, 3
    %p40 = por %p38, %p39
    %p42 = scmp.ne.s32.totalorder %s25, %s41
    %p43 = scmp.eq.s32.totalorder %s17, 0
    %p44 = por %p42, %p43
    %s46 = sadd.s32 %s45, 1
    %p49 = scmp.eq.s32.totalorder %s11, 3
    %p50 = scmp.ne.s32.totalorder %s45, %s47
    %p51 = scmp.eq.s32.totalorder %s11, 0
    %p52 = por %p50, %p51
    %p53 = scmp.ne.s32.totalorder %s45, %s47
    %p54 = scmp.eq.s32.totalorder %s16, 3
    %p55 = por %p53, %p54
    %p56 = scmp.ne.s32.totalorder %s47, %s48
    %p57 = scmp.eq.s32.totalorder %s16, 0
    %p58 = por %p56, %p57
    %p59 = scmp.ne.s32.totalorder %s47, %s48
    %p60 = scmp.eq.s32.totalorder %s17, 3
    %p61 = por %p59, %p60
    %p63 = scmp.ne.s32.totalorder %s48, %s62
    %p64 = scmp.eq.s32.totalorder %s17, 0
    %p65 = por %p63, %p64
    %s67 = sadd.s32 %s66, 1
    %p70 = scmp.eq.s32.totalorder %s11, 3
    %p71 = scmp.ne.s32.totalorder %s66, %s68
    %p72 = scmp.eq.s32.totalorder %s11, 0
    %p73 = por %p71, %p72
    %p74 = scmp.ne.s32.totalorder %s66, %s68
    %p75 = scmp.eq.s32.totalorder %s16, 3
    %p76 = por %p74, %p75
    %p77 = scmp.ne.s32.totalorder %s68, %s69
    %p78 = scmp.eq.s32.totalorder %s16, 0
    %p79 = por %p77, %p78
    %p80 = scmp.ne.s32.totalorder %s68, %s69
    %p81 = scmp.eq.s32.totalorder %s17, 3
    %p82 = por %p80, %p81
    %p84 = scmp.ne.s32.totalorder %s69, %s83
    %p85 = scmp.eq.s32.totalorder %s17, 0
    %p86 = por %p84, %p85
    %s88 = sadd.s32 %s87, 1
    %p91 = scmp.eq.s32.totalorder %s11, 3
    %p92 = scmp.ne.s32.totalorder %s87, %s89
    %p93 = scmp.eq.s32.totalorder %s11, 0
    %p94 = por %p92, %p93
    %p95 = scmp.ne.s32.totalorder %s87, %s89
    %p96 = scmp.eq.s32.totalorder %s16, 3
    %p97 = por %p95, %p96
    %p98 = scmp.ne.s32.totalorder %s89, %s90
    %p99 = scmp.eq.s32.totalorder %s16, 0
    %p100 = por %p98, %p99
    %p101 = scmp.ne.s32.totalorder %s89, %s90
    %p102 = scmp.eq.s32.totalorder %s17, 3
    %p103 = por %p101, %p102
    %p105 = scmp.ne.s32.totalorder %s90, %s104
    %p106 = scmp.eq.s32.totalorder %s17, 0
    %p107 = por %p105, %p106
    %s108 = ssub.s32 %s11, %s18
    %p109 = scmp.eq.s32.totalorder %s108, 0
    %s111 = sadd.s32 %s110, 1
    %s112 = scalar_select %p109, %s110, %s111
    %p115 = pneg %p109
    %p116 = scmp.eq.s32.totalorder %s11, 3
    %p117 = por %p115, %p116
    %p118 = scmp.ne.s32.totalorder %s110, %s113
    %p119 = scmp.eq.s32.totalorder %s11, 0
    %p120 = por %p118, %p119
    %p121 = scmp.ne.s32.totalorder %s110, %s113
    %p122 = scmp.eq.s32.totalorder %s16, 3
    %p123 = por %p121, %p122
    %p124 = scmp.ne.s32.totalorder %s113, %s114
    %p125 = scmp.eq.s32.totalorder %s16, 0
    %p126 = por %p124, %p125
    %p127 = scmp.ne.s32.totalorder %s113, %s114
    %p128 = scmp.eq.s32.totalorder %s17, 3
    %p129 = por %p127, %p128
    %p131 = scmp.ne.s32.totalorder %s114, %s130
    %p132 = scmp.eq.s32.totalorder %s17, 0
    %p133 = por %p131, %p132
    %p134 = scmp.le.s32.totalorder 1, %s11
    %p135 = scmp.lt.s32.totalorder %s11, 5
    %p136 = pnand %p134, %p135
    %p137 = pneg %p136
    // Predicated region
    $region9: #{tpu_custom_call.1} parent=5 // pred_check
      _
    $region10: #{tpu_custom_call.1} parent=5 // pred_check_branch
      %139 = sbr.rel (%p136) target = $region12
    $region11: #{tpu_custom_call.1} parent=5 // pred_region
      %s140 = ssub.s32 %s11, 1
      // Predicated region
      $region13: #{tpu_custom_call.1} parent=11 // pred_check
        %p141 = pneg %p58
      $region14: #{tpu_custom_call.1} parent=11 // pred_check_branch
        %143 = sbr.rel (%p141) target = $region16
      $region15: #{tpu_custom_call.1} parent=11 // pred_region
        _
      $region16: #{tpu_custom_call.1} parent=11 // pred_fallthru
        _
      // Predicated region
      $region17: #{tpu_custom_call.1} parent=11 // pred_check
        %p144 = pneg %p79
      $region18: #{tpu_custom_call.1} parent=11 // pred_check_branch
        %146 = sbr.rel (%p144) target = $region20
      $region19: #{tpu_custom_call.1} parent=11 // pred_region
        _
      $region20: #{tpu_custom_call.1} parent=11 // pred_fallthru
        _
      // Predicated region
      $region21: #{tpu_custom_call.1} parent=11 // pred_check
        %p147 = pneg %p100
      $region22: #{tpu_custom_call.1} parent=11 // pred_check_branch
        %149 = sbr.rel (%p147) target = $region24
      $region23: #{tpu_custom_call.1} parent=11 // pred_region
        _
      $region24: #{tpu_custom_call.1} parent=11 // pred_fallthru
        _
    $region12: #{tpu_custom_call.1} parent=5 // pred_fallthru
      _
    %p150 = scmp.lt.s32.totalorder %s11, 4
    // Predicated region
    $region25: #{tpu_custom_call.1} parent=5 // pred_check
      %p151 = pneg %p150
    $region26: #{tpu_custom_call.1} parent=5 // pred_check_branch
      %153 = sbr.rel (%p151) target = $region28
    $region27: #{tpu_custom_call.1} parent=5 // pred_region
      // Predicated region
      $region29: #{tpu_custom_call.1} parent=27 // pred_check
        %p154 = pneg %p31
      $region30: #{tpu_custom_call.1} parent=27 // pred_check_branch
        %156 = sbr.rel (%p154) target = $region32
      $region31: #{tpu_custom_call.1} parent=27 // pred_region
        %s157 = smul.u32 8, %s11
        %p158 = scmp.lt.s32.totalorder %s157, 31
        %s159 = scalar_select %p158, %s157, 31
        %s160 = smul.addr %s159, 8
        %s161 = scalar_lea.vmem %s0, %s160
        %s162 = smul.u32 8, %s11
      $region32: #{tpu_custom_call.1} parent=27 // pred_fallthru
        _
    $region28: #{tpu_custom_call.1} parent=5 // pred_fallthru
      _
    %p163 = scmp.le.s32.totalorder 1, %s11
    %p164 = scmp.lt.s32.totalorder %s11, 5
    %p165 = pnand %p163, %p164
    %p166 = pneg %p165
    // Predicated region
    $region33: #{tpu_custom_call.1} parent=5 // pred_check
      _
    $region34: #{tpu_custom_call.1} parent=5 // pred_check_branch
      %168 = sbr.rel (%p165) target = $region36
    $region35: #{tpu_custom_call.1} parent=5 // pred_region
      %s169 = ssub.s32 %s11, 1
      %s170 = smul.u32 8, %s16
      %p171 = scmp.lt.s32.totalorder %s170, 31
      %s172 = scalar_select %p171, %s170, 31
      %s173 = smul.addr %s172, 8
      %s174 = scalar_lea.vmem %s0, %s173
      %p175 = pneg %p37
      %p176 = pneg %p34
      %p177 = pneg %p58
      %p178 = pneg %p55
      %p179 = pneg %p79
      %p180 = pneg %p76
      %p181 = pneg %p100
      %p182 = pneg %p97
      %p183 = pneg %p126
      %p184 = pneg %p123
      %s185 = smul.u32 8, %s16
      %p186 = scmp.lt.s32.totalorder %s185, 31
      %s187 = scalar_select %p186, %s185, 31
      %s188 = smul.addr %s187, 8
      %s189 = scalar_lea.vmem %s4, %s188
      %s190 = smul.u32 8, %s16
      %p191 = scmp.lt.s32.totalorder %s190, 31
      %s192 = scalar_select %p191, %s190, 31
      %s193 = smul.addr %s192, 8
      %s194 = scalar_lea.vmem %s0, %s193
      %s195 = smul.u32 8, %s16
      %s196 = smul.u32 8, %s16
      %p197 = scmp.lt.s32.totalorder %s196, 31
      %s198 = scalar_select %p197, %s196, 31
      %s199 = smul.addr %s198, 8
      %s200 = scalar_lea.vmem %s4, %s199
      %s201 = smul.u32 8, %s16
      %v202 = vld [vmem:[%s194] sm:$0xff]
      %v203 = vld [vmem:[%s194 + $0x8] sm:$0xff]
      %v204 = vld [vmem:[%s194 + $0x10] sm:$0xff]
      %v205 = vld [vmem:[%s194 + $0x18] sm:$0xff]
      %v206 = vld [vmem:[%s194 + $0x20] sm:$0xff]
      %v207 = vld [vmem:[%s194 + $0x28] sm:$0xff]
      %v208 = vld [vmem:[%s194 + $0x30] sm:$0xff]
      %v209 = vld [vmem:[%s194 + $0x38] sm:$0xff]
      %v210 = vld [vmem:[%s1] sm:$0xff]
      %v211 = vld [vmem:[%s1 + $0x8] sm:$0xff]
      %v212 = vld [vmem:[%s1 + $0x10] sm:$0xff]
      %v213 = vld [vmem:[%s1 + $0x18] sm:$0xff]
      %v214 = vld [vmem:[%s2] sm:$0x1]
      %v216 = vperm.slane %v214, 0
      %vm218 = vcmask 261120
      %v220 = vsel %vm218, %v202, 0
      %v223 = vsel %vm218, %v203, 0
      %v226 = vsel %vm218, %v204, 0
      %v229 = vsel %vm218, %v205, 0
      %v232 = vsel %vm218, %v206, 0
      %v235 = vsel %vm218, %v207, 0
      %v238 = vsel %vm218, %v208, 0
      %v241 = vsel %vm218, %v209, 0
      %243 = vmatpush.msra.mxu0 0.0
      %244 = vmatpush.msra.mxu0 0.0
      %245 = vmatpush.msra.mxu0 0.0
      %246 = vmatpush.msra.mxu0 0.0
      %247 = vmatpush.msra.mxu0 0.0
      %248 = vmatpush.msra.mxu0 0.0
      %249 = vmatpush.msra.mxu0 0.0
      %250 = vmatpush.msra.mxu0 0.0
      %251 = vmatpush.msra.mxu0 0.0
      %252 = vmatpush.msra.mxu0 0.0
      %253 = vmatpush.msra.mxu0 0.0
      %254 = vmatpush.msra.mxu0 0.0
      %255 = vmatpush.msra.mxu0 %v213
      %256 = vmatpush.msra.mxu0 %v212
      %257 = vmatpush.msra.mxu0 %v211
      %258 = vmatpush.msra.mxu0 %v210
      %259 = vmatmul.f32.gmra.mxu0 %v220
      %v260 = vpop.f32.mrf.mxu0
      %v261 = vadd.f32 %v216, %v260
      %262 = vmatmul.f32.gmra.mxu0 %v223
      %v263 = vpop.f32.mrf.mxu0
      %v264 = vadd.f32 %v216, %v263
      %265 = vmatmul.f32.gmra.mxu0 %v226
      %v266 = vpop.f32.mrf.mxu0
      %v267 = vadd.f32 %v216, %v266
      %268 = vmatmul.f32.gmra.mxu0 %v229
      %v269 = vpop.f32.mrf.mxu0
      %v270 = vadd.f32 %v216, %v269
      %271 = vmatmul.f32.gmra.mxu0 %v232
      %v272 = vpop.f32.mrf.mxu0
      %v273 = vadd.f32 %v216, %v272
      %274 = vmatmul.f32.gmra.mxu0 %v235
      %v275 = vpop.f32.mrf.mxu0
      %v276 = vadd.f32 %v216, %v275
      %277 = vmatmul.f32.gmra.mxu0 %v238
      %v278 = vpop.f32.mrf.mxu0
      %v279 = vadd.f32 %v216, %v278
      %280 = vmatmul.f32.gmra.mxu0 %v241
      %v281 = vpop.f32.mrf.mxu0
      %v282 = vadd.f32 %v216, %v281
      %283 = vdwg.mxu0
      %v284 = vperm.slane %v261, 0
      %v285 = vlaneseq
      %v286 = vshrl.u32 %v285, 7
      %v287 = vadd.s32 %v286, 32
      %288 = vset.pattern.permute.xlu0 %v287
      %289 = vperm.xlu0 %288, %v284
      %v290 = vpop.permute.xlu0 %289
      %v291 = vperm.slane %v261, 1
      %v292 = vlaneseq
      %v293 = vshrl.u32 %v292, 7
      %v294 = vadd.s32 %v293, 32
      %295 = vset.pattern.permute.xlu0 %v294
      %296 = vperm.xlu0 %295, %v291
      %v297 = vpop.permute.xlu0 %296
      %v298 = vperm.slane %v261, 2
      %v299 = vlaneseq
      %v300 = vshrl.u32 %v299, 7
      %v301 = vadd.s32 %v300, 32
      %302 = vset.pattern.permute.xlu0 %v301
      %303 = vperm.xlu0 %302, %v298
      %v304 = vpop.permute.xlu0 %303
      %v305 = vperm.slane %v261, 3
      %v306 = vlaneseq
      %v307 = vshrl.u32 %v306, 7
      %v308 = vadd.s32 %v307, 32
      %309 = vset.pattern.permute.xlu0 %v308
      %310 = vperm.xlu0 %309, %v305
      %v311 = vpop.permute.xlu0 %310
      %v312 = vperm.slane %v261, 4
      %v313 = vlaneseq
      %v314 = vshrl.u32 %v313, 7
      %v315 = vadd.s32 %v314, 32
      %316 = vset.pattern.permute.xlu0 %v315
      %317 = vperm.xlu0 %316, %v312
      %v318 = vpop.permute.xlu0 %317
      %v319 = vperm.slane %v261, 5
      %v320 = vlaneseq
      %v321 = vshrl.u32 %v320, 7
      %v322 = vadd.s32 %v321, 32
      %323 = vset.pattern.permute.xlu0 %v322
      %324 = vperm.xlu0 %323, %v319
      %v325 = vpop.permute.xlu0 %324
      %v326 = vperm.slane %v261, 6
      %v327 = vlaneseq
      %v328 = vshrl.u32 %v327, 7
      %v329 = vadd.s32 %v328, 32
      %330 = vset.pattern.permute.xlu0 %v329
      %331 = vperm.xlu0 %330, %v326
      %v332 = vpop.permute.xlu0 %331
      %v333 = vperm.slane %v261, 7
      %v334 = vlaneseq
      %v335 = vshrl.u32 %v334, 7
      %v336 = vadd.s32 %v335, 32
      %337 = vset.pattern.permute.xlu0 %v336
      %338 = vperm.xlu0 %337, %v333
      %v339 = vpop.permute.xlu0 %338
      %v340 = vperm.slane %v264, 0
      %v341 = vlaneseq
      %v342 = vshrl.u32 %v341, 7
      %v343 = vadd.s32 %v342, 32
      %344 = vset.pattern.permute.xlu0 %v343
      %345 = vperm.xlu0 %344, %v340
      %v346 = vpop.permute.xlu0 %345
      %v347 = vperm.slane %v264, 1
      %v348 = vlaneseq
      %v349 = vshrl.u32 %v348, 7
      %v350 = vadd.s32 %v349, 32
      %351 = vset.pattern.permute.xlu0 %v350
      %352 = vperm.xlu0 %351, %v347
      %v353 = vpop.permute.xlu0 %352
      %v354 = vperm.slane %v264, 2
      %v355 = vlaneseq
      %v356 = vshrl.u32 %v355, 7
      %v357 = vadd.s32 %v356, 32
      %358 = vset.pattern.permute.xlu0 %v357
      %359 = vperm.xlu0 %358, %v354
      %v360 = vpop.permute.xlu0 %359
      %v361 = vperm.slane %v264, 3
      %v362 = vlaneseq
      %v363 = vshrl.u32 %v362, 7
      %v364 = vadd.s32 %v363, 32
      %365 = vset.pattern.permute.xlu0 %v364
      %366 = vperm.xlu0 %365, %v361
      %v367 = vpop.permute.xlu0 %366
      %v368 = vperm.slane %v264, 4
      %v369 = vlaneseq
      %v370 = vshrl.u32 %v369, 7
      %v371 = vadd.s32 %v370, 32
      %372 = vset.pattern.permute.xlu0 %v371
      %373 = vperm.xlu0 %372, %v368
      %v374 = vpop.permute.xlu0 %373
      %v375 = vperm.slane %v264, 5
      %v376 = vlaneseq
      %v377 = vshrl.u32 %v376, 7
      %v378 = vadd.s32 %v377, 32
      %379 = vset.pattern.permute.xlu0 %v378
      %380 = vperm.xlu0 %379, %v375
      %v381 = vpop.permute.xlu0 %380
      %v382 = vperm.slane %v264, 6
      %v383 = vlaneseq
      %v384 = vshrl.u32 %v383, 7
      %v385 = vadd.s32 %v384, 32
      %386 = vset.pattern.permute.xlu0 %v385
      %387 = vperm.xlu0 %386, %v382
      %v388 = vpop.permute.xlu0 %387
      %v389 = vperm.slane %v264, 7
      %v390 = vlaneseq
      %v391 = vshrl.u32 %v390, 7
      %v392 = vadd.s32 %v391, 32
      %393 = vset.pattern.permute.xlu0 %v392
      %394 = vperm.xlu0 %393, %v389
      %v395 = vpop.permute.xlu0 %394
      %v396 = vperm.slane %v267, 0
      %v397 = vlaneseq
      %v398 = vshrl.u32 %v397, 7
      %v399 = vadd.s32 %v398, 32
      %400 = vset.pattern.permute.xlu0 %v399
      %401 = vperm.xlu0 %400, %v396
      %v402 = vpop.permute.xlu0 %401
      %v403 = vperm.slane %v267, 1
      %v404 = vlaneseq
      %v405 = vshrl.u32 %v404, 7
      %v406 = vadd.s32 %v405, 32
      %407 = vset.pattern.permute.xlu0 %v406
      %408 = vperm.xlu0 %407, %v403
      %v409 = vpop.permute.xlu0 %408
      %v410 = vperm.slane %v267, 2
      %v411 = vlaneseq
      %v412 = vshrl.u32 %v411, 7
      %v413 = vadd.s32 %v412, 32
      %414 = vset.pattern.permute.xlu0 %v413
      %415 = vperm.xlu0 %414, %v410
      %v416 = vpop.permute.xlu0 %415
      %v417 = vperm.slane %v267, 3
      %v418 = vlaneseq
      %v419 = vshrl.u32 %v418, 7
      %v420 = vadd.s32 %v419, 32
      %421 = vset.pattern.permute.xlu0 %v420
      %422 = vperm.xlu0 %421, %v417
      %v423 = vpop.permute.xlu0 %422
      %v424 = vperm.slane %v267, 4
      %v425 = vlaneseq
      %v426 = vshrl.u32 %v425, 7
      %v427 = vadd.s32 %v426, 32
      %428 = vset.pattern.permute.xlu0 %v427
      %429 = vperm.xlu0 %428, %v424
      %v430 = vpop.permute.xlu0 %429
      %v431 = vperm.slane %v267, 5
      %v432 = vlaneseq
      %v433 = vshrl.u32 %v432, 7
      %v434 = vadd.s32 %v433, 32
      %435 = vset.pattern.permute.xlu0 %v434
      %436 = vperm.xlu0 %435, %v431
      %v437 = vpop.permute.xlu0 %436
      %v438 = vperm.slane %v267, 6
      %v439 = vlaneseq
      %v440 = vshrl.u32 %v439, 7
      %v441 = vadd.s32 %v440, 32
      %442 = vset.pattern.permute.xlu0 %v441
      %443 = vperm.xlu0 %442, %v438
      %v444 = vpop.permute.xlu0 %443
      %v445 = vperm.slane %v267, 7
      %v446 = vlaneseq
      %v447 = vshrl.u32 %v446, 7
      %v448 = vadd.s32 %v447, 32
      %449 = vset.pattern.permute.xlu0 %v448
      %450 = vperm.xlu0 %449, %v445
      %v451 = vpop.permute.xlu0 %450
      %v452 = vperm.slane %v270, 0
      %v453 = vlaneseq
      %v454 = vshrl.u32 %v453, 7
      %v455 = vadd.s32 %v454, 32
      %456 = vset.pattern.permute.xlu0 %v455
      %457 = vperm.xlu0 %456, %v452
      %v458 = vpop.permute.xlu0 %457
      %v459 = vperm.slane %v270, 1
      %v460 = vlaneseq
      %v461 = vshrl.u32 %v460, 7
      %v462 = vadd.s32 %v461, 32
      %463 = vset.pattern.permute.xlu0 %v462
      %464 = vperm.xlu0 %463, %v459
      %v465 = vpop.permute.xlu0 %464
      %v466 = vperm.slane %v270, 2
      %v467 = vlaneseq
      %v468 = vshrl.u32 %v467, 7
      %v469 = vadd.s32 %v468, 32
      %470 = vset.pattern.permute.xlu0 %v469
      %471 = vperm.xlu0 %470, %v466
      %v472 = vpop.permute.xlu0 %471
      %v473 = vperm.slane %v270, 3
      %v474 = vlaneseq
      %v475 = vshrl.u32 %v474, 7
      %v476 = vadd.s32 %v475, 32
      %477 = vset.pattern.permute.xlu0 %v476
      %478 = vperm.xlu0 %477, %v473
      %v479 = vpop.permute.xlu0 %478
      %v480 = vperm.slane %v270, 4
      %v481 = vlaneseq
      %v482 = vshrl.u32 %v481, 7
      %v483 = vadd.s32 %v482, 32
      %484 = vset.pattern.permute.xlu0 %v483
      %485 = vperm.xlu0 %484, %v480
      %v486 = vpop.permute.xlu0 %485
      %v487 = vperm.slane %v270, 5
      %v488 = vlaneseq
      %v489 = vshrl.u32 %v488, 7
      %v490 = vadd.s32 %v489, 32
      %491 = vset.pattern.permute.xlu0 %v490
      %492 = vperm.xlu0 %491, %v487
      %v493 = vpop.permute.xlu0 %492
      %v494 = vperm.slane %v270, 6
      %v495 = vlaneseq
      %v496 = vshrl.u32 %v495, 7
      %v497 = vadd.s32 %v496, 32
      %498 = vset.pattern.permute.xlu0 %v497
      %499 = vperm.xlu0 %498, %v494
      %v500 = vpop.permute.xlu0 %499
      %v501 = vperm.slane %v270, 7
      %v502 = vlaneseq
      %v503 = vshrl.u32 %v502, 7
      %v504 = vadd.s32 %v503, 32
      %505 = vset.pattern.permute.xlu0 %v504
      %506 = vperm.xlu0 %505, %v501
      %v507 = vpop.permute.xlu0 %506
      %v508 = vperm.slane %v273, 0
      %v509 = vlaneseq
      %v510 = vshrl.u32 %v509, 7
      %v511 = vadd.s32 %v510, 32
      %512 = vset.pattern.permute.xlu0 %v511
      %513 = vperm.xlu0 %512, %v508
      %v514 = vpop.permute.xlu0 %513
      %v515 = vperm.slane %v273, 1
      %v516 = vlaneseq
      %v517 = vshrl.u32 %v516, 7
      %v518 = vadd.s32 %v517, 32
      %519 = vset.pattern.permute.xlu0 %v518
      %520 = vperm.xlu0 %519, %v515
      %v521 = vpop.permute.xlu0 %520
      %v522 = vperm.slane %v273, 2
      %v523 = vlaneseq
      %v524 = vshrl.u32 %v523, 7
      %v525 = vadd.s32 %v524, 32
      %526 = vset.pattern.permute.xlu0 %v525
      %527 = vperm.xlu0 %526, %v522
      %v528 = vpop.permute.xlu0 %527
      %v529 = vperm.slane %v273, 3
      %v530 = vlaneseq
      %v531 = vshrl.u32 %v530, 7
      %v532 = vadd.s32 %v531, 32
      %533 = vset.pattern.permute.xlu0 %v532
      %534 = vperm.xlu0 %533, %v529
      %v535 = vpop.permute.xlu0 %534
      %v536 = vperm.slane %v273, 4
      %v537 = vlaneseq
      %v538 = vshrl.u32 %v537, 7
      %v539 = vadd.s32 %v538, 32
      %540 = vset.pattern.permute.xlu0 %v539
      %541 = vperm.xlu0 %540, %v536
      %v542 = vpop.permute.xlu0 %541
      %v543 = vperm.slane %v273, 5
      %v544 = vlaneseq
      %v545 = vshrl.u32 %v544, 7
      %v546 = vadd.s32 %v545, 32
      %547 = vset.pattern.permute.xlu0 %v546
      %548 = vperm.xlu0 %547, %v543
      %v549 = vpop.permute.xlu0 %548
      %v550 = vperm.slane %v273, 6
      %v551 = vlaneseq
      %v552 = vshrl.u32 %v551, 7
      %v553 = vadd.s32 %v552, 32
      %554 = vset.pattern.permute.xlu0 %v553
      %555 = vperm.xlu0 %554, %v550
      %v556 = vpop.permute.xlu0 %555
      %v557 = vperm.slane %v273, 7
      %v558 = vlaneseq
      %v559 = vshrl.u32 %v558, 7
      %v560 = vadd.s32 %v559, 32
      %561 = vset.pattern.permute.xlu0 %v560
      %562 = vperm.xlu0 %561, %v557
      %v563 = vpop.permute.xlu0 %562
      %v564 = vperm.slane %v276, 0
      %v565 = vlaneseq
      %v566 = vshrl.u32 %v565, 7
      %v567 = vadd.s32 %v566, 32
      %568 = vset.pattern.permute.xlu0 %v567
      %569 = vperm.xlu0 %568, %v564
      %v570 = vpop.permute.xlu0 %569
      %v571 = vperm.slane %v276, 1
      %v572 = vlaneseq
      %v573 = vshrl.u32 %v572, 7
      %v574 = vadd.s32 %v573, 32
      %575 = vset.pattern.permute.xlu0 %v574
      %576 = vperm.xlu0 %575, %v571
      %v577 = vpop.permute.xlu0 %576
      %v578 = vperm.slane %v276, 2
      %v579 = vlaneseq
      %v580 = vshrl.u32 %v579, 7
      %v581 = vadd.s32 %v580, 32
      %582 = vset.pattern.permute.xlu0 %v581
      %583 = vperm.xlu0 %582, %v578
      %v584 = vpop.permute.xlu0 %583
      %v585 = vperm.slane %v276, 3
      %v586 = vlaneseq
      %v587 = vshrl.u32 %v586, 7
      %v588 = vadd.s32 %v587, 32
      %589 = vset.pattern.permute.xlu0 %v588
      %590 = vperm.xlu0 %589, %v585
      %v591 = vpop.permute.xlu0 %590
      %v592 = vperm.slane %v276, 4
      %v593 = vlaneseq
      %v594 = vshrl.u32 %v593, 7
      %v595 = vadd.s32 %v594, 32
      %596 = vset.pattern.permute.xlu0 %v595
      %597 = vperm.xlu0 %596, %v592
      %v598 = vpop.permute.xlu0 %597
      %v599 = vperm.slane %v276, 5
      %v600 = vlaneseq
      %v601 = vshrl.u32 %v600, 7
      %v602 = vadd.s32 %v601, 32
      %603 = vset.pattern.permute.xlu0 %v602
      %604 = vperm.xlu0 %603, %v599
      %v605 = vpop.permute.xlu0 %604
      %v606 = vperm.slane %v276, 6
      %v607 = vlaneseq
      %v608 = vshrl.u32 %v607, 7
      %v609 = vadd.s32 %v608, 32
      %610 = vset.pattern.permute.xlu0 %v609
      %611 = vperm.xlu0 %610, %v606
      %v612 = vpop.permute.xlu0 %611
      %v613 = vperm.slane %v276, 7
      %v614 = vlaneseq
      %v615 = vshrl.u32 %v614, 7
      %v616 = vadd.s32 %v615, 32
      %617 = vset.pattern.permute.xlu0 %v616
      %618 = vperm.xlu0 %617, %v613
      %v619 = vpop.permute.xlu0 %618
      %v620 = vperm.slane %v279, 0
      %v621 = vlaneseq
      %v622 = vshrl.u32 %v621, 7
      %v623 = vadd.s32 %v622, 32
      %624 = vset.pattern.permute.xlu0 %v623
      %625 = vperm.xlu0 %624, %v620
      %v626 = vpop.permute.xlu0 %625
      %v627 = vperm.slane %v279, 1
      %v628 = vlaneseq
      %v629 = vshrl.u32 %v628, 7
      %v630 = vadd.s32 %v629, 32
      %631 = vset.pattern.permute.xlu0 %v630
      %632 = vperm.xlu0 %631, %v627
      %v633 = vpop.permute.xlu0 %632
      %v634 = vperm.slane %v279, 2
      %v635 = vlaneseq
      %v636 = vshrl.u32 %v635, 7
      %v637 = vadd.s32 %v636, 32
      %638 = vset.pattern.permute.xlu0 %v637
      %639 = vperm.xlu0 %638, %v634
      %v640 = vpop.permute.xlu0 %639
      %v641 = vperm.slane %v279, 3
      %v642 = vlaneseq
      %v643 = vshrl.u32 %v642, 7
      %v644 = vadd.s32 %v643, 32
      %645 = vset.pattern.permute.xlu0 %v644
      %646 = vperm.xlu0 %645, %v641
      %v647 = vpop.permute.xlu0 %646
      %v648 = vperm.slane %v279, 4
      %v649 = vlaneseq
      %v650 = vshrl.u32 %v649, 7
      %v651 = vadd.s32 %v650, 32
      %652 = vset.pattern.permute.xlu0 %v651
      %653 = vperm.xlu0 %652, %v648
      %v654 = vpop.permute.xlu0 %653
      %v655 = vperm.slane %v279, 5
      %v656 = vlaneseq
      %v657 = vshrl.u32 %v656, 7
      %v658 = vadd.s32 %v657, 32
      %659 = vset.pattern.permute.xlu0 %v658
      %660 = vperm.xlu0 %659, %v655
      %v661 = vpop.permute.xlu0 %660
      %v662 = vperm.slane %v279, 6
      %v663 = vlaneseq
      %v664 = vshrl.u32 %v663, 7
      %v665 = vadd.s32 %v664, 32
      %666 = vset.pattern.permute.xlu0 %v665
      %667 = vperm.xlu0 %666, %v662
      %v668 = vpop.permute.xlu0 %667
      %v669 = vperm.slane %v279, 7
      %v670 = vlaneseq
      %v671 = vshrl.u32 %v670, 7
      %v672 = vadd.s32 %v671, 32
      %673 = vset.pattern.permute.xlu0 %v672
      %674 = vperm.xlu0 %673, %v669
      %v675 = vpop.permute.xlu0 %674
      %v676 = vperm.slane %v282, 0
      %v677 = vlaneseq
      %v678 = vshrl.u32 %v677, 7
      %v679 = vadd.s32 %v678, 32
      %680 = vset.pattern.permute.xlu0 %v679
      %681 = vperm.xlu0 %680, %v676
      %v682 = vpop.permute.xlu0 %681
      %v683 = vperm.slane %v282, 1
      %v684 = vlaneseq
      %v685 = vshrl.u32 %v684, 7
      %v686 = vadd.s32 %v685, 32
      %687 = vset.pattern.permute.xlu0 %v686
      %688 = vperm.xlu0 %687, %v683
      %v689 = vpop.permute.xlu0 %688
      %v690 = vperm.slane %v282, 2
      %v691 = vlaneseq
      %v692 = vshrl.u32 %v691, 7
      %v693 = vadd.s32 %v692, 32
      %694 = vset.pattern.permute.xlu0 %v693
      %695 = vperm.xlu0 %694, %v690
      %v696 = vpop.permute.xlu0 %695
      %v697 = vperm.slane %v282, 3
      %v698 = vlaneseq
      %v699 = vshrl.u32 %v698, 7
      %v700 = vadd.s32 %v699, 32
      %701 = vset.pattern.permute.xlu0 %v700
      %702 = vperm.xlu0 %701, %v697
      %v703 = vpop.permute.xlu0 %702
      %v704 = vperm.slane %v282, 4
      %v705 = vlaneseq
      %v706 = vshrl.u32 %v705, 7
      %v707 = vadd.s32 %v706, 32
      %708 = vset.pattern.permute.xlu0 %v707
      %709 = vperm.xlu0 %708, %v704
      %v710 = vpop.permute.xlu0 %709
      %v711 = vperm.slane %v282, 5
      %v712 = vlaneseq
      %v713 = vshrl.u32 %v712, 7
      %v714 = vadd.s32 %v713, 32
      %715 = vset.pattern.permute.xlu0 %v714
      %716 = vperm.xlu0 %715, %v711
      %v717 = vpop.permute.xlu0 %716
      %v718 = vperm.slane %v282, 6
      %v719 = vlaneseq
      %v720 = vshrl.u32 %v719, 7
      %v721 = vadd.s32 %v720, 32
      %722 = vset.pattern.permute.xlu0 %v721
      %723 = vperm.xlu0 %722, %v718
      %v724 = vpop.permute.xlu0 %723
      %v725 = vperm.slane %v282, 7
      %v726 = vlaneseq
      %v727 = vshrl.u32 %v726, 7
      %v728 = vadd.s32 %v727, 32
      %729 = vset.pattern.permute.xlu0 %v728
      %730 = vperm.xlu0 %729, %v725
      %v731 = vpop.permute.xlu0 %730
      %v740 = vrot.slane %v261, 1
      %v741 = vrot.slane %v261, 2
      %v742 = vrot.slane %v261, 3
      %v743 = vrot.slane %v261, 4
      %v744 = vrot.slane %v261, 5
      %v745 = vrot.slane %v261, 6
      %v746 = vrot.slane %v261, 7
      %v747 = vrot.slane %v264, 1
      %v748 = vrot.slane %v264, 2
      %v749 = vrot.slane %v264, 3
      %v750 = vrot.slane %v264, 4
      %v751 = vrot.slane %v264, 5
      %v752 = vrot.slane %v264, 6
      %v753 = vrot.slane %v264, 7
      %v754 = vrot.slane %v267, 1
      %v755 = vrot.slane %v267, 2
      %v756 = vrot.slane %v267, 3
      %v757 = vrot.slane %v267, 4
      %v758 = vrot.slane %v267, 5
      %v759 = vrot.slane %v267, 6
      %v760 = vrot.slane %v267, 7
      %v761 = vrot.slane %v270, 1
      %v762 = vrot.slane %v270, 2
      %v763 = vrot.slane %v270, 3
      %v764 = vrot.slane %v270, 4
      %v765 = vrot.slane %v270, 5
      %v766 = vrot.slane %v270, 6
      %v767 = vrot.slane %v270, 7
      %v768 = vrot.slane %v273, 1
      %v769 = vrot.slane %v273, 2
      %v770 = vrot.slane %v273, 3
      %v771 = vrot.slane %v273, 4
      %v772 = vrot.slane %v273, 5
      %v773 = vrot.slane %v273, 6
      %v774 = vrot.slane %v273, 7
      %v775 = vrot.slane %v276, 1
      %v776 = vrot.slane %v276, 2
      %v777 = vrot.slane %v276, 3
      %v778 = vrot.slane %v276, 4
      %v779 = vrot.slane %v276, 5
      %v780 = vrot.slane %v276, 6
      %v781 = vrot.slane %v276, 7
      %v782 = vrot.slane %v279, 1
      %v783 = vrot.slane %v279, 2
      %v784 = vrot.slane %v279, 3
      %v785 = vrot.slane %v279, 4
      %v786 = vrot.slane %v279, 5
      %v787 = vrot.slane %v279, 6
      %v788 = vrot.slane %v279, 7
      %v789 = vrot.slane %v282, 1
      %v790 = vrot.slane %v282, 2
      %v791 = vrot.slane %v282, 3
      %v792 = vrot.slane %v282, 4
      %v793 = vrot.slane %v282, 5
      %v794 = vrot.slane %v282, 6
      %v795 = vrot.slane %v282, 7
      %v796 = vperm.slane %v261, 0
      %v797 = vperm.slane %v740, 0
      %v798 = vperm.slane %v741, 0
      %v799 = vperm.slane %v742, 0
      %v800 = vperm.slane %v743, 0
      %v801 = vperm.slane %v744, 0
      %v802 = vperm.slane %v745, 0
      %v803 = vperm.slane %v746, 0
      %v804 = vperm.slane %v264, 0
      %v805 = vperm.slane %v747, 0
      %v806 = vperm.slane %v748, 0
      %v807 = vperm.slane %v749, 0
      %v808 = vperm.slane %v750, 0
      %v809 = vperm.slane %v751, 0
      %v810 = vperm.slane %v752, 0
      %v811 = vperm.slane %v753, 0
      %v812 = vperm.slane %v267, 0
      %v813 = vperm.slane %v754, 0
      %v814 = vperm.slane %v755, 0
      %v815 = vperm.slane %v756, 0
      %v816 = vperm.slane %v757, 0
      %v817 = vperm.slane %v758, 0
      %v818 = vperm.slane %v759, 0
      %v819 = vperm.slane %v760, 0
      %v820 = vperm.slane %v270, 0
      %v821 = vperm.slane %v761, 0
      %v822 = vperm.slane %v762, 0
      %v823 = vperm.slane %v763, 0
      %v824 = vperm.slane %v764, 0
      %v825 = vperm.slane %v765, 0
      %v826 = vperm.slane %v766, 0
      %v827 = vperm.slane %v767, 0
      %v828 = vperm.slane %v273, 0
      %v829 = vperm.slane %v768, 0
      %v830 = vperm.slane %v769, 0
      %v831 = vperm.slane %v770, 0
      %v832 = vperm.slane %v771, 0
      %v833 = vperm.slane %v772, 0
      %v834 = vperm.slane %v773, 0
      %v835 = vperm.slane %v774, 0
      %v836 = vperm.slane %v276, 0
      %v837 = vperm.slane %v775, 0
      %v838 = vperm.slane %v776, 0
      %v839 = vperm.slane %v777, 0
      %v840 = vperm.slane %v778, 0
      %v841 = vperm.slane %v779, 0
      %v842 = vperm.slane %v780, 0
      %v843 = vperm.slane %v781, 0
      %v844 = vperm.slane %v279, 0
      %v845 = vperm.slane %v782, 0
      %v846 = vperm.slane %v783, 0
      %v847 = vperm.slane %v784, 0
      %v848 = vperm.slane %v785, 0
      %v849 = vperm.slane %v786, 0
      %v850 = vperm.slane %v787, 0
      %v851 = vperm.slane %v788, 0
      %v852 = vperm.slane %v282, 0
      %v853 = vperm.slane %v789, 0
      %v854 = vperm.slane %v790, 0
      %v855 = vperm.slane %v791, 0
      %v856 = vperm.slane %v792, 0
      %v857 = vperm.slane %v793, 0
      %v858 = vperm.slane %v794, 0
      %v859 = vperm.slane %v795, 0
      %v924 = vmul.f32 %v290, %v796
      %v925 = vmul.f32 %v297, %v797
      %v926 = vmul.f32 %v304, %v798
      %v927 = vmul.f32 %v311, %v799
      %v928 = vmul.f32 %v318, %v800
      %v929 = vmul.f32 %v325, %v801
      %v930 = vmul.f32 %v332, %v802
      %v931 = vmul.f32 %v339, %v803
      %v932 = vmul.f32 %v346, %v804
      %v933 = vmul.f32 %v353, %v805
      %v934 = vmul.f32 %v360, %v806
      %v935 = vmul.f32 %v367, %v807
      %v936 = vmul.f32 %v374, %v808
      %v937 = vmul.f32 %v381, %v809
      %v938 = vmul.f32 %v388, %v810
      %v939 = vmul.f32 %v395, %v811
      %v940 = vmul.f32 %v402, %v812
      %v941 = vmul.f32 %v409, %v813
      %v942 = vmul.f32 %v416, %v814
      %v943 = vmul.f32 %v423, %v815
      %v944 = vmul.f32 %v430, %v816
      %v945 = vmul.f32 %v437, %v817
      %v946 = vmul.f32 %v444, %v818
      %v947 = vmul.f32 %v451, %v819
      %v948 = vmul.f32 %v458, %v820
      %v949 = vmul.f32 %v465, %v821
      %v950 = vmul.f32 %v472, %v822
      %v951 = vmul.f32 %v479, %v823
      %v952 = vmul.f32 %v486, %v824
      %v953 = vmul.f32 %v493, %v825
      %v954 = vmul.f32 %v500, %v826
      %v955 = vmul.f32 %v507, %v827
      %v956 = vmul.f32 %v514, %v828
      %v957 = vmul.f32 %v521, %v829
      %v958 = vmul.f32 %v528, %v830
      %v959 = vmul.f32 %v535, %v831
      %v960 = vmul.f32 %v542, %v832
      %v961 = vmul.f32 %v549, %v833
      %v962 = vmul.f32 %v556, %v834
      %v963 = vmul.f32 %v563, %v835
      %v964 = vmul.f32 %v570, %v836
      %v965 = vmul.f32 %v577, %v837
      %v966 = vmul.f32 %v584, %v838
      %v967 = vmul.f32 %v591, %v839
      %v968 = vmul.f32 %v598, %v840
      %v969 = vmul.f32 %v605, %v841
      %v970 = vmul.f32 %v612, %v842
      %v971 = vmul.f32 %v619, %v843
      %v972 = vmul.f32 %v626, %v844
      %v973 = vmul.f32 %v633, %v845
      %v974 = vmul.f32 %v640, %v846
      %v975 = vmul.f32 %v647, %v847
      %v976 = vmul.f32 %v654, %v848
      %v977 = vmul.f32 %v661, %v849
      %v978 = vmul.f32 %v668, %v850
      %v979 = vmul.f32 %v675, %v851
      %v980 = vmul.f32 %v682, %v852
      %v981 = vmul.f32 %v689, %v853
      %v982 = vmul.f32 %v696, %v854
      %v983 = vmul.f32 %v703, %v855
      %v984 = vmul.f32 %v710, %v856
      %v985 = vmul.f32 %v717, %v857
      %v986 = vmul.f32 %v724, %v858
      %v987 = vmul.f32 %v731, %v859
      %v988 = vsel %vm218, %v924, -inf
      %v989 = vrot.slane %v988, 4
      %v990 = vmax.f32 %v988, %v989
      %v991 = vrot.slane %v990, 2
      %v992 = vmax.f32 %v990, %v991
      %v993 = vrot.slane %v992, 1
      %v994 = vmax.f32 %v992, %v993
      %v995 = vsel %vm218, %v925, -inf
      %v996 = vrot.slane %v995, 4
      %v997 = vmax.f32 %v995, %v996
      %v998 = vrot.slane %v997, 2
      %v999 = vmax.f32 %v997, %v998
      %v1000 = vrot.slane %v999, 1
      %v1001 = vmax.f32 %v999, %v1000
      %v1002 = vsel %vm218, %v926, -inf
      %v1003 = vrot.slane %v1002, 4
      %v1004 = vmax.f32 %v1002, %v1003
      %v1005 = vrot.slane %v1004, 2
      %v1006 = vmax.f32 %v1004, %v1005
      %v1007 = vrot.slane %v1006, 1
      %v1008 = vmax.f32 %v1006, %v1007
      %v1009 = vsel %vm218, %v927, -inf
      %v1010 = vrot.slane %v1009, 4
      %v1011 = vmax.f32 %v1009, %v1010
      %v1012 = vrot.slane %v1011, 2
      %v1013 = vmax.f32 %v1011, %v1012
      %v1014 = vrot.slane %v1013, 1
      %v1015 = vmax.f32 %v1013, %v1014
      %v1016 = vsel %vm218, %v928, -inf
      %v1017 = vrot.slane %v1016, 4
      %v1018 = vmax.f32 %v1016, %v1017
      %v1019 = vrot.slane %v1018, 2
      %v1020 = vmax.f32 %v1018, %v1019
      %v1021 = vrot.slane %v1020, 1
      %v1022 = vmax.f32 %v1020, %v1021
      %v1023 = vsel %vm218, %v929, -inf
      %v1024 = vrot.slane %v1023, 4
      %v1025 = vmax.f32 %v1023, %v1024
      %v1026 = vrot.slane %v1025, 2
      %v1027 = vmax.f32 %v1025, %v1026
      %v1028 = vrot.slane %v1027, 1
      %v1029 = vmax.f32 %v1027, %v1028
      %v1030 = vsel %vm218, %v930, -inf
      %v1031 = vrot.slane %v1030, 4
      %v1032 = vmax.f32 %v1030, %v1031
      %v1033 = vrot.slane %v1032, 2
      %v1034 = vmax.f32 %v1032, %v1033
      %v1035 = vrot.slane %v1034, 1
      %v1036 = vmax.f32 %v1034, %v1035
      %v1037 = vsel %vm218, %v931, -inf
      %v1038 = vrot.slane %v1037, 4
      %v1039 = vmax.f32 %v1037, %v1038
      %v1040 = vrot.slane %v1039, 2
      %v1041 = vmax.f32 %v1039, %v1040
      %v1042 = vrot.slane %v1041, 1
      %v1043 = vmax.f32 %v1041, %v1042
      %v1044 = vsel %vm218, %v932, -inf
      %v1045 = vrot.slane %v1044, 4
      %v1046 = vmax.f32 %v1044, %v1045
      %v1047 = vrot.slane %v1046, 2
      %v1048 = vmax.f32 %v1046, %v1047
      %v1049 = vrot.slane %v1048, 1
      %v1050 = vmax.f32 %v1048, %v1049
      %v1051 = vsel %vm218, %v933, -inf
      %v1052 = vrot.slane %v1051, 4
      %v1053 = vmax.f32 %v1051, %v1052
      %v1054 = vrot.slane %v1053, 2
      %v1055 = vmax.f32 %v1053, %v1054
      %v1056 = vrot.slane %v1055, 1
      %v1057 = vmax.f32 %v1055, %v1056
      %v1058 = vsel %vm218, %v934, -inf
      %v1059 = vrot.slane %v1058, 4
      %v1060 = vmax.f32 %v1058, %v1059
      %v1061 = vrot.slane %v1060, 2
      %v1062 = vmax.f32 %v1060, %v1061
      %v1063 = vrot.slane %v1062, 1
      %v1064 = vmax.f32 %v1062, %v1063
      %v1065 = vsel %vm218, %v935, -inf
      %v1066 = vrot.slane %v1065, 4
      %v1067 = vmax.f32 %v1065, %v1066
      %v1068 = vrot.slane %v1067, 2
      %v1069 = vmax.f32 %v1067, %v1068
      %v1070 = vrot.slane %v1069, 1
      %v1071 = vmax.f32 %v1069, %v1070
      %v1072 = vsel %vm218, %v936, -inf
      %v1073 = vrot.slane %v1072, 4
      %v1074 = vmax.f32 %v1072, %v1073
      %v1075 = vrot.slane %v1074, 2
      %v1076 = vmax.f32 %v1074, %v1075
      %v1077 = vrot.slane %v1076, 1
      %v1078 = vmax.f32 %v1076, %v1077
      %v1079 = vsel %vm218, %v937, -inf
      %v1080 = vrot.slane %v1079, 4
      %v1081 = vmax.f32 %v1079, %v1080
      %v1082 = vrot.slane %v1081, 2
      %v1083 = vmax.f32 %v1081, %v1082
      %v1084 = vrot.slane %v1083, 1
      %v1085 = vmax.f32 %v1083, %v1084
      %v1086 = vsel %vm218, %v938, -inf
      %v1087 = vrot.slane %v1086, 4
      %v1088 = vmax.f32 %v1086, %v1087
      %v1089 = vrot.slane %v1088, 2
      %v1090 = vmax.f32 %v1088, %v1089
      %v1091 = vrot.slane %v1090, 1
      %v1092 = vmax.f32 %v1090, %v1091
      %v1093 = vsel %vm218, %v939, -inf
      %v1094 = vrot.slane %v1093, 4
      %v1095 = vmax.f32 %v1093, %v1094
      %v1096 = vrot.slane %v1095, 2
      %v1097 = vmax.f32 %v1095, %v1096
      %v1098 = vrot.slane %v1097, 1
      %v1099 = vmax.f32 %v1097, %v1098
      %v1100 = vsel %vm218, %v940, -inf
      %v1101 = vrot.slane %v1100, 4
      %v1102 = vmax.f32 %v1100, %v1101
      %v1103 = vrot.slane %v1102, 2
      %v1104 = vmax.f32 %v1102, %v1103
      %v1105 = vrot.slane %v1104, 1
      %v1106 = vmax.f32 %v1104, %v1105
      %v1107 = vsel %vm218, %v941, -inf
      %v1108 = vrot.slane %v1107, 4
      %v1109 = vmax.f32 %v1107, %v1108
      %v1110 = vrot.slane %v1109, 2
      %v1111 = vmax.f32 %v1109, %v1110
      %v1112 = vrot.slane %v1111, 1
      %v1113 = vmax.f32 %v1111, %v1112
      %v1114 = vsel %vm218, %v942, -inf
      %v1115 = vrot.slane %v1114, 4
      %v1116 = vmax.f32 %v1114, %v1115
      %v1117 = vrot.slane %v1116, 2
      %v1118 = vmax.f32 %v1116, %v1117
      %v1119 = vrot.slane %v1118, 1
      %v1120 = vmax.f32 %v1118, %v1119
      %v1121 = vsel %vm218, %v943, -inf
      %v1122 = vrot.slane %v1121, 4
      %v1123 = vmax.f32 %v1121, %v1122
      %v1124 = vrot.slane %v1123, 2
      %v1125 = vmax.f32 %v1123, %v1124
      %v1126 = vrot.slane %v1125, 1
      %v1127 = vmax.f32 %v1125, %v1126
      %v1128 = vsel %vm218, %v944, -inf
      %v1129 = vrot.slane %v1128, 4
      %v1130 = vmax.f32 %v1128, %v1129
      %v1131 = vrot.slane %v1130, 2
      %v1132 = vmax.f32 %v1130, %v1131
      %v1133 = vrot.slane %v1132, 1
      %v1134 = vmax.f32 %v1132, %v1133
      %v1135 = vsel %vm218, %v945, -inf
      %v1136 = vrot.slane %v1135, 4
      %v1137 = vmax.f32 %v1135, %v1136
      %v1138 = vrot.slane %v1137, 2
      %v1139 = vmax.f32 %v1137, %v1138
      %v1140 = vrot.slane %v1139, 1
      %v1141 = vmax.f32 %v1139, %v1140
      %v1142 = vsel %vm218, %v946, -inf
      %v1143 = vrot.slane %v1142, 4
      %v1144 = vmax.f32 %v1142, %v1143
      %v1145 = vrot.slane %v1144, 2
      %v1146 = vmax.f32 %v1144, %v1145
      %v1147 = vrot.slane %v1146, 1
      %v1148 = vmax.f32 %v1146, %v1147
      %v1149 = vsel %vm218, %v947, -inf
      %v1150 = vrot.slane %v1149, 4
      %v1151 = vmax.f32 %v1149, %v1150
      %v1152 = vrot.slane %v1151, 2
      %v1153 = vmax.f32 %v1151, %v1152
      %v1154 = vrot.slane %v1153, 1
      %v1155 = vmax.f32 %v1153, %v1154
      %v1156 = vsel %vm218, %v948, -inf
      %v1157 = vrot.slane %v1156, 4
      %v1158 = vmax.f32 %v1156, %v1157
      %v1159 = vrot.slane %v1158, 2
      %v1160 = vmax.f32 %v1158, %v1159
      %v1161 = vrot.slane %v1160, 1
      %v1162 = vmax.f32 %v1160, %v1161
      %v1163 = vsel %vm218, %v949, -inf
      %v1164 = vrot.slane %v1163, 4
      %v1165 = vmax.f32 %v1163, %v1164
      %v1166 = vrot.slane %v1165, 2
      %v1167 = vmax.f32 %v1165, %v1166
      %v1168 = vrot.slane %v1167, 1
      %v1169 = vmax.f32 %v1167, %v1168
      %v1170 = vsel %vm218, %v950, -inf
      %v1171 = vrot.slane %v1170, 4
      %v1172 = vmax.f32 %v1170, %v1171
      %v1173 = vrot.slane %v1172, 2
      %v1174 = vmax.f32 %v1172, %v1173
      %v1175 = vrot.slane %v1174, 1
      %v1176 = vmax.f32 %v1174, %v1175
      %v1177 = vsel %vm218, %v951, -inf
      %v1178 = vrot.slane %v1177, 4
      %v1179 = vmax.f32 %v1177, %v1178
      %v1180 = vrot.slane %v1179, 2
      %v1181 = vmax.f32 %v1179, %v1180
      %v1182 = vrot.slane %v1181, 1
      %v1183 = vmax.f32 %v1181, %v1182
      %v1184 = vsel %vm218, %v952, -inf
      %v1185 = vrot.slane %v1184, 4
      %v1186 = vmax.f32 %v1184, %v1185
      %v1187 = vrot.slane %v1186, 2
      %v1188 = vmax.f32 %v1186, %v1187
      %v1189 = vrot.slane %v1188, 1
      %v1190 = vmax.f32 %v1188, %v1189
      %v1191 = vsel %vm218, %v953, -inf
      %v1192 = vrot.slane %v1191, 4
      %v1193 = vmax.f32 %v1191, %v1192
      %v1194 = vrot.slane %v1193, 2
      %v1195 = vmax.f32 %v1193, %v1194
      %v1196 = vrot.slane %v1195, 1
      %v1197 = vmax.f32 %v1195, %v1196
      %v1198 = vsel %vm218, %v954, -inf
      %v1199 = vrot.slane %v1198, 4
      %v1200 = vmax.f32 %v1198, %v1199
      %v1201 = vrot.slane %v1200, 2
      %v1202 = vmax.f32 %v1200, %v1201
      %v1203 = vrot.slane %v1202, 1
      %v1204 = vmax.f32 %v1202, %v1203
      %v1205 = vsel %vm218, %v955, -inf
      %v1206 = vrot.slane %v1205, 4
      %v1207 = vmax.f32 %v1205, %v1206
      %v1208 = vrot.slane %v1207, 2
      %v1209 = vmax.f32 %v1207, %v1208
      %v1210 = vrot.slane %v1209, 1
      %v1211 = vmax.f32 %v1209, %v1210
      %v1212 = vsel %vm218, %v956, -inf
      %v1213 = vrot.slane %v1212, 4
      %v1214 = vmax.f32 %v1212, %v1213
      %v1215 = vrot.slane %v1214, 2
      %v1216 = vmax.f32 %v1214, %v1215
      %v1217 = vrot.slane %v1216, 1
      %v1218 = vmax.f32 %v1216, %v1217
      %v1219 = vsel %vm218, %v957, -inf
      %v1220 = vrot.slane %v1219, 4
      %v1221 = vmax.f32 %v1219, %v1220
      %v1222 = vrot.slane %v1221, 2
      %v1223 = vmax.f32 %v1221, %v1222
      %v1224 = vrot.slane %v1223, 1
      %v1225 = vmax.f32 %v1223, %v1224
      %v1226 = vsel %vm218, %v958, -inf
      %v1227 = vrot.slane %v1226, 4
      %v1228 = vmax.f32 %v1226, %v1227
      %v1229 = vrot.slane %v1228, 2
      %v1230 = vmax.f32 %v1228, %v1229
      %v1231 = vrot.slane %v1230, 1
      %v1232 = vmax.f32 %v1230, %v1231
      %v1233 = vsel %vm218, %v959, -inf
      %v1234 = vrot.slane %v1233, 4
      %v1235 = vmax.f32 %v1233, %v1234
      %v1236 = vrot.slane %v1235, 2
      %v1237 = vmax.f32 %v1235, %v1236
      %v1238 = vrot.slane %v1237, 1
      %v1239 = vmax.f32 %v1237, %v1238
      %v1240 = vsel %vm218, %v960, -inf
      %v1241 = vrot.slane %v1240, 4
      %v1242 = vmax.f32 %v1240, %v1241
      %v1243 = vrot.slane %v1242, 2
      %v1244 = vmax.f32 %v1242, %v1243
      %v1245 = vrot.slane %v1244, 1
      %v1246 = vmax.f32 %v1244, %v1245
      %v1247 = vsel %vm218, %v961, -inf
      %v1248 = vrot.slane %v1247, 4
      %v1249 = vmax.f32 %v1247, %v1248
      %v1250 = vrot.slane %v1249, 2
      %v1251 = vmax.f32 %v1249, %v1250
      %v1252 = vrot.slane %v1251, 1
      %v1253 = vmax.f32 %v1251, %v1252
      %v1254 = vsel %vm218, %v962, -inf
      %v1255 = vrot.slane %v1254, 4
      %v1256 = vmax.f32 %v1254, %v1255
      %v1257 = vrot.slane %v1256, 2
      %v1258 = vmax.f32 %v1256, %v1257
      %v1259 = vrot.slane %v1258, 1
      %v1260 = vmax.f32 %v1258, %v1259
      %v1261 = vsel %vm218, %v963, -inf
      %v1262 = vrot.slane %v1261, 4
      %v1263 = vmax.f32 %v1261, %v1262
      %v1264 = vrot.slane %v1263, 2
      %v1265 = vmax.f32 %v1263, %v1264
      %v1266 = vrot.slane %v1265, 1
      %v1267 = vmax.f32 %v1265, %v1266
      %v1268 = vsel %vm218, %v964, -inf
      %v1269 = vrot.slane %v1268, 4
      %v1270 = vmax.f32 %v1268, %v1269
      %v1271 = vrot.slane %v1270, 2
      %v1272 = vmax.f32 %v1270, %v1271
      %v1273 = vrot.slane %v1272, 1
      %v1274 = vmax.f32 %v1272, %v1273
      %v1275 = vsel %vm218, %v965, -inf
      %v1276 = vrot.slane %v1275, 4
      %v1277 = vmax.f32 %v1275, %v1276
      %v1278 = vrot.slane %v1277, 2
      %v1279 = vmax.f32 %v1277, %v1278
      %v1280 = vrot.slane %v1279, 1
      %v1281 = vmax.f32 %v1279, %v1280
      %v1282 = vsel %vm218, %v966, -inf
      %v1283 = vrot.slane %v1282, 4
      %v1284 = vmax.f32 %v1282, %v1283
      %v1285 = vrot.slane %v1284, 2
      %v1286 = vmax.f32 %v1284, %v1285
      %v1287 = vrot.slane %v1286, 1
      %v1288 = vmax.f32 %v1286, %v1287
      %v1289 = vsel %vm218, %v967, -inf
      %v1290 = vrot.slane %v1289, 4
      %v1291 = vmax.f32 %v1289, %v1290
      %v1292 = vrot.slane %v1291, 2
      %v1293 = vmax.f32 %v1291, %v1292
      %v1294 = vrot.slane %v1293, 1
      %v1295 = vmax.f32 %v1293, %v1294
      %v1296 = vsel %vm218, %v968, -inf
      %v1297 = vrot.slane %v1296, 4
      %v1298 = vmax.f32 %v1296, %v1297
      %v1299 = vrot.slane %v1298, 2
      %v1300 = vmax.f32 %v1298, %v1299
      %v1301 = vrot.slane %v1300, 1
      %v1302 = vmax.f32 %v1300, %v1301
      %v1303 = vsel %vm218, %v969, -inf
      %v1304 = vrot.slane %v1303, 4
      %v1305 = vmax.f32 %v1303, %v1304
      %v1306 = vrot.slane %v1305, 2
      %v1307 = vmax.f32 %v1305, %v1306
      %v1308 = vrot.slane %v1307, 1
      %v1309 = vmax.f32 %v1307, %v1308
      %v1310 = vsel %vm218, %v970, -inf
      %v1311 = vrot.slane %v1310, 4
      %v1312 = vmax.f32 %v1310, %v1311
      %v1313 = vrot.slane %v1312, 2
      %v1314 = vmax.f32 %v1312, %v1313
      %v1315 = vrot.slane %v1314, 1
      %v1316 = vmax.f32 %v1314, %v1315
      %v1317 = vsel %vm218, %v971, -inf
      %v1318 = vrot.slane %v1317, 4
      %v1319 = vmax.f32 %v1317, %v1318
      %v1320 = vrot.slane %v1319, 2
      %v1321 = vmax.f32 %v1319, %v1320
      %v1322 = vrot.slane %v1321, 1
      %v1323 = vmax.f32 %v1321, %v1322
      %v1324 = vsel %vm218, %v972, -inf
      %v1325 = vrot.slane %v1324, 4
      %v1326 = vmax.f32 %v1324, %v1325
      %v1327 = vrot.slane %v1326, 2
      %v1328 = vmax.f32 %v1326, %v1327
      %v1329 = vrot.slane %v1328, 1
      %v1330 = vmax.f32 %v1328, %v1329
      %v1331 = vsel %vm218, %v973, -inf
      %v1332 = vrot.slane %v1331, 4
      %v1333 = vmax.f32 %v1331, %v1332
      %v1334 = vrot.slane %v1333, 2
      %v1335 = vmax.f32 %v1333, %v1334
      %v1336 = vrot.slane %v1335, 1
      %v1337 = vmax.f32 %v1335, %v1336
      %v1338 = vsel %vm218, %v974, -inf
      %v1339 = vrot.slane %v1338, 4
      %v1340 = vmax.f32 %v1338, %v1339
      %v1341 = vrot.slane %v1340, 2
      %v1342 = vmax.f32 %v1340, %v1341
      %v1343 = vrot.slane %v1342, 1
      %v1344 = vmax.f32 %v1342, %v1343
      %v1345 = vsel %vm218, %v975, -inf
      %v1346 = vrot.slane %v1345, 4
      %v1347 = vmax.f32 %v1345, %v1346
      %v1348 = vrot.slane %v1347, 2
      %v1349 = vmax.f32 %v1347, %v1348
      %v1350 = vrot.slane %v1349, 1
      %v1351 = vmax.f32 %v1349, %v1350
      %v1352 = vsel %vm218, %v976, -inf
      %v1353 = vrot.slane %v1352, 4
      %v1354 = vmax.f32 %v1352, %v1353
      %v1355 = vrot.slane %v1354, 2
      %v1356 = vmax.f32 %v1354, %v1355
      %v1357 = vrot.slane %v1356, 1
      %v1358 = vmax.f32 %v1356, %v1357
      %v1359 = vsel %vm218, %v977, -inf
      %v1360 = vrot.slane %v1359, 4
      %v1361 = vmax.f32 %v1359, %v1360
      %v1362 = vrot.slane %v1361, 2
      %v1363 = vmax.f32 %v1361, %v1362
      %v1364 = vrot.slane %v1363, 1
      %v1365 = vmax.f32 %v1363, %v1364
      %v1366 = vsel %vm218, %v978, -inf
      %v1367 = vrot.slane %v1366, 4
      %v1368 = vmax.f32 %v1366, %v1367
      %v1369 = vrot.slane %v1368, 2
      %v1370 = vmax.f32 %v1368, %v1369
      %v1371 = vrot.slane %v1370, 1
      %v1372 = vmax.f32 %v1370, %v1371
      %v1373 = vsel %vm218, %v979, -inf
      %v1374 = vrot.slane %v1373, 4
      %v1375 = vmax.f32 %v1373, %v1374
      %v1376 = vrot.slane %v1375, 2
      %v1377 = vmax.f32 %v1375, %v1376
      %v1378 = vrot.slane %v1377, 1
      %v1379 = vmax.f32 %v1377, %v1378
      %v1380 = vsel %vm218, %v980, -inf
      %v1381 = vrot.slane %v1380, 4
      %v1382 = vmax.f32 %v1380, %v1381
      %v1383 = vrot.slane %v1382, 2
      %v1384 = vmax.f32 %v1382, %v1383
      %v1385 = vrot.slane %v1384, 1
      %v1386 = vmax.f32 %v1384, %v1385
      %v1387 = vsel %vm218, %v981, -inf
      %v1388 = vrot.slane %v1387, 4
      %v1389 = vmax.f32 %v1387, %v1388
      %v1390 = vrot.slane %v1389, 2
      %v1391 = vmax.f32 %v1389, %v1390
      %v1392 = vrot.slane %v1391, 1
      %v1393 = vmax.f32 %v1391, %v1392
      %v1394 = vsel %vm218, %v982, -inf
      %v1395 = vrot.slane %v1394, 4
      %v1396 = vmax.f32 %v1394, %v1395
      %v1397 = vrot.slane %v1396, 2
      %v1398 = vmax.f32 %v1396, %v1397
      %v1399 = vrot.slane %v1398, 1
      %v1400 = vmax.f32 %v1398, %v1399
      %v1401 = vsel %vm218, %v983, -inf
      %v1402 = vrot.slane %v1401, 4
      %v1403 = vmax.f32 %v1401, %v1402
      %v1404 = vrot.slane %v1403, 2
      %v1405 = vmax.f32 %v1403, %v1404
      %v1406 = vrot.slane %v1405, 1
      %v1407 = vmax.f32 %v1405, %v1406
      %v1408 = vsel %vm218, %v984, -inf
      %v1409 = vrot.slane %v1408, 4
      %v1410 = vmax.f32 %v1408, %v1409
      %v1411 = vrot.slane %v1410, 2
      %v1412 = vmax.f32 %v1410, %v1411
      %v1413 = vrot.slane %v1412, 1
      %v1414 = vmax.f32 %v1412, %v1413
      %v1415 = vsel %vm218, %v985, -inf
      %v1416 = vrot.slane %v1415, 4
      %v1417 = vmax.f32 %v1415, %v1416
      %v1418 = vrot.slane %v1417, 2
      %v1419 = vmax.f32 %v1417, %v1418
      %v1420 = vrot.slane %v1419, 1
      %v1421 = vmax.f32 %v1419, %v1420
      %v1422 = vsel %vm218, %v986, -inf
      %v1423 = vrot.slane %v1422, 4
      %v1424 = vmax.f32 %v1422, %v1423
      %v1425 = vrot.slane %v1424, 2
      %v1426 = vmax.f32 %v1424, %v1425
      %v1427 = vrot.slane %v1426, 1
      %v1428 = vmax.f32 %v1426, %v1427
      %v1429 = vsel %vm218, %v987, -inf
      %v1430 = vrot.slane %v1429, 4
      %v1431 = vmax.f32 %v1429, %v1430
      %v1432 = vrot.slane %v1431, 2
      %v1433 = vmax.f32 %v1431, %v1432
      %v1434 = vrot.slane %v1433, 1
      %v1435 = vmax.f32 %v1433, %v1434
      %v1436 = vsub.f32 %v924, %v994
      %v1437 = vsub.f32 %v925, %v1001
      %v1438 = vsub.f32 %v926, %v1008
      %v1439 = vsub.f32 %v927, %v1015
      %v1440 = vsub.f32 %v928, %v1022
      %v1441 = vsub.f32 %v929, %v1029
      %v1442 = vsub.f32 %v930, %v1036
      %v1443 = vsub.f32 %v931, %v1043
      %v1444 = vsub.f32 %v932, %v1050
      %v1445 = vsub.f32 %v933, %v1057
      %v1446 = vsub.f32 %v934, %v1064
      %v1447 = vsub.f32 %v935, %v1071
      %v1448 = vsub.f32 %v936, %v1078
      %v1449 = vsub.f32 %v937, %v1085
      %v1450 = vsub.f32 %v938, %v1092
      %v1451 = vsub.f32 %v939, %v1099
      %v1452 = vsub.f32 %v940, %v1106
      %v1453 = vsub.f32 %v941, %v1113
      %v1454 = vsub.f32 %v942, %v1120
      %v1455 = vsub.f32 %v943, %v1127
      %v1456 = vsub.f32 %v944, %v1134
      %v1457 = vsub.f32 %v945, %v1141
      %v1458 = vsub.f32 %v946, %v1148
      %v1459 = vsub.f32 %v947, %v1155
      %v1460 = vsub.f32 %v948, %v1162
      %v1461 = vsub.f32 %v949, %v1169
      %v1462 = vsub.f32 %v950, %v1176
      %v1463 = vsub.f32 %v951, %v1183
      %v1464 = vsub.f32 %v952, %v1190
      %v1465 = vsub.f32 %v953, %v1197
      %v1466 = vsub.f32 %v954, %v1204
      %v1467 = vsub.f32 %v955, %v1211
      %v1468 = vsub.f32 %v956, %v1218
      %v1469 = vsub.f32 %v957, %v1225
      %v1470 = vsub.f32 %v958, %v1232
      %v1471 = vsub.f32 %v959, %v1239
      %v1472 = vsub.f32 %v960, %v1246
      %v1473 = vsub.f32 %v961, %v1253
      %v1474 = vsub.f32 %v962, %v1260
      %v1475 = vsub.f32 %v963, %v1267
      %v1476 = vsub.f32 %v964, %v1274
      %v1477 = vsub.f32 %v965, %v1281
      %v1478 = vsub.f32 %v966, %v1288
      %v1479 = vsub.f32 %v967, %v1295
      %v1480 = vsub.f32 %v968, %v1302
      %v1481 = vsub.f32 %v969, %v1309
      %v1482 = vsub.f32 %v970, %v1316
      %v1483 = vsub.f32 %v971, %v1323
      %v1484 = vsub.f32 %v972, %v1330
      %v1485 = vsub.f32 %v973, %v1337
      %v1486 = vsub.f32 %v974, %v1344
      %v1487 = vsub.f32 %v975, %v1351
      %v1488 = vsub.f32 %v976, %v1358
      %v1489 = vsub.f32 %v977, %v1365
      %v1490 = vsub.f32 %v978, %v1372
      %v1491 = vsub.f32 %v979, %v1379
      %v1492 = vsub.f32 %v980, %v1386
      %v1493 = vsub.f32 %v981, %v1393
      %v1494 = vsub.f32 %v982, %v1400
      %v1495 = vsub.f32 %v983, %v1407
      %v1496 = vsub.f32 %v984, %v1414
      %v1497 = vsub.f32 %v985, %v1421
      %v1498 = vsub.f32 %v986, %v1428
      %v1499 = vsub.f32 %v987, %v1435
      %v1500 = vmul.f32 %v1436, 1.442695
      %v1501 = vpow.pop %v1500
      %v1502 = vmul.f32 %v1437, 1.442695
      %v1503 = vpow.pop %v1502
      %v1504 = vmul.f32 %v1438, 1.442695
      %v1505 = vpow.pop %v1504
      %v1506 = vmul.f32 %v1439, 1.442695
      %v1507 = vpow.pop %v1506
      %v1508 = vmul.f32 %v1440, 1.442695
      %v1509 = vpow.pop %v1508
      %v1510 = vmul.f32 %v1441, 1.442695
      %v1511 = vpow.pop %v1510
      %v1512 = vmul.f32 %v1442, 1.442695
      %v1513 = vpow.pop %v1512
      %v1514 = vmul.f32 %v1443, 1.442695
      %v1515 = vpow.pop %v1514
      %v1516 = vmul.f32 %v1444, 1.442695
      %v1517 = vpow.pop %v1516
      %v1518 = vmul.f32 %v1445, 1.442695
      %v1519 = vpow.pop %v1518
      %v1520 = vmul.f32 %v1446, 1.442695
      %v1521 = vpow.pop %v1520
      %v1522 = vmul.f32 %v1447, 1.442695
      %v1523 = vpow.pop %v1522
      %v1524 = vmul.f32 %v1448, 1.442695
      %v1525 = vpow.pop %v1524
      %v1526 = vmul.f32 %v1449, 1.442695
      %v1527 = vpow.pop %v1526
      %v1528 = vmul.f32 %v1450, 1.442695
      %v1529 = vpow.pop %v1528
      %v1530 = vmul.f32 %v1451, 1.442695
      %v1531 = vpow.pop %v1530
      %v1532 = vmul.f32 %v1452, 1.442695
      %v1533 = vpow.pop %v1532
      %v1534 = vmul.f32 %v1453, 1.442695
      %v1535 = vpow.pop %v1534
      %v1536 = vmul.f32 %v1454, 1.442695
      %v1537 = vpow.pop %v1536
      %v1538 = vmul.f32 %v1455, 1.442695
      %v1539 = vpow.pop %v1538
      %v1540 = vmul.f32 %v1456, 1.442695
      %v1541 = vpow.pop %v1540
      %v1542 = vmul.f32 %v1457, 1.442695
      %v1543 = vpow.pop %v1542
      %v1544 = vmul.f32 %v1458, 1.442695
      %v1545 = vpow.pop %v1544
      %v1546 = vmul.f32 %v1459, 1.442695
      %v1547 = vpow.pop %v1546
      %v1548 = vmul.f32 %v1460, 1.442695
      %v1549 = vpow.pop %v1548
      %v1550 = vmul.f32 %v1461, 1.442695
      %v1551 = vpow.pop %v1550
      %v1552 = vmul.f32 %v1462, 1.442695
      %v1553 = vpow.pop %v1552
      %v1554 = vmul.f32 %v1463, 1.442695
      %v1555 = vpow.pop %v1554
      %v1556 = vmul.f32 %v1464, 1.442695
      %v1557 = vpow.pop %v1556
      %v1558 = vmul.f32 %v1465, 1.442695
      %v1559 = vpow.pop %v1558
      %v1560 = vmul.f32 %v1466, 1.442695
      %v1561 = vpow.pop %v1560
      %v1562 = vmul.f32 %v1467, 1.442695
      %v1563 = vpow.pop %v1562
      %v1564 = vmul.f32 %v1468, 1.442695
      %v1565 = vpow.pop %v1564
      %v1566 = vmul.f32 %v1469, 1.442695
      %v1567 = vpow.pop %v1566
      %v1568 = vmul.f32 %v1470, 1.442695
      %v1569 = vpow.pop %v1568
      %v1570 = vmul.f32 %v1471, 1.442695
      %v1571 = vpow.pop %v1570
      %v1572 = vmul.f32 %v1472, 1.442695
      %v1573 = vpow.pop %v1572
      %v1574 = vmul.f32 %v1473, 1.442695
      %v1575 = vpow.pop %v1574
      %v1576 = vmul.f32 %v1474, 1.442695
      %v1577 = vpow.pop %v1576
      %v1578 = vmul.f32 %v1475, 1.442695
      %v1579 = vpow.pop %v1578
      %v1580 = vmul.f32 %v1476, 1.442695
      %v1581 = vpow.pop %v1580
      %v1582 = vmul.f32 %v1477, 1.442695
      %v1583 = vpow.pop %v1582
      %v1584 = vmul.f32 %v1478, 1.442695
      %v1585 = vpow.pop %v1584
      %v1586 = vmul.f32 %v1479, 1.442695
      %v1587 = vpow.pop %v1586
      %v1588 = vmul.f32 %v1480, 1.442695
      %v1589 = vpow.pop %v1588
      %v1590 = vmul.f32 %v1481, 1.442695
      %v1591 = vpow.pop %v1590
      %v1592 = vmul.f32 %v1482, 1.442695
      %v1593 = vpow.pop %v1592
      %v1594 = vmul.f32 %v1483, 1.442695
      %v1595 = vpow.pop %v1594
      %v1596 = vmul.f32 %v1484, 1.442695
      %v1597 = vpow.pop %v1596
      %v1598 = vmul.f32 %v1485, 1.442695
      %v1599 = vpow.pop %v1598
      %v1600 = vmul.f32 %v1486, 1.442695
      %v1601 = vpow.pop %v1600
      %v1602 = vmul.f32 %v1487, 1.442695
      %v1603 = vpow.pop %v1602
      %v1604 = vmul.f32 %v1488, 1.442695
      %v1605 = vpow.pop %v1604
      %v1606 = vmul.f32 %v1489, 1.442695
      %v1607 = vpow.pop %v1606
      %v1608 = vmul.f32 %v1490, 1.442695
      %v1609 = vpow.pop %v1608
      %v1610 = vmul.f32 %v1491, 1.442695
      %v1611 = vpow.pop %v1610
      %v1612 = vmul.f32 %v1492, 1.442695
      %v1613 = vpow.pop %v1612
      %v1614 = vmul.f32 %v1493, 1.442695
      %v1615 = vpow.pop %v1614
      %v1616 = vmul.f32 %v1494, 1.442695
      %v1617 = vpow.pop %v1616
      %v1618 = vmul.f32 %v1495, 1.442695
      %v1619 = vpow.pop %v1618
      %v1620 = vmul.f32 %v1496, 1.442695
      %v1621 = vpow.pop %v1620
      %v1622 = vmul.f32 %v1497, 1.442695
      %v1623 = vpow.pop %v1622
      %v1624 = vmul.f32 %v1498, 1.442695
      %v1625 = vpow.pop %v1624
      %v1626 = vmul.f32 %v1499, 1.442695
      %v1627 = vpow.pop %v1626
      %v1628 = vsel %vm218, %v1501, 0.0
      %v1629 = vrot.slane %v1628, 4
      %v1630 = vadd.f32 %v1628, %v1629
      %v1631 = vrot.slane %v1630, 2
      %v1632 = vadd.f32 %v1630, %v1631
      %v1633 = vrot.slane %v1632, 1
      %v1634 = vadd.f32 %v1632, %v1633
      %v1635 = vsel %vm218, %v1503, 0.0
      %v1636 = vrot.slane %v1635, 4
      %v1637 = vadd.f32 %v1635, %v1636
      %v1638 = vrot.slane %v1637, 2
      %v1639 = vadd.f32 %v1637, %v1638
      %v1640 = vrot.slane %v1639, 1
      %v1641 = vadd.f32 %v1639, %v1640
      %v1642 = vsel %vm218, %v1505, 0.0
      %v1643 = vrot.slane %v1642, 4
      %v1644 = vadd.f32 %v1642, %v1643
      %v1645 = vrot.slane %v1644, 2
      %v1646 = vadd.f32 %v1644, %v1645
      %v1647 = vrot.slane %v1646, 1
      %v1648 = vadd.f32 %v1646, %v1647
      %v1649 = vsel %vm218, %v1507, 0.0
      %v1650 = vrot.slane %v1649, 4
      %v1651 = vadd.f32 %v1649, %v1650
      %v1652 = vrot.slane %v1651, 2
      %v1653 = vadd.f32 %v1651, %v1652
      %v1654 = vrot.slane %v1653, 1
      %v1655 = vadd.f32 %v1653, %v1654
      %v1656 = vsel %vm218, %v1509, 0.0
      %v1657 = vrot.slane %v1656, 4
      %v1658 = vadd.f32 %v1656, %v1657
      %v1659 = vrot.slane %v1658, 2
      %v1660 = vadd.f32 %v1658, %v1659
      %v1661 = vrot.slane %v1660, 1
      %v1662 = vadd.f32 %v1660, %v1661
      %v1663 = vsel %vm218, %v1511, 0.0
      %v1664 = vrot.slane %v1663, 4
      %v1665 = vadd.f32 %v1663, %v1664
      %v1666 = vrot.slane %v1665, 2
      %v1667 = vadd.f32 %v1665, %v1666
      %v1668 = vrot.slane %v1667, 1
      %v1669 = vadd.f32 %v1667, %v1668
      %v1670 = vsel %vm218, %v1513, 0.0
      %v1671 = vrot.slane %v1670, 4
      %v1672 = vadd.f32 %v1670, %v1671
      %v1673 = vrot.slane %v1672, 2
      %v1674 = vadd.f32 %v1672, %v1673
      %v1675 = vrot.slane %v1674, 1
      %v1676 = vadd.f32 %v1674, %v1675
      %v1677 = vsel %vm218, %v1515, 0.0
      %v1678 = vrot.slane %v1677, 4
      %v1679 = vadd.f32 %v1677, %v1678
      %v1680 = vrot.slane %v1679, 2
      %v1681 = vadd.f32 %v1679, %v1680
      %v1682 = vrot.slane %v1681, 1
      %v1683 = vadd.f32 %v1681, %v1682
      %v1684 = vsel %vm218, %v1517, 0.0
      %v1685 = vrot.slane %v1684, 4
      %v1686 = vadd.f32 %v1684, %v1685
      %v1687 = vrot.slane %v1686, 2
      %v1688 = vadd.f32 %v1686, %v1687
      %v1689 = vrot.slane %v1688, 1
      %v1690 = vadd.f32 %v1688, %v1689
      %v1691 = vsel %vm218, %v1519, 0.0
      %v1692 = vrot.slane %v1691, 4
      %v1693 = vadd.f32 %v1691, %v1692
      %v1694 = vrot.slane %v1693, 2
      %v1695 = vadd.f32 %v1693, %v1694
      %v1696 = vrot.slane %v1695, 1
      %v1697 = vadd.f32 %v1695, %v1696
      %v1698 = vsel %vm218, %v1521, 0.0
      %v1699 = vrot.slane %v1698, 4
      %v1700 = vadd.f32 %v1698, %v1699
      %v1701 = vrot.slane %v1700, 2
      %v1702 = vadd.f32 %v1700, %v1701
      %v1703 = vrot.slane %v1702, 1
      %v1704 = vadd.f32 %v1702, %v1703
      %v1705 = vsel %vm218, %v1523, 0.0
      %v1706 = vrot.slane %v1705, 4
      %v1707 = vadd.f32 %v1705, %v1706
      %v1708 = vrot.slane %v1707, 2
      %v1709 = vadd.f32 %v1707, %v1708
      %v1710 = vrot.slane %v1709, 1
      %v1711 = vadd.f32 %v1709, %v1710
      %v1712 = vsel %vm218, %v1525, 0.0
      %v1713 = vrot.slane %v1712, 4
      %v1714 = vadd.f32 %v1712, %v1713
      %v1715 = vrot.slane %v1714, 2
      %v1716 = vadd.f32 %v1714, %v1715
      %v1717 = vrot.slane %v1716, 1
      %v1718 = vadd.f32 %v1716, %v1717
      %v1719 = vsel %vm218, %v1527, 0.0
      %v1720 = vrot.slane %v1719, 4
      %v1721 = vadd.f32 %v1719, %v1720
      %v1722 = vrot.slane %v1721, 2
      %v1723 = vadd.f32 %v1721, %v1722
      %v1724 = vrot.slane %v1723, 1
      %v1725 = vadd.f32 %v1723, %v1724
      %v1726 = vsel %vm218, %v1529, 0.0
      %v1727 = vrot.slane %v1726, 4
      %v1728 = vadd.f32 %v1726, %v1727
      %v1729 = vrot.slane %v1728, 2
      %v1730 = vadd.f32 %v1728, %v1729
      %v1731 = vrot.slane %v1730, 1
      %v1732 = vadd.f32 %v1730, %v1731
      %v1733 = vsel %vm218, %v1531, 0.0
      %v1734 = vrot.slane %v1733, 4
      %v1735 = vadd.f32 %v1733, %v1734
      %v1736 = vrot.slane %v1735, 2
      %v1737 = vadd.f32 %v1735, %v1736
      %v1738 = vrot.slane %v1737, 1
      %v1739 = vadd.f32 %v1737, %v1738
      %v1740 = vsel %vm218, %v1533, 0.0
      %v1741 = vrot.slane %v1740, 4
      %v1742 = vadd.f32 %v1740, %v1741
      %v1743 = vrot.slane %v1742, 2
      %v1744 = vadd.f32 %v1742, %v1743
      %v1745 = vrot.slane %v1744, 1
      %v1746 = vadd.f32 %v1744, %v1745
      %v1747 = vsel %vm218, %v1535, 0.0
      %v1748 = vrot.slane %v1747, 4
      %v1749 = vadd.f32 %v1747, %v1748
      %v1750 = vrot.slane %v1749, 2
      %v1751 = vadd.f32 %v1749, %v1750
      %v1752 = vrot.slane %v1751, 1
      %v1753 = vadd.f32 %v1751, %v1752
      %v1754 = vsel %vm218, %v1537, 0.0
      %v1755 = vrot.slane %v1754, 4
      %v1756 = vadd.f32 %v1754, %v1755
      %v1757 = vrot.slane %v1756, 2
      %v1758 = vadd.f32 %v1756, %v1757
      %v1759 = vrot.slane %v1758, 1
      %v1760 = vadd.f32 %v1758, %v1759
      %v1761 = vsel %vm218, %v1539, 0.0
      %v1762 = vrot.slane %v1761, 4
      %v1763 = vadd.f32 %v1761, %v1762
      %v1764 = vrot.slane %v1763, 2
      %v1765 = vadd.f32 %v1763, %v1764
      %v1766 = vrot.slane %v1765, 1
      %v1767 = vadd.f32 %v1765, %v1766
      %v1768 = vsel %vm218, %v1541, 0.0
      %v1769 = vrot.slane %v1768, 4
      %v1770 = vadd.f32 %v1768, %v1769
      %v1771 = vrot.slane %v1770, 2
      %v1772 = vadd.f32 %v1770, %v1771
      %v1773 = vrot.slane %v1772, 1
      %v1774 = vadd.f32 %v1772, %v1773
      %v1775 = vsel %vm218, %v1543, 0.0
      %v1776 = vrot.slane %v1775, 4
      %v1777 = vadd.f32 %v1775, %v1776
      %v1778 = vrot.slane %v1777, 2
      %v1779 = vadd.f32 %v1777, %v1778
      %v1780 = vrot.slane %v1779, 1
      %v1781 = vadd.f32 %v1779, %v1780
      %v1782 = vsel %vm218, %v1545, 0.0
      %v1783 = vrot.slane %v1782, 4
      %v1784 = vadd.f32 %v1782, %v1783
      %v1785 = vrot.slane %v1784, 2
      %v1786 = vadd.f32 %v1784, %v1785
      %v1787 = vrot.slane %v1786, 1
      %v1788 = vadd.f32 %v1786, %v1787
      %v1789 = vsel %vm218, %v1547, 0.0
      %v1790 = vrot.slane %v1789, 4
      %v1791 = vadd.f32 %v1789, %v1790
      %v1792 = vrot.slane %v1791, 2
      %v1793 = vadd.f32 %v1791, %v1792
      %v1794 = vrot.slane %v1793, 1
      %v1795 = vadd.f32 %v1793, %v1794
      %v1796 = vsel %vm218, %v1549, 0.0
      %v1797 = vrot.slane %v1796, 4
      %v1798 = vadd.f32 %v1796, %v1797
      %v1799 = vrot.slane %v1798, 2
      %v1800 = vadd.f32 %v1798, %v1799
      %v1801 = vrot.slane %v1800, 1
      %v1802 = vadd.f32 %v1800, %v1801
      %v1803 = vsel %vm218, %v1551, 0.0
      %v1804 = vrot.slane %v1803, 4
      %v1805 = vadd.f32 %v1803, %v1804
      %v1806 = vrot.slane %v1805, 2
      %v1807 = vadd.f32 %v1805, %v1806
      %v1808 = vrot.slane %v1807, 1
      %v1809 = vadd.f32 %v1807, %v1808
      %v1810 = vsel %vm218, %v1553, 0.0
      %v1811 = vrot.slane %v1810, 4
      %v1812 = vadd.f32 %v1810, %v1811
      %v1813 = vrot.slane %v1812, 2
      %v1814 = vadd.f32 %v1812, %v1813
      %v1815 = vrot.slane %v1814, 1
      %v1816 = vadd.f32 %v1814, %v1815
      %v1817 = vsel %vm218, %v1555, 0.0
      %v1818 = vrot.slane %v1817, 4
      %v1819 = vadd.f32 %v1817, %v1818
      %v1820 = vrot.slane %v1819, 2
      %v1821 = vadd.f32 %v1819, %v1820
      %v1822 = vrot.slane %v1821, 1
      %v1823 = vadd.f32 %v1821, %v1822
      %v1824 = vsel %vm218, %v1557, 0.0
      %v1825 = vrot.slane %v1824, 4
      %v1826 = vadd.f32 %v1824, %v1825
      %v1827 = vrot.slane %v1826, 2
      %v1828 = vadd.f32 %v1826, %v1827
      %v1829 = vrot.slane %v1828, 1
      %v1830 = vadd.f32 %v1828, %v1829
      %v1831 = vsel %vm218, %v1559, 0.0
      %v1832 = vrot.slane %v1831, 4
      %v1833 = vadd.f32 %v1831, %v1832
      %v1834 = vrot.slane %v1833, 2
      %v1835 = vadd.f32 %v1833, %v1834
      %v1836 = vrot.slane %v1835, 1
      %v1837 = vadd.f32 %v1835, %v1836
      %v1838 = vsel %vm218, %v1561, 0.0
      %v1839 = vrot.slane %v1838, 4
      %v1840 = vadd.f32 %v1838, %v1839
      %v1841 = vrot.slane %v1840, 2
      %v1842 = vadd.f32 %v1840, %v1841
      %v1843 = vrot.slane %v1842, 1
      %v1844 = vadd.f32 %v1842, %v1843
      %v1845 = vsel %vm218, %v1563, 0.0
      %v1846 = vrot.slane %v1845, 4
      %v1847 = vadd.f32 %v1845, %v1846
      %v1848 = vrot.slane %v1847, 2
      %v1849 = vadd.f32 %v1847, %v1848
      %v1850 = vrot.slane %v1849, 1
      %v1851 = vadd.f32 %v1849, %v1850
      %v1852 = vsel %vm218, %v1565, 0.0
      %v1853 = vrot.slane %v1852, 4
      %v1854 = vadd.f32 %v1852, %v1853
      %v1855 = vrot.slane %v1854, 2
      %v1856 = vadd.f32 %v1854, %v1855
      %v1857 = vrot.slane %v1856, 1
      %v1858 = vadd.f32 %v1856, %v1857
      %v1859 = vsel %vm218, %v1567, 0.0
      %v1860 = vrot.slane %v1859, 4
      %v1861 = vadd.f32 %v1859, %v1860
      %v1862 = vrot.slane %v1861, 2
      %v1863 = vadd.f32 %v1861, %v1862
      %v1864 = vrot.slane %v1863, 1
      %v1865 = vadd.f32 %v1863, %v1864
      %v1866 = vsel %vm218, %v1569, 0.0
      %v1867 = vrot.slane %v1866, 4
      %v1868 = vadd.f32 %v1866, %v1867
      %v1869 = vrot.slane %v1868, 2
      %v1870 = vadd.f32 %v1868, %v1869
      %v1871 = vrot.slane %v1870, 1
      %v1872 = vadd.f32 %v1870, %v1871
      %v1873 = vsel %vm218, %v1571, 0.0
      %v1874 = vrot.slane %v1873, 4
      %v1875 = vadd.f32 %v1873, %v1874
      %v1876 = vrot.slane %v1875, 2
      %v1877 = vadd.f32 %v1875, %v1876
      %v1878 = vrot.slane %v1877, 1
      %v1879 = vadd.f32 %v1877, %v1878
      %v1880 = vsel %vm218, %v1573, 0.0
      %v1881 = vrot.slane %v1880, 4
      %v1882 = vadd.f32 %v1880, %v1881
      %v1883 = vrot.slane %v1882, 2
      %v1884 = vadd.f32 %v1882, %v1883
      %v1885 = vrot.slane %v1884, 1
      %v1886 = vadd.f32 %v1884, %v1885
      %v1887 = vsel %vm218, %v1575, 0.0
      %v1888 = vrot.slane %v1887, 4
      %v1889 = vadd.f32 %v1887, %v1888
      %v1890 = vrot.slane %v1889, 2
      %v1891 = vadd.f32 %v1889, %v1890
      %v1892 = vrot.slane %v1891, 1
      %v1893 = vadd.f32 %v1891, %v1892
      %v1894 = vsel %vm218, %v1577, 0.0
      %v1895 = vrot.slane %v1894, 4
      %v1896 = vadd.f32 %v1894, %v1895
      %v1897 = vrot.slane %v1896, 2
      %v1898 = vadd.f32 %v1896, %v1897
      %v1899 = vrot.slane %v1898, 1
      %v1900 = vadd.f32 %v1898, %v1899
      %v1901 = vsel %vm218, %v1579, 0.0
      %v1902 = vrot.slane %v1901, 4
      %v1903 = vadd.f32 %v1901, %v1902
      %v1904 = vrot.slane %v1903, 2
      %v1905 = vadd.f32 %v1903, %v1904
      %v1906 = vrot.slane %v1905, 1
      %v1907 = vadd.f32 %v1905, %v1906
      %v1908 = vsel %vm218, %v1581, 0.0
      %v1909 = vrot.slane %v1908, 4
      %v1910 = vadd.f32 %v1908, %v1909
      %v1911 = vrot.slane %v1910, 2
      %v1912 = vadd.f32 %v1910, %v1911
      %v1913 = vrot.slane %v1912, 1
      %v1914 = vadd.f32 %v1912, %v1913
      %v1915 = vsel %vm218, %v1583, 0.0
      %v1916 = vrot.slane %v1915, 4
      %v1917 = vadd.f32 %v1915, %v1916
      %v1918 = vrot.slane %v1917, 2
      %v1919 = vadd.f32 %v1917, %v1918
      %v1920 = vrot.slane %v1919, 1
      %v1921 = vadd.f32 %v1919, %v1920
      %v1922 = vsel %vm218, %v1585, 0.0
      %v1923 = vrot.slane %v1922, 4
      %v1924 = vadd.f32 %v1922, %v1923
      %v1925 = vrot.slane %v1924, 2
      %v1926 = vadd.f32 %v1924, %v1925
      %v1927 = vrot.slane %v1926, 1
      %v1928 = vadd.f32 %v1926, %v1927
      %v1929 = vsel %vm218, %v1587, 0.0
      %v1930 = vrot.slane %v1929, 4
      %v1931 = vadd.f32 %v1929, %v1930
      %v1932 = vrot.slane %v1931, 2
      %v1933 = vadd.f32 %v1931, %v1932
      %v1934 = vrot.slane %v1933, 1
      %v1935 = vadd.f32 %v1933, %v1934
      %v1936 = vsel %vm218, %v1589, 0.0
      %v1937 = vrot.slane %v1936, 4
      %v1938 = vadd.f32 %v1936, %v1937
      %v1939 = vrot.slane %v1938, 2
      %v1940 = vadd.f32 %v1938, %v1939
      %v1941 = vrot.slane %v1940, 1
      %v1942 = vadd.f32 %v1940, %v1941
      %v1943 = vsel %vm218, %v1591, 0.0
      %v1944 = vrot.slane %v1943, 4
      %v1945 = vadd.f32 %v1943, %v1944
      %v1946 = vrot.slane %v1945, 2
      %v1947 = vadd.f32 %v1945, %v1946
      %v1948 = vrot.slane %v1947, 1
      %v1949 = vadd.f32 %v1947, %v1948
      %v1950 = vsel %vm218, %v1593, 0.0
      %v1951 = vrot.slane %v1950, 4
      %v1952 = vadd.f32 %v1950, %v1951
      %v1953 = vrot.slane %v1952, 2
      %v1954 = vadd.f32 %v1952, %v1953
      %v1955 = vrot.slane %v1954, 1
      %v1956 = vadd.f32 %v1954, %v1955
      %v1957 = vsel %vm218, %v1595, 0.0
      %v1958 = vrot.slane %v1957, 4
      %v1959 = vadd.f32 %v1957, %v1958
      %v1960 = vrot.slane %v1959, 2
      %v1961 = vadd.f32 %v1959, %v1960
      %v1962 = vrot.slane %v1961, 1
      %v1963 = vadd.f32 %v1961, %v1962
      %v1964 = vsel %vm218, %v1597, 0.0
      %v1965 = vrot.slane %v1964, 4
      %v1966 = vadd.f32 %v1964, %v1965
      %v1967 = vrot.slane %v1966, 2
      %v1968 = vadd.f32 %v1966, %v1967
      %v1969 = vrot.slane %v1968, 1
      %v1970 = vadd.f32 %v1968, %v1969
      %v1971 = vsel %vm218, %v1599, 0.0
      %v1972 = vrot.slane %v1971, 4
      %v1973 = vadd.f32 %v1971, %v1972
      %v1974 = vrot.slane %v1973, 2
      %v1975 = vadd.f32 %v1973, %v1974
      %v1976 = vrot.slane %v1975, 1
      %v1977 = vadd.f32 %v1975, %v1976
      %v1978 = vsel %vm218, %v1601, 0.0
      %v1979 = vrot.slane %v1978, 4
      %v1980 = vadd.f32 %v1978, %v1979
      %v1981 = vrot.slane %v1980, 2
      %v1982 = vadd.f32 %v1980, %v1981
      %v1983 = vrot.slane %v1982, 1
      %v1984 = vadd.f32 %v1982, %v1983
      %v1985 = vsel %vm218, %v1603, 0.0
      %v1986 = vrot.slane %v1985, 4
      %v1987 = vadd.f32 %v1985, %v1986
      %v1988 = vrot.slane %v1987, 2
      %v1989 = vadd.f32 %v1987, %v1988
      %v1990 = vrot.slane %v1989, 1
      %v1991 = vadd.f32 %v1989, %v1990
      %v1992 = vsel %vm218, %v1605, 0.0
      %v1993 = vrot.slane %v1992, 4
      %v1994 = vadd.f32 %v1992, %v1993
      %v1995 = vrot.slane %v1994, 2
      %v1996 = vadd.f32 %v1994, %v1995
      %v1997 = vrot.slane %v1996, 1
      %v1998 = vadd.f32 %v1996, %v1997
      %v1999 = vsel %vm218, %v1607, 0.0
      %v2000 = vrot.slane %v1999, 4
      %v2001 = vadd.f32 %v1999, %v2000
      %v2002 = vrot.slane %v2001, 2
      %v2003 = vadd.f32 %v2001, %v2002
      %v2004 = vrot.slane %v2003, 1
      %v2005 = vadd.f32 %v2003, %v2004
      %v2006 = vsel %vm218, %v1609, 0.0
      %v2007 = vrot.slane %v2006, 4
      %v2008 = vadd.f32 %v2006, %v2007
      %v2009 = vrot.slane %v2008, 2
      %v2010 = vadd.f32 %v2008, %v2009
      %v2011 = vrot.slane %v2010, 1
      %v2012 = vadd.f32 %v2010, %v2011
      %v2013 = vsel %vm218, %v1611, 0.0
      %v2014 = vrot.slane %v2013, 4
      %v2015 = vadd.f32 %v2013, %v2014
      %v2016 = vrot.slane %v2015, 2
      %v2017 = vadd.f32 %v2015, %v2016
      %v2018 = vrot.slane %v2017, 1
      %v2019 = vadd.f32 %v2017, %v2018
      %v2020 = vsel %vm218, %v1613, 0.0
      %v2021 = vrot.slane %v2020, 4
      %v2022 = vadd.f32 %v2020, %v2021
      %v2023 = vrot.slane %v2022, 2
      %v2024 = vadd.f32 %v2022, %v2023
      %v2025 = vrot.slane %v2024, 1
      %v2026 = vadd.f32 %v2024, %v2025
      %v2027 = vsel %vm218, %v1615, 0.0
      %v2028 = vrot.slane %v2027, 4
      %v2029 = vadd.f32 %v2027, %v2028
      %v2030 = vrot.slane %v2029, 2
      %v2031 = vadd.f32 %v2029, %v2030
      %v2032 = vrot.slane %v2031, 1
      %v2033 = vadd.f32 %v2031, %v2032
      %v2034 = vsel %vm218, %v1617, 0.0
      %v2035 = vrot.slane %v2034, 4
      %v2036 = vadd.f32 %v2034, %v2035
      %v2037 = vrot.slane %v2036, 2
      %v2038 = vadd.f32 %v2036, %v2037
      %v2039 = vrot.slane %v2038, 1
      %v2040 = vadd.f32 %v2038, %v2039
      %v2041 = vsel %vm218, %v1619, 0.0
      %v2042 = vrot.slane %v2041, 4
      %v2043 = vadd.f32 %v2041, %v2042
      %v2044 = vrot.slane %v2043, 2
      %v2045 = vadd.f32 %v2043, %v2044
      %v2046 = vrot.slane %v2045, 1
      %v2047 = vadd.f32 %v2045, %v2046
      %v2048 = vsel %vm218, %v1621, 0.0
      %v2049 = vrot.slane %v2048, 4
      %v2050 = vadd.f32 %v2048, %v2049
      %v2051 = vrot.slane %v2050, 2
      %v2052 = vadd.f32 %v2050, %v2051
      %v2053 = vrot.slane %v2052, 1
      %v2054 = vadd.f32 %v2052, %v2053
      %v2055 = vsel %vm218, %v1623, 0.0
      %v2056 = vrot.slane %v2055, 4
      %v2057 = vadd.f32 %v2055, %v2056
      %v2058 = vrot.slane %v2057, 2
      %v2059 = vadd.f32 %v2057, %v2058
      %v2060 = vrot.slane %v2059, 1
      %v2061 = vadd.f32 %v2059, %v2060
      %v2062 = vsel %vm218, %v1625, 0.0
      %v2063 = vrot.slane %v2062, 4
      %v2064 = vadd.f32 %v2062, %v2063
      %v2065 = vrot.slane %v2064, 2
      %v2066 = vadd.f32 %v2064, %v2065
      %v2067 = vrot.slane %v2066, 1
      %v2068 = vadd.f32 %v2066, %v2067
      %v2069 = vsel %vm218, %v1627, 0.0
      %v2070 = vrot.slane %v2069, 4
      %v2071 = vadd.f32 %v2069, %v2070
      %v2072 = vrot.slane %v2071, 2
      %v2073 = vadd.f32 %v2071, %v2072
      %v2074 = vrot.slane %v2073, 1
      %v2075 = vadd.f32 %v2073, %v2074
      %v2076 = vlaneseq
      %v2077 = vshrl.u32 %v2076, 7
      %v2078 = vadd.s32 %v2077, 40
      %2079 = vset.pattern.permute.xlu0 %v2078
      %2080 = vperm.xlu0 %2079, %v284
      %v2081 = vpop.permute.xlu0 %2080
      %v2082 = vlaneseq
      %v2083 = vshrl.u32 %v2082, 7
      %v2084 = vadd.s32 %v2083, 40
      %2085 = vset.pattern.permute.xlu0 %v2084
      %2086 = vperm.xlu0 %2085, %v291
      %v2087 = vpop.permute.xlu0 %2086
      %v2088 = vlaneseq
      %v2089 = vshrl.u32 %v2088, 7
      %v2090 = vadd.s32 %v2089, 40
      %2091 = vset.pattern.permute.xlu0 %v2090
      %2092 = vperm.xlu0 %2091, %v298
      %v2093 = vpop.permute.xlu0 %2092
      %v2094 = vlaneseq
      %v2095 = vshrl.u32 %v2094, 7
      %v2096 = vadd.s32 %v2095, 40
      %2097 = vset.pattern.permute.xlu0 %v2096
      %2098 = vperm.xlu0 %2097, %v305
      %v2099 = vpop.permute.xlu0 %2098
      %v2100 = vlaneseq
      %v2101 = vshrl.u32 %v2100, 7
      %v2102 = vadd.s32 %v2101, 40
      %2103 = vset.pattern.permute.xlu0 %v2102
      %2104 = vperm.xlu0 %2103, %v312
      %v2105 = vpop.permute.xlu0 %2104
      %v2106 = vlaneseq
      %v2107 = vshrl.u32 %v2106, 7
      %v2108 = vadd.s32 %v2107, 40
      %2109 = vset.pattern.permute.xlu0 %v2108
      %2110 = vperm.xlu0 %2109, %v319
      %v2111 = vpop.permute.xlu0 %2110
      %v2112 = vlaneseq
      %v2113 = vshrl.u32 %v2112, 7
      %v2114 = vadd.s32 %v2113, 40
      %2115 = vset.pattern.permute.xlu0 %v2114
      %2116 = vperm.xlu0 %2115, %v326
      %v2117 = vpop.permute.xlu0 %2116
      %v2118 = vlaneseq
      %v2119 = vshrl.u32 %v2118, 7
      %v2120 = vadd.s32 %v2119, 40
      %2121 = vset.pattern.permute.xlu0 %v2120
      %2122 = vperm.xlu0 %2121, %v333
      %v2123 = vpop.permute.xlu0 %2122
      %v2124 = vlaneseq
      %v2125 = vshrl.u32 %v2124, 7
      %v2126 = vadd.s32 %v2125, 40
      %2127 = vset.pattern.permute.xlu0 %v2126
      %2128 = vperm.xlu0 %2127, %v340
      %v2129 = vpop.permute.xlu0 %2128
      %v2130 = vlaneseq
      %v2131 = vshrl.u32 %v2130, 7
      %v2132 = vadd.s32 %v2131, 40
      %2133 = vset.pattern.permute.xlu0 %v2132
      %2134 = vperm.xlu0 %2133, %v347
      %v2135 = vpop.permute.xlu0 %2134
      %v2136 = vlaneseq
      %v2137 = vshrl.u32 %v2136, 7
      %v2138 = vadd.s32 %v2137, 40
      %2139 = vset.pattern.permute.xlu0 %v2138
      %2140 = vperm.xlu0 %2139, %v354
      %v2141 = vpop.permute.xlu0 %2140
      %v2142 = vlaneseq
      %v2143 = vshrl.u32 %v2142, 7
      %v2144 = vadd.s32 %v2143, 40
      %2145 = vset.pattern.permute.xlu0 %v2144
      %2146 = vperm.xlu0 %2145, %v361
      %v2147 = vpop.permute.xlu0 %2146
      %v2148 = vlaneseq
      %v2149 = vshrl.u32 %v2148, 7
      %v2150 = vadd.s32 %v2149, 40
      %2151 = vset.pattern.permute.xlu0 %v2150
      %2152 = vperm.xlu0 %2151, %v368
      %v2153 = vpop.permute.xlu0 %2152
      %v2154 = vlaneseq
      %v2155 = vshrl.u32 %v2154, 7
      %v2156 = vadd.s32 %v2155, 40
      %2157 = vset.pattern.permute.xlu0 %v2156
      %2158 = vperm.xlu0 %2157, %v375
      %v2159 = vpop.permute.xlu0 %2158
      %v2160 = vlaneseq
      %v2161 = vshrl.u32 %v2160, 7
      %v2162 = vadd.s32 %v2161, 40
      %2163 = vset.pattern.permute.xlu0 %v2162
      %2164 = vperm.xlu0 %2163, %v382
      %v2165 = vpop.permute.xlu0 %2164
      %v2166 = vlaneseq
      %v2167 = vshrl.u32 %v2166, 7
      %v2168 = vadd.s32 %v2167, 40
      %2169 = vset.pattern.permute.xlu0 %v2168
      %2170 = vperm.xlu0 %2169, %v389
      %v2171 = vpop.permute.xlu0 %2170
      %v2172 = vlaneseq
      %v2173 = vshrl.u32 %v2172, 7
      %v2174 = vadd.s32 %v2173, 40
      %2175 = vset.pattern.permute.xlu0 %v2174
      %2176 = vperm.xlu0 %2175, %v396
      %v2177 = vpop.permute.xlu0 %2176
      %v2178 = vlaneseq
      %v2179 = vshrl.u32 %v2178, 7
      %v2180 = vadd.s32 %v2179, 40
      %2181 = vset.pattern.permute.xlu0 %v2180
      %2182 = vperm.xlu0 %2181, %v403
      %v2183 = vpop.permute.xlu0 %2182
      %v2184 = vlaneseq
      %v2185 = vshrl.u32 %v2184, 7
      %v2186 = vadd.s32 %v2185, 40
      %2187 = vset.pattern.permute.xlu0 %v2186
      %2188 = vperm.xlu0 %2187, %v410
      %v2189 = vpop.permute.xlu0 %2188
      %v2190 = vlaneseq
      %v2191 = vshrl.u32 %v2190, 7
      %v2192 = vadd.s32 %v2191, 40
      %2193 = vset.pattern.permute.xlu0 %v2192
      %2194 = vperm.xlu0 %2193, %v417
      %v2195 = vpop.permute.xlu0 %2194
      %v2196 = vlaneseq
      %v2197 = vshrl.u32 %v2196, 7
      %v2198 = vadd.s32 %v2197, 40
      %2199 = vset.pattern.permute.xlu0 %v2198
      %2200 = vperm.xlu0 %2199, %v424
      %v2201 = vpop.permute.xlu0 %2200
      %v2202 = vlaneseq
      %v2203 = vshrl.u32 %v2202, 7
      %v2204 = vadd.s32 %v2203, 40
      %2205 = vset.pattern.permute.xlu0 %v2204
      %2206 = vperm.xlu0 %2205, %v431
      %v2207 = vpop.permute.xlu0 %2206
      %v2208 = vlaneseq
      %v2209 = vshrl.u32 %v2208, 7
      %v2210 = vadd.s32 %v2209, 40
      %2211 = vset.pattern.permute.xlu0 %v2210
      %2212 = vperm.xlu0 %2211, %v438
      %v2213 = vpop.permute.xlu0 %2212
      %v2214 = vlaneseq
      %v2215 = vshrl.u32 %v2214, 7
      %v2216 = vadd.s32 %v2215, 40
      %2217 = vset.pattern.permute.xlu0 %v2216
      %2218 = vperm.xlu0 %2217, %v445
      %v2219 = vpop.permute.xlu0 %2218
      %v2220 = vlaneseq
      %v2221 = vshrl.u32 %v2220, 7
      %v2222 = vadd.s32 %v2221, 40
      %2223 = vset.pattern.permute.xlu0 %v2222
      %2224 = vperm.xlu0 %2223, %v452
      %v2225 = vpop.permute.xlu0 %2224
      %v2226 = vlaneseq
      %v2227 = vshrl.u32 %v2226, 7
      %v2228 = vadd.s32 %v2227, 40
      %2229 = vset.pattern.permute.xlu0 %v2228
      %2230 = vperm.xlu0 %2229, %v459
      %v2231 = vpop.permute.xlu0 %2230
      %v2232 = vlaneseq
      %v2233 = vshrl.u32 %v2232, 7
      %v2234 = vadd.s32 %v2233, 40
      %2235 = vset.pattern.permute.xlu0 %v2234
      %2236 = vperm.xlu0 %2235, %v466
      %v2237 = vpop.permute.xlu0 %2236
      %v2238 = vlaneseq
      %v2239 = vshrl.u32 %v2238, 7
      %v2240 = vadd.s32 %v2239, 40
      %2241 = vset.pattern.permute.xlu0 %v2240
      %2242 = vperm.xlu0 %2241, %v473
      %v2243 = vpop.permute.xlu0 %2242
      %v2244 = vlaneseq
      %v2245 = vshrl.u32 %v2244, 7
      %v2246 = vadd.s32 %v2245, 40
      %2247 = vset.pattern.permute.xlu0 %v2246
      %2248 = vperm.xlu0 %2247, %v480
      %v2249 = vpop.permute.xlu0 %2248
      %v2250 = vlaneseq
      %v2251 = vshrl.u32 %v2250, 7
      %v2252 = vadd.s32 %v2251, 40
      %2253 = vset.pattern.permute.xlu0 %v2252
      %2254 = vperm.xlu0 %2253, %v487
      %v2255 = vpop.permute.xlu0 %2254
      %v2256 = vlaneseq
      %v2257 = vshrl.u32 %v2256, 7
      %v2258 = vadd.s32 %v2257, 40
      %2259 = vset.pattern.permute.xlu0 %v2258
      %2260 = vperm.xlu0 %2259, %v494
      %v2261 = vpop.permute.xlu0 %2260
      %v2262 = vlaneseq
      %v2263 = vshrl.u32 %v2262, 7
      %v2264 = vadd.s32 %v2263, 40
      %2265 = vset.pattern.permute.xlu0 %v2264
      %2266 = vperm.xlu0 %2265, %v501
      %v2267 = vpop.permute.xlu0 %2266
      %v2268 = vlaneseq
      %v2269 = vshrl.u32 %v2268, 7
      %v2270 = vadd.s32 %v2269, 40
      %2271 = vset.pattern.permute.xlu0 %v2270
      %2272 = vperm.xlu0 %2271, %v508
      %v2273 = vpop.permute.xlu0 %2272
      %v2274 = vlaneseq
      %v2275 = vshrl.u32 %v2274, 7
      %v2276 = vadd.s32 %v2275, 40
      %2277 = vset.pattern.permute.xlu0 %v2276
      %2278 = vperm.xlu0 %2277, %v515
      %v2279 = vpop.permute.xlu0 %2278
      %v2280 = vlaneseq
      %v2281 = vshrl.u32 %v2280, 7
      %v2282 = vadd.s32 %v2281, 40
      %2283 = vset.pattern.permute.xlu0 %v2282
      %2284 = vperm.xlu0 %2283, %v522
      %v2285 = vpop.permute.xlu0 %2284
      %v2286 = vlaneseq
      %v2287 = vshrl.u32 %v2286, 7
      %v2288 = vadd.s32 %v2287, 40
      %2289 = vset.pattern.permute.xlu0 %v2288
      %2290 = vperm.xlu0 %2289, %v529
      %v2291 = vpop.permute.xlu0 %2290
      %v2292 = vlaneseq
      %v2293 = vshrl.u32 %v2292, 7
      %v2294 = vadd.s32 %v2293, 40
      %2295 = vset.pattern.permute.xlu0 %v2294
      %2296 = vperm.xlu0 %2295, %v536
      %v2297 = vpop.permute.xlu0 %2296
      %v2298 = vlaneseq
      %v2299 = vshrl.u32 %v2298, 7
      %v2300 = vadd.s32 %v2299, 40
      %2301 = vset.pattern.permute.xlu0 %v2300
      %2302 = vperm.xlu0 %2301, %v543
      %v2303 = vpop.permute.xlu0 %2302
      %v2304 = vlaneseq
      %v2305 = vshrl.u32 %v2304, 7
      %v2306 = vadd.s32 %v2305, 40
      %2307 = vset.pattern.permute.xlu0 %v2306
      %2308 = vperm.xlu0 %2307, %v550
      %v2309 = vpop.permute.xlu0 %2308
      %v2310 = vlaneseq
      %v2311 = vshrl.u32 %v2310, 7
      %v2312 = vadd.s32 %v2311, 40
      %2313 = vset.pattern.permute.xlu0 %v2312
      %2314 = vperm.xlu0 %2313, %v557
      %v2315 = vpop.permute.xlu0 %2314
      %v2316 = vlaneseq
      %v2317 = vshrl.u32 %v2316, 7
      %v2318 = vadd.s32 %v2317, 40
      %2319 = vset.pattern.permute.xlu0 %v2318
      %2320 = vperm.xlu0 %2319, %v564
      %v2321 = vpop.permute.xlu0 %2320
      %v2322 = vlaneseq
      %v2323 = vshrl.u32 %v2322, 7
      %v2324 = vadd.s32 %v2323, 40
      %2325 = vset.pattern.permute.xlu0 %v2324
      %2326 = vperm.xlu0 %2325, %v571
      %v2327 = vpop.permute.xlu0 %2326
      %v2328 = vlaneseq
      %v2329 = vshrl.u32 %v2328, 7
      %v2330 = vadd.s32 %v2329, 40
      %2331 = vset.pattern.permute.xlu0 %v2330
      %2332 = vperm.xlu0 %2331, %v578
      %v2333 = vpop.permute.xlu0 %2332
      %v2334 = vlaneseq
      %v2335 = vshrl.u32 %v2334, 7
      %v2336 = vadd.s32 %v2335, 40
      %2337 = vset.pattern.permute.xlu0 %v2336
      %2338 = vperm.xlu0 %2337, %v585
      %v2339 = vpop.permute.xlu0 %2338
      %v2340 = vlaneseq
      %v2341 = vshrl.u32 %v2340, 7
      %v2342 = vadd.s32 %v2341, 40
      %2343 = vset.pattern.permute.xlu0 %v2342
      %2344 = vperm.xlu0 %2343, %v592
      %v2345 = vpop.permute.xlu0 %2344
      %v2346 = vlaneseq
      %v2347 = vshrl.u32 %v2346, 7
      %v2348 = vadd.s32 %v2347, 40
      %2349 = vset.pattern.permute.xlu0 %v2348
      %2350 = vperm.xlu0 %2349, %v599
      %v2351 = vpop.permute.xlu0 %2350
      %v2352 = vlaneseq
      %v2353 = vshrl.u32 %v2352, 7
      %v2354 = vadd.s32 %v2353, 40
      %2355 = vset.pattern.permute.xlu0 %v2354
      %2356 = vperm.xlu0 %2355, %v606
      %v2357 = vpop.permute.xlu0 %2356
      %v2358 = vlaneseq
      %v2359 = vshrl.u32 %v2358, 7
      %v2360 = vadd.s32 %v2359, 40
      %2361 = vset.pattern.permute.xlu0 %v2360
      %2362 = vperm.xlu0 %2361, %v613
      %v2363 = vpop.permute.xlu0 %2362
      %v2364 = vlaneseq
      %v2365 = vshrl.u32 %v2364, 7
      %v2366 = vadd.s32 %v2365, 40
      %2367 = vset.pattern.permute.xlu0 %v2366
      %2368 = vperm.xlu0 %2367, %v620
      %v2369 = vpop.permute.xlu0 %2368
      %v2370 = vlaneseq
      %v2371 = vshrl.u32 %v2370, 7
      %v2372 = vadd.s32 %v2371, 40
      %2373 = vset.pattern.permute.xlu0 %v2372
      %2374 = vperm.xlu0 %2373, %v627
      %v2375 = vpop.permute.xlu0 %2374
      %v2376 = vlaneseq
      %v2377 = vshrl.u32 %v2376, 7
      %v2378 = vadd.s32 %v2377, 40
      %2379 = vset.pattern.permute.xlu0 %v2378
      %2380 = vperm.xlu0 %2379, %v634
      %v2381 = vpop.permute.xlu0 %2380
      %v2382 = vlaneseq
      %v2383 = vshrl.u32 %v2382, 7
      %v2384 = vadd.s32 %v2383, 40
      %2385 = vset.pattern.permute.xlu0 %v2384
      %2386 = vperm.xlu0 %2385, %v641
      %v2387 = vpop.permute.xlu0 %2386
      %v2388 = vlaneseq
      %v2389 = vshrl.u32 %v2388, 7
      %v2390 = vadd.s32 %v2389, 40
      %2391 = vset.pattern.permute.xlu0 %v2390
      %2392 = vperm.xlu0 %2391, %v648
      %v2393 = vpop.permute.xlu0 %2392
      %v2394 = vlaneseq
      %v2395 = vshrl.u32 %v2394, 7
      %v2396 = vadd.s32 %v2395, 40
      %2397 = vset.pattern.permute.xlu0 %v2396
      %2398 = vperm.xlu0 %2397, %v655
      %v2399 = vpop.permute.xlu0 %2398
      %v2400 = vlaneseq
      %v2401 = vshrl.u32 %v2400, 7
      %v2402 = vadd.s32 %v2401, 40
      %2403 = vset.pattern.permute.xlu0 %v2402
      %2404 = vperm.xlu0 %2403, %v662
      %v2405 = vpop.permute.xlu0 %2404
      %v2406 = vlaneseq
      %v2407 = vshrl.u32 %v2406, 7
      %v2408 = vadd.s32 %v2407, 40
      %2409 = vset.pattern.permute.xlu0 %v2408
      %2410 = vperm.xlu0 %2409, %v669
      %v2411 = vpop.permute.xlu0 %2410
      %v2412 = vlaneseq
      %v2413 = vshrl.u32 %v2412, 7
      %v2414 = vadd.s32 %v2413, 40
      %2415 = vset.pattern.permute.xlu0 %v2414
      %2416 = vperm.xlu0 %2415, %v676
      %v2417 = vpop.permute.xlu0 %2416
      %v2418 = vlaneseq
      %v2419 = vshrl.u32 %v2418, 7
      %v2420 = vadd.s32 %v2419, 40
      %2421 = vset.pattern.permute.xlu0 %v2420
      %2422 = vperm.xlu0 %2421, %v683
      %v2423 = vpop.permute.xlu0 %2422
      %v2424 = vlaneseq
      %v2425 = vshrl.u32 %v2424, 7
      %v2426 = vadd.s32 %v2425, 40
      %2427 = vset.pattern.permute.xlu0 %v2426
      %2428 = vperm.xlu0 %2427, %v690
      %v2429 = vpop.permute.xlu0 %2428
      %v2430 = vlaneseq
      %v2431 = vshrl.u32 %v2430, 7
      %v2432 = vadd.s32 %v2431, 40
      %2433 = vset.pattern.permute.xlu0 %v2432
      %2434 = vperm.xlu0 %2433, %v697
      %v2435 = vpop.permute.xlu0 %2434
      %v2436 = vlaneseq
      %v2437 = vshrl.u32 %v2436, 7
      %v2438 = vadd.s32 %v2437, 40
      %2439 = vset.pattern.permute.xlu0 %v2438
      %2440 = vperm.xlu0 %2439, %v704
      %v2441 = vpop.permute.xlu0 %2440
      %v2442 = vlaneseq
      %v2443 = vshrl.u32 %v2442, 7
      %v2444 = vadd.s32 %v2443, 40
      %2445 = vset.pattern.permute.xlu0 %v2444
      %2446 = vperm.xlu0 %2445, %v711
      %v2447 = vpop.permute.xlu0 %2446
      %v2448 = vlaneseq
      %v2449 = vshrl.u32 %v2448, 7
      %v2450 = vadd.s32 %v2449, 40
      %2451 = vset.pattern.permute.xlu0 %v2450
      %2452 = vperm.xlu0 %2451, %v718
      %v2453 = vpop.permute.xlu0 %2452
      %v2454 = vlaneseq
      %v2455 = vshrl.u32 %v2454, 7
      %v2456 = vadd.s32 %v2455, 40
      %2457 = vset.pattern.permute.xlu0 %v2456
      %2458 = vperm.xlu0 %2457, %v725
      %v2459 = vpop.permute.xlu0 %2458
      %v2460 = vmul.f32 %v1501, %v2081
      %v2461 = vmul.f32 %v1503, %v2087
      %v2462 = vmul.f32 %v1505, %v2093
      %v2463 = vmul.f32 %v1507, %v2099
      %v2464 = vmul.f32 %v1509, %v2105
      %v2465 = vmul.f32 %v1511, %v2111
      %v2466 = vmul.f32 %v1513, %v2117
      %v2467 = vmul.f32 %v1515, %v2123
      %v2468 = vmul.f32 %v1517, %v2129
      %v2469 = vmul.f32 %v1519, %v2135
      %v2470 = vmul.f32 %v1521, %v2141
      %v2471 = vmul.f32 %v1523, %v2147
      %v2472 = vmul.f32 %v1525, %v2153
      %v2473 = vmul.f32 %v1527, %v2159
      %v2474 = vmul.f32 %v1529, %v2165
      %v2475 = vmul.f32 %v1531, %v2171
      %v2476 = vmul.f32 %v1533, %v2177
      %v2477 = vmul.f32 %v1535, %v2183
      %v2478 = vmul.f32 %v1537, %v2189
      %v2479 = vmul.f32 %v1539, %v2195
      %v2480 = vmul.f32 %v1541, %v2201
      %v2481 = vmul.f32 %v1543, %v2207
      %v2482 = vmul.f32 %v1545, %v2213
      %v2483 = vmul.f32 %v1547, %v2219
      %v2484 = vmul.f32 %v1549, %v2225
      %v2485 = vmul.f32 %v1551, %v2231
      %v2486 = vmul.f32 %v1553, %v2237
      %v2487 = vmul.f32 %v1555, %v2243
      %v2488 = vmul.f32 %v1557, %v2249
      %v2489 = vmul.f32 %v1559, %v2255
      %v2490 = vmul.f32 %v1561, %v2261
      %v2491 = vmul.f32 %v1563, %v2267
      %v2492 = vmul.f32 %v1565, %v2273
      %v2493 = vmul.f32 %v1567, %v2279
      %v2494 = vmul.f32 %v1569, %v2285
      %v2495 = vmul.f32 %v1571, %v2291
      %v2496 = vmul.f32 %v1573, %v2297
      %v2497 = vmul.f32 %v1575, %v2303
      %v2498 = vmul.f32 %v1577, %v2309
      %v2499 = vmul.f32 %v1579, %v2315
      %v2500 = vmul.f32 %v1581, %v2321
      %v2501 = vmul.f32 %v1583, %v2327
      %v2502 = vmul.f32 %v1585, %v2333
      %v2503 = vmul.f32 %v1587, %v2339
      %v2504 = vmul.f32 %v1589, %v2345
      %v2505 = vmul.f32 %v1591, %v2351
      %v2506 = vmul.f32 %v1593, %v2357
      %v2507 = vmul.f32 %v1595, %v2363
      %v2508 = vmul.f32 %v1597, %v2369
      %v2509 = vmul.f32 %v1599, %v2375
      %v2510 = vmul.f32 %v1601, %v2381
      %v2511 = vmul.f32 %v1603, %v2387
      %v2512 = vmul.f32 %v1605, %v2393
      %v2513 = vmul.f32 %v1607, %v2399
      %v2514 = vmul.f32 %v1609, %v2405
      %v2515 = vmul.f32 %v1611, %v2411
      %v2516 = vmul.f32 %v1613, %v2417
      %v2517 = vmul.f32 %v1615, %v2423
      %v2518 = vmul.f32 %v1617, %v2429
      %v2519 = vmul.f32 %v1619, %v2435
      %v2520 = vmul.f32 %v1621, %v2441
      %v2521 = vmul.f32 %v1623, %v2447
      %v2522 = vmul.f32 %v1625, %v2453
      %v2523 = vmul.f32 %v1627, %v2459
      %v2524 = vsel %vm218, %v2460, 0.0
      %v2525 = vrot.slane %v2524, 4
      %v2526 = vadd.f32 %v2524, %v2525
      %v2527 = vrot.slane %v2526, 2
      %v2528 = vadd.f32 %v2526, %v2527
      %v2529 = vrot.slane %v2528, 1
      %v2530 = vadd.f32 %v2528, %v2529
      %v2531 = vsel %vm218, %v2461, 0.0
      %v2532 = vrot.slane %v2531, 4
      %v2533 = vadd.f32 %v2531, %v2532
      %v2534 = vrot.slane %v2533, 2
      %v2535 = vadd.f32 %v2533, %v2534
      %v2536 = vrot.slane %v2535, 1
      %v2537 = vadd.f32 %v2535, %v2536
      %v2538 = vsel %vm218, %v2462, 0.0
      %v2539 = vrot.slane %v2538, 4
      %v2540 = vadd.f32 %v2538, %v2539
      %v2541 = vrot.slane %v2540, 2
      %v2542 = vadd.f32 %v2540, %v2541
      %v2543 = vrot.slane %v2542, 1
      %v2544 = vadd.f32 %v2542, %v2543
      %v2545 = vsel %vm218, %v2463, 0.0
      %v2546 = vrot.slane %v2545, 4
      %v2547 = vadd.f32 %v2545, %v2546
      %v2548 = vrot.slane %v2547, 2
      %v2549 = vadd.f32 %v2547, %v2548
      %v2550 = vrot.slane %v2549, 1
      %v2551 = vadd.f32 %v2549, %v2550
      %v2552 = vsel %vm218, %v2464, 0.0
      %v2553 = vrot.slane %v2552, 4
      %v2554 = vadd.f32 %v2552, %v2553
      %v2555 = vrot.slane %v2554, 2
      %v2556 = vadd.f32 %v2554, %v2555
      %v2557 = vrot.slane %v2556, 1
      %v2558 = vadd.f32 %v2556, %v2557
      %v2559 = vsel %vm218, %v2465, 0.0
      %v2560 = vrot.slane %v2559, 4
      %v2561 = vadd.f32 %v2559, %v2560
      %v2562 = vrot.slane %v2561, 2
      %v2563 = vadd.f32 %v2561, %v2562
      %v2564 = vrot.slane %v2563, 1
      %v2565 = vadd.f32 %v2563, %v2564
      %v2566 = vsel %vm218, %v2466, 0.0
      %v2567 = vrot.slane %v2566, 4
      %v2568 = vadd.f32 %v2566, %v2567
      %v2569 = vrot.slane %v2568, 2
      %v2570 = vadd.f32 %v2568, %v2569
      %v2571 = vrot.slane %v2570, 1
      %v2572 = vadd.f32 %v2570, %v2571
      %v2573 = vsel %vm218, %v2467, 0.0
      %v2574 = vrot.slane %v2573, 4
      %v2575 = vadd.f32 %v2573, %v2574
      %v2576 = vrot.slane %v2575, 2
      %v2577 = vadd.f32 %v2575, %v2576
      %v2578 = vrot.slane %v2577, 1
      %v2579 = vadd.f32 %v2577, %v2578
      %v2580 = vsel %vm218, %v2468, 0.0
      %v2581 = vrot.slane %v2580, 4
      %v2582 = vadd.f32 %v2580, %v2581
      %v2583 = vrot.slane %v2582, 2
      %v2584 = vadd.f32 %v2582, %v2583
      %v2585 = vrot.slane %v2584, 1
      %v2586 = vadd.f32 %v2584, %v2585
      %v2587 = vsel %vm218, %v2469, 0.0
      %v2588 = vrot.slane %v2587, 4
      %v2589 = vadd.f32 %v2587, %v2588
      %v2590 = vrot.slane %v2589, 2
      %v2591 = vadd.f32 %v2589, %v2590
      %v2592 = vrot.slane %v2591, 1
      %v2593 = vadd.f32 %v2591, %v2592
      %v2594 = vsel %vm218, %v2470, 0.0
      %v2595 = vrot.slane %v2594, 4
      %v2596 = vadd.f32 %v2594, %v2595
      %v2597 = vrot.slane %v2596, 2
      %v2598 = vadd.f32 %v2596, %v2597
      %v2599 = vrot.slane %v2598, 1
      %v2600 = vadd.f32 %v2598, %v2599
      %v2601 = vsel %vm218, %v2471, 0.0
      %v2602 = vrot.slane %v2601, 4
      %v2603 = vadd.f32 %v2601, %v2602
      %v2604 = vrot.slane %v2603, 2
      %v2605 = vadd.f32 %v2603, %v2604
      %v2606 = vrot.slane %v2605, 1
      %v2607 = vadd.f32 %v2605, %v2606
      %v2608 = vsel %vm218, %v2472, 0.0
      %v2609 = vrot.slane %v2608, 4
      %v2610 = vadd.f32 %v2608, %v2609
      %v2611 = vrot.slane %v2610, 2
      %v2612 = vadd.f32 %v2610, %v2611
      %v2613 = vrot.slane %v2612, 1
      %v2614 = vadd.f32 %v2612, %v2613
      %v2615 = vsel %vm218, %v2473, 0.0
      %v2616 = vrot.slane %v2615, 4
      %v2617 = vadd.f32 %v2615, %v2616
      %v2618 = vrot.slane %v2617, 2
      %v2619 = vadd.f32 %v2617, %v2618
      %v2620 = vrot.slane %v2619, 1
      %v2621 = vadd.f32 %v2619, %v2620
      %v2622 = vsel %vm218, %v2474, 0.0
      %v2623 = vrot.slane %v2622, 4
      %v2624 = vadd.f32 %v2622, %v2623
      %v2625 = vrot.slane %v2624, 2
      %v2626 = vadd.f32 %v2624, %v2625
      %v2627 = vrot.slane %v2626, 1
      %v2628 = vadd.f32 %v2626, %v2627
      %v2629 = vsel %vm218, %v2475, 0.0
      %v2630 = vrot.slane %v2629, 4
      %v2631 = vadd.f32 %v2629, %v2630
      %v2632 = vrot.slane %v2631, 2
      %v2633 = vadd.f32 %v2631, %v2632
      %v2634 = vrot.slane %v2633, 1
      %v2635 = vadd.f32 %v2633, %v2634
      %v2636 = vsel %vm218, %v2476, 0.0
      %v2637 = vrot.slane %v2636, 4
      %v2638 = vadd.f32 %v2636, %v2637
      %v2639 = vrot.slane %v2638, 2
      %v2640 = vadd.f32 %v2638, %v2639
      %v2641 = vrot.slane %v2640, 1
      %v2642 = vadd.f32 %v2640, %v2641
      %v2643 = vsel %vm218, %v2477, 0.0
      %v2644 = vrot.slane %v2643, 4
      %v2645 = vadd.f32 %v2643, %v2644
      %v2646 = vrot.slane %v2645, 2
      %v2647 = vadd.f32 %v2645, %v2646
      %v2648 = vrot.slane %v2647, 1
      %v2649 = vadd.f32 %v2647, %v2648
      %v2650 = vsel %vm218, %v2478, 0.0
      %v2651 = vrot.slane %v2650, 4
      %v2652 = vadd.f32 %v2650, %v2651
      %v2653 = vrot.slane %v2652, 2
      %v2654 = vadd.f32 %v2652, %v2653
      %v2655 = vrot.slane %v2654, 1
      %v2656 = vadd.f32 %v2654, %v2655
      %v2657 = vsel %vm218, %v2479, 0.0
      %v2658 = vrot.slane %v2657, 4
      %v2659 = vadd.f32 %v2657, %v2658
      %v2660 = vrot.slane %v2659, 2
      %v2661 = vadd.f32 %v2659, %v2660
      %v2662 = vrot.slane %v2661, 1
      %v2663 = vadd.f32 %v2661, %v2662
      %v2664 = vsel %vm218, %v2480, 0.0
      %v2665 = vrot.slane %v2664, 4
      %v2666 = vadd.f32 %v2664, %v2665
      %v2667 = vrot.slane %v2666, 2
      %v2668 = vadd.f32 %v2666, %v2667
      %v2669 = vrot.slane %v2668, 1
      %v2670 = vadd.f32 %v2668, %v2669
      %v2671 = vsel %vm218, %v2481, 0.0
      %v2672 = vrot.slane %v2671, 4
      %v2673 = vadd.f32 %v2671, %v2672
      %v2674 = vrot.slane %v2673, 2
      %v2675 = vadd.f32 %v2673, %v2674
      %v2676 = vrot.slane %v2675, 1
      %v2677 = vadd.f32 %v2675, %v2676
      %v2678 = vsel %vm218, %v2482, 0.0
      %v2679 = vrot.slane %v2678, 4
      %v2680 = vadd.f32 %v2678, %v2679
      %v2681 = vrot.slane %v2680, 2
      %v2682 = vadd.f32 %v2680, %v2681
      %v2683 = vrot.slane %v2682, 1
      %v2684 = vadd.f32 %v2682, %v2683
      %v2685 = vsel %vm218, %v2483, 0.0
      %v2686 = vrot.slane %v2685, 4
      %v2687 = vadd.f32 %v2685, %v2686
      %v2688 = vrot.slane %v2687, 2
      %v2689 = vadd.f32 %v2687, %v2688
      %v2690 = vrot.slane %v2689, 1
      %v2691 = vadd.f32 %v2689, %v2690
      %v2692 = vsel %vm218, %v2484, 0.0
      %v2693 = vrot.slane %v2692, 4
      %v2694 = vadd.f32 %v2692, %v2693
      %v2695 = vrot.slane %v2694, 2
      %v2696 = vadd.f32 %v2694, %v2695
      %v2697 = vrot.slane %v2696, 1
      %v2698 = vadd.f32 %v2696, %v2697
      %v2699 = vsel %vm218, %v2485, 0.0
      %v2700 = vrot.slane %v2699, 4
      %v2701 = vadd.f32 %v2699, %v2700
      %v2702 = vrot.slane %v2701, 2
      %v2703 = vadd.f32 %v2701, %v2702
      %v2704 = vrot.slane %v2703, 1
      %v2705 = vadd.f32 %v2703, %v2704
      %v2706 = vsel %vm218, %v2486, 0.0
      %v2707 = vrot.slane %v2706, 4
      %v2708 = vadd.f32 %v2706, %v2707
      %v2709 = vrot.slane %v2708, 2
      %v2710 = vadd.f32 %v2708, %v2709
      %v2711 = vrot.slane %v2710, 1
      %v2712 = vadd.f32 %v2710, %v2711
      %v2713 = vsel %vm218, %v2487, 0.0
      %v2714 = vrot.slane %v2713, 4
      %v2715 = vadd.f32 %v2713, %v2714
      %v2716 = vrot.slane %v2715, 2
      %v2717 = vadd.f32 %v2715, %v2716
      %v2718 = vrot.slane %v2717, 1
      %v2719 = vadd.f32 %v2717, %v2718
      %v2720 = vsel %vm218, %v2488, 0.0
      %v2721 = vrot.slane %v2720, 4
      %v2722 = vadd.f32 %v2720, %v2721
      %v2723 = vrot.slane %v2722, 2
      %v2724 = vadd.f32 %v2722, %v2723
      %v2725 = vrot.slane %v2724, 1
      %v2726 = vadd.f32 %v2724, %v2725
      %v2727 = vsel %vm218, %v2489, 0.0
      %v2728 = vrot.slane %v2727, 4
      %v2729 = vadd.f32 %v2727, %v2728
      %v2730 = vrot.slane %v2729, 2
      %v2731 = vadd.f32 %v2729, %v2730
      %v2732 = vrot.slane %v2731, 1
      %v2733 = vadd.f32 %v2731, %v2732
      %v2734 = vsel %vm218, %v2490, 0.0
      %v2735 = vrot.slane %v2734, 4
      %v2736 = vadd.f32 %v2734, %v2735
      %v2737 = vrot.slane %v2736, 2
      %v2738 = vadd.f32 %v2736, %v2737
      %v2739 = vrot.slane %v2738, 1
      %v2740 = vadd.f32 %v2738, %v2739
      %v2741 = vsel %vm218, %v2491, 0.0
      %v2742 = vrot.slane %v2741, 4
      %v2743 = vadd.f32 %v2741, %v2742
      %v2744 = vrot.slane %v2743, 2
      %v2745 = vadd.f32 %v2743, %v2744
      %v2746 = vrot.slane %v2745, 1
      %v2747 = vadd.f32 %v2745, %v2746
      %v2748 = vsel %vm218, %v2492, 0.0
      %v2749 = vrot.slane %v2748, 4
      %v2750 = vadd.f32 %v2748, %v2749
      %v2751 = vrot.slane %v2750, 2
      %v2752 = vadd.f32 %v2750, %v2751
      %v2753 = vrot.slane %v2752, 1
      %v2754 = vadd.f32 %v2752, %v2753
      %v2755 = vsel %vm218, %v2493, 0.0
      %v2756 = vrot.slane %v2755, 4
      %v2757 = vadd.f32 %v2755, %v2756
      %v2758 = vrot.slane %v2757, 2
      %v2759 = vadd.f32 %v2757, %v2758
      %v2760 = vrot.slane %v2759, 1
      %v2761 = vadd.f32 %v2759, %v2760
      %v2762 = vsel %vm218, %v2494, 0.0
      %v2763 = vrot.slane %v2762, 4
      %v2764 = vadd.f32 %v2762, %v2763
      %v2765 = vrot.slane %v2764, 2
      %v2766 = vadd.f32 %v2764, %v2765
      %v2767 = vrot.slane %v2766, 1
      %v2768 = vadd.f32 %v2766, %v2767
      %v2769 = vsel %vm218, %v2495, 0.0
      %v2770 = vrot.slane %v2769, 4
      %v2771 = vadd.f32 %v2769, %v2770
      %v2772 = vrot.slane %v2771, 2
      %v2773 = vadd.f32 %v2771, %v2772
      %v2774 = vrot.slane %v2773, 1
      %v2775 = vadd.f32 %v2773, %v2774
      %v2776 = vsel %vm218, %v2496, 0.0
      %v2777 = vrot.slane %v2776, 4
      %v2778 = vadd.f32 %v2776, %v2777
      %v2779 = vrot.slane %v2778, 2
      %v2780 = vadd.f32 %v2778, %v2779
      %v2781 = vrot.slane %v2780, 1
      %v2782 = vadd.f32 %v2780, %v2781
      %v2783 = vsel %vm218, %v2497, 0.0
      %v2784 = vrot.slane %v2783, 4
      %v2785 = vadd.f32 %v2783, %v2784
      %v2786 = vrot.slane %v2785, 2
      %v2787 = vadd.f32 %v2785, %v2786
      %v2788 = vrot.slane %v2787, 1
      %v2789 = vadd.f32 %v2787, %v2788
      %v2790 = vsel %vm218, %v2498, 0.0
      %v2791 = vrot.slane %v2790, 4
      %v2792 = vadd.f32 %v2790, %v2791
      %v2793 = vrot.slane %v2792, 2
      %v2794 = vadd.f32 %v2792, %v2793
      %v2795 = vrot.slane %v2794, 1
      %v2796 = vadd.f32 %v2794, %v2795
      %v2797 = vsel %vm218, %v2499, 0.0
      %v2798 = vrot.slane %v2797, 4
      %v2799 = vadd.f32 %v2797, %v2798
      %v2800 = vrot.slane %v2799, 2
      %v2801 = vadd.f32 %v2799, %v2800
      %v2802 = vrot.slane %v2801, 1
      %v2803 = vadd.f32 %v2801, %v2802
      %v2804 = vsel %vm218, %v2500, 0.0
      %v2805 = vrot.slane %v2804, 4
      %v2806 = vadd.f32 %v2804, %v2805
      %v2807 = vrot.slane %v2806, 2
      %v2808 = vadd.f32 %v2806, %v2807
      %v2809 = vrot.slane %v2808, 1
      %v2810 = vadd.f32 %v2808, %v2809
      %v2811 = vsel %vm218, %v2501, 0.0
      %v2812 = vrot.slane %v2811, 4
      %v2813 = vadd.f32 %v2811, %v2812
      %v2814 = vrot.slane %v2813, 2
      %v2815 = vadd.f32 %v2813, %v2814
      %v2816 = vrot.slane %v2815, 1
      %v2817 = vadd.f32 %v2815, %v2816
      %v2818 = vsel %vm218, %v2502, 0.0
      %v2819 = vrot.slane %v2818, 4
      %v2820 = vadd.f32 %v2818, %v2819
      %v2821 = vrot.slane %v2820, 2
      %v2822 = vadd.f32 %v2820, %v2821
      %v2823 = vrot.slane %v2822, 1
      %v2824 = vadd.f32 %v2822, %v2823
      %v2825 = vsel %vm218, %v2503, 0.0
      %v2826 = vrot.slane %v2825, 4
      %v2827 = vadd.f32 %v2825, %v2826
      %v2828 = vrot.slane %v2827, 2
      %v2829 = vadd.f32 %v2827, %v2828
      %v2830 = vrot.slane %v2829, 1
      %v2831 = vadd.f32 %v2829, %v2830
      %v2832 = vsel %vm218, %v2504, 0.0
      %v2833 = vrot.slane %v2832, 4
      %v2834 = vadd.f32 %v2832, %v2833
      %v2835 = vrot.slane %v2834, 2
      %v2836 = vadd.f32 %v2834, %v2835
      %v2837 = vrot.slane %v2836, 1
      %v2838 = vadd.f32 %v2836, %v2837
      %v2839 = vsel %vm218, %v2505, 0.0
      %v2840 = vrot.slane %v2839, 4
      %v2841 = vadd.f32 %v2839, %v2840
      %v2842 = vrot.slane %v2841, 2
      %v2843 = vadd.f32 %v2841, %v2842
      %v2844 = vrot.slane %v2843, 1
      %v2845 = vadd.f32 %v2843, %v2844
      %v2846 = vsel %vm218, %v2506, 0.0
      %v2847 = vrot.slane %v2846, 4
      %v2848 = vadd.f32 %v2846, %v2847
      %v2849 = vrot.slane %v2848, 2
      %v2850 = vadd.f32 %v2848, %v2849
      %v2851 = vrot.slane %v2850, 1
      %v2852 = vadd.f32 %v2850, %v2851
      %v2853 = vsel %vm218, %v2507, 0.0
      %v2854 = vrot.slane %v2853, 4
      %v2855 = vadd.f32 %v2853, %v2854
      %v2856 = vrot.slane %v2855, 2
      %v2857 = vadd.f32 %v2855, %v2856
      %v2858 = vrot.slane %v2857, 1
      %v2859 = vadd.f32 %v2857, %v2858
      %v2860 = vsel %vm218, %v2508, 0.0
      %v2861 = vrot.slane %v2860, 4
      %v2862 = vadd.f32 %v2860, %v2861
      %v2863 = vrot.slane %v2862, 2
      %v2864 = vadd.f32 %v2862, %v2863
      %v2865 = vrot.slane %v2864, 1
      %v2866 = vadd.f32 %v2864, %v2865
      %v2867 = vsel %vm218, %v2509, 0.0
      %v2868 = vrot.slane %v2867, 4
      %v2869 = vadd.f32 %v2867, %v2868
      %v2870 = vrot.slane %v2869, 2
      %v2871 = vadd.f32 %v2869, %v2870
      %v2872 = vrot.slane %v2871, 1
      %v2873 = vadd.f32 %v2871, %v2872
      %v2874 = vsel %vm218, %v2510, 0.0
      %v2875 = vrot.slane %v2874, 4
      %v2876 = vadd.f32 %v2874, %v2875
      %v2877 = vrot.slane %v2876, 2
      %v2878 = vadd.f32 %v2876, %v2877
      %v2879 = vrot.slane %v2878, 1
      %v2880 = vadd.f32 %v2878, %v2879
      %v2881 = vsel %vm218, %v2511, 0.0
      %v2882 = vrot.slane %v2881, 4
      %v2883 = vadd.f32 %v2881, %v2882
      %v2884 = vrot.slane %v2883, 2
      %v2885 = vadd.f32 %v2883, %v2884
      %v2886 = vrot.slane %v2885, 1
      %v2887 = vadd.f32 %v2885, %v2886
      %v2888 = vsel %vm218, %v2512, 0.0
      %v2889 = vrot.slane %v2888, 4
      %v2890 = vadd.f32 %v2888, %v2889
      %v2891 = vrot.slane %v2890, 2
      %v2892 = vadd.f32 %v2890, %v2891
      %v2893 = vrot.slane %v2892, 1
      %v2894 = vadd.f32 %v2892, %v2893
      %v2895 = vsel %vm218, %v2513, 0.0
      %v2896 = vrot.slane %v2895, 4
      %v2897 = vadd.f32 %v2895, %v2896
      %v2898 = vrot.slane %v2897, 2
      %v2899 = vadd.f32 %v2897, %v2898
      %v2900 = vrot.slane %v2899, 1
      %v2901 = vadd.f32 %v2899, %v2900
      %v2902 = vsel %vm218, %v2514, 0.0
      %v2903 = vrot.slane %v2902, 4
      %v2904 = vadd.f32 %v2902, %v2903
      %v2905 = vrot.slane %v2904, 2
      %v2906 = vadd.f32 %v2904, %v2905
      %v2907 = vrot.slane %v2906, 1
      %v2908 = vadd.f32 %v2906, %v2907
      %v2909 = vsel %vm218, %v2515, 0.0
      %v2910 = vrot.slane %v2909, 4
      %v2911 = vadd.f32 %v2909, %v2910
      %v2912 = vrot.slane %v2911, 2
      %v2913 = vadd.f32 %v2911, %v2912
      %v2914 = vrot.slane %v2913, 1
      %v2915 = vadd.f32 %v2913, %v2914
      %v2916 = vsel %vm218, %v2516, 0.0
      %v2917 = vrot.slane %v2916, 4
      %v2918 = vadd.f32 %v2916, %v2917
      %v2919 = vrot.slane %v2918, 2
      %v2920 = vadd.f32 %v2918, %v2919
      %v2921 = vrot.slane %v2920, 1
      %v2922 = vadd.f32 %v2920, %v2921
      %v2923 = vsel %vm218, %v2517, 0.0
      %v2924 = vrot.slane %v2923, 4
      %v2925 = vadd.f32 %v2923, %v2924
      %v2926 = vrot.slane %v2925, 2
      %v2927 = vadd.f32 %v2925, %v2926
      %v2928 = vrot.slane %v2927, 1
      %v2929 = vadd.f32 %v2927, %v2928
      %v2930 = vsel %vm218, %v2518, 0.0
      %v2931 = vrot.slane %v2930, 4
      %v2932 = vadd.f32 %v2930, %v2931
      %v2933 = vrot.slane %v2932, 2
      %v2934 = vadd.f32 %v2932, %v2933
      %v2935 = vrot.slane %v2934, 1
      %v2936 = vadd.f32 %v2934, %v2935
      %v2937 = vsel %vm218, %v2519, 0.0
      %v2938 = vrot.slane %v2937, 4
      %v2939 = vadd.f32 %v2937, %v2938
      %v2940 = vrot.slane %v2939, 2
      %v2941 = vadd.f32 %v2939, %v2940
      %v2942 = vrot.slane %v2941, 1
      %v2943 = vadd.f32 %v2941, %v2942
      %v2944 = vsel %vm218, %v2520, 0.0
      %v2945 = vrot.slane %v2944, 4
      %v2946 = vadd.f32 %v2944, %v2945
      %v2947 = vrot.slane %v2946, 2
      %v2948 = vadd.f32 %v2946, %v2947
      %v2949 = vrot.slane %v2948, 1
      %v2950 = vadd.f32 %v2948, %v2949
      %v2951 = vsel %vm218, %v2521, 0.0
      %v2952 = vrot.slane %v2951, 4
      %v2953 = vadd.f32 %v2951, %v2952
      %v2954 = vrot.slane %v2953, 2
      %v2955 = vadd.f32 %v2953, %v2954
      %v2956 = vrot.slane %v2955, 1
      %v2957 = vadd.f32 %v2955, %v2956
      %v2958 = vsel %vm218, %v2522, 0.0
      %v2959 = vrot.slane %v2958, 4
      %v2960 = vadd.f32 %v2958, %v2959
      %v2961 = vrot.slane %v2960, 2
      %v2962 = vadd.f32 %v2960, %v2961
      %v2963 = vrot.slane %v2962, 1
      %v2964 = vadd.f32 %v2962, %v2963
      %v2965 = vsel %vm218, %v2523, 0.0
      %v2966 = vrot.slane %v2965, 4
      %v2967 = vadd.f32 %v2965, %v2966
      %v2968 = vrot.slane %v2967, 2
      %v2969 = vadd.f32 %v2967, %v2968
      %v2970 = vrot.slane %v2969, 1
      %v2971 = vadd.f32 %v2969, %v2970
      %v2972 = vrcp.pop %v1634
      %v2973 = vmul.f32 %v1634, %v2972
      %v2974 = vsub.f32 1.0, %v2973
      %v2975 = vmul.f32 %v2972, %v2974
      %v2976 = vadd.f32 %v2972, %v2975
      %vm2977 = vweird.f32 %v1634
      %vm2978 = vweird.f32 %v2972
      %vm2979 = vmor %vm2977, %vm2978
      %v2980 = vsel %vm2979, %v2972, %v2976
      %v2981 = vand.u32 2147483647, %v1634
      %vm2982 = vcmp.eq.f32.partialorder %v2981, 8.507059e+37
      %v2983 = vand.u32 %v1634, 2147483648
      %v2984 = vor.u32 1.1754944e-38, %v2983
      %v2985 = vsel %vm2982, %v2984, %v2980
      %v2986 = vrcp.pop %v1641
      %v2987 = vmul.f32 %v1641, %v2986
      %v2988 = vsub.f32 1.0, %v2987
      %v2989 = vmul.f32 %v2986, %v2988
      %v2990 = vadd.f32 %v2986, %v2989
      %vm2991 = vweird.f32 %v1641
      %vm2992 = vweird.f32 %v2986
      %vm2993 = vmor %vm2991, %vm2992
      %v2994 = vsel %vm2993, %v2986, %v2990
      %v2995 = vand.u32 2147483647, %v1641
      %vm2996 = vcmp.eq.f32.partialorder %v2995, 8.507059e+37
      %v2997 = vand.u32 %v1641, 2147483648
      %v2998 = vor.u32 1.1754944e-38, %v2997
      %v2999 = vsel %vm2996, %v2998, %v2994
      %v3000 = vrcp.pop %v1648
      %v3001 = vmul.f32 %v1648, %v3000
      %v3002 = vsub.f32 1.0, %v3001
      %v3003 = vmul.f32 %v3000, %v3002
      %v3004 = vadd.f32 %v3000, %v3003
      %vm3005 = vweird.f32 %v1648
      %vm3006 = vweird.f32 %v3000
      %vm3007 = vmor %vm3005, %vm3006
      %v3008 = vsel %vm3007, %v3000, %v3004
      %v3009 = vand.u32 2147483647, %v1648
      %vm3010 = vcmp.eq.f32.partialorder %v3009, 8.507059e+37
      %v3011 = vand.u32 %v1648, 2147483648
      %v3012 = vor.u32 1.1754944e-38, %v3011
      %v3013 = vsel %vm3010, %v3012, %v3008
      %v3014 = vrcp.pop %v1655
      %v3015 = vmul.f32 %v1655, %v3014
      %v3016 = vsub.f32 1.0, %v3015
      %v3017 = vmul.f32 %v3014, %v3016
      %v3018 = vadd.f32 %v3014, %v3017
      %vm3019 = vweird.f32 %v1655
      %vm3020 = vweird.f32 %v3014
      %vm3021 = vmor %vm3019, %vm3020
      %v3022 = vsel %vm3021, %v3014, %v3018
      %v3023 = vand.u32 2147483647, %v1655
      %vm3024 = vcmp.eq.f32.partialorder %v3023, 8.507059e+37
      %v3025 = vand.u32 %v1655, 2147483648
      %v3026 = vor.u32 1.1754944e-38, %v3025
      %v3027 = vsel %vm3024, %v3026, %v3022
      %v3028 = vrcp.pop %v1662
      %v3029 = vmul.f32 %v1662, %v3028
      %v3030 = vsub.f32 1.0, %v3029
      %v3031 = vmul.f32 %v3028, %v3030
      %v3032 = vadd.f32 %v3028, %v3031
      %vm3033 = vweird.f32 %v1662
      %vm3034 = vweird.f32 %v3028
      %vm3035 = vmor %vm3033, %vm3034
      %v3036 = vsel %vm3035, %v3028, %v3032
      %v3037 = vand.u32 2147483647, %v1662
      %vm3038 = vcmp.eq.f32.partialorder %v3037, 8.507059e+37
      %v3039 = vand.u32 %v1662, 2147483648
      %v3040 = vor.u32 1.1754944e-38, %v3039
      %v3041 = vsel %vm3038, %v3040, %v3036
      %v3042 = vrcp.pop %v1669
      %v3043 = vmul.f32 %v1669, %v3042
      %v3044 = vsub.f32 1.0, %v3043
      %v3045 = vmul.f32 %v3042, %v3044
      %v3046 = vadd.f32 %v3042, %v3045
      %vm3047 = vweird.f32 %v1669
      %vm3048 = vweird.f32 %v3042
      %vm3049 = vmor %vm3047, %vm3048
      %v3050 = vsel %vm3049, %v3042, %v3046
      %v3051 = vand.u32 2147483647, %v1669
      %vm3052 = vcmp.eq.f32.partialorder %v3051, 8.507059e+37
      %v3053 = vand.u32 %v1669, 2147483648
      %v3054 = vor.u32 1.1754944e-38, %v3053
      %v3055 = vsel %vm3052, %v3054, %v3050
      %v3056 = vrcp.pop %v1676
      %v3057 = vmul.f32 %v1676, %v3056
      %v3058 = vsub.f32 1.0, %v3057
      %v3059 = vmul.f32 %v3056, %v3058
      %v3060 = vadd.f32 %v3056, %v3059
      %vm3061 = vweird.f32 %v1676
      %vm3062 = vweird.f32 %v3056
      %vm3063 = vmor %vm3061, %vm3062
      %v3064 = vsel %vm3063, %v3056, %v3060
      %v3065 = vand.u32 2147483647, %v1676
      %vm3066 = vcmp.eq.f32.partialorder %v3065, 8.507059e+37
      %v3067 = vand.u32 %v1676, 2147483648
      %v3068 = vor.u32 1.1754944e-38, %v3067
      %v3069 = vsel %vm3066, %v3068, %v3064
      %v3070 = vrcp.pop %v1683
      %v3071 = vmul.f32 %v1683, %v3070
      %v3072 = vsub.f32 1.0, %v3071
      %v3073 = vmul.f32 %v3070, %v3072
      %v3074 = vadd.f32 %v3070, %v3073
      %vm3075 = vweird.f32 %v1683
      %vm3076 = vweird.f32 %v3070
      %vm3077 = vmor %vm3075, %vm3076
      %v3078 = vsel %vm3077, %v3070, %v3074
      %v3079 = vand.u32 2147483647, %v1683
      %vm3080 = vcmp.eq.f32.partialorder %v3079, 8.507059e+37
      %v3081 = vand.u32 %v1683, 2147483648
      %v3082 = vor.u32 1.1754944e-38, %v3081
      %v3083 = vsel %vm3080, %v3082, %v3078
      %v3084 = vrcp.pop %v1690
      %v3085 = vmul.f32 %v1690, %v3084
      %v3086 = vsub.f32 1.0, %v3085
      %v3087 = vmul.f32 %v3084, %v3086
      %v3088 = vadd.f32 %v3084, %v3087
      %vm3089 = vweird.f32 %v1690
      %vm3090 = vweird.f32 %v3084
      %vm3091 = vmor %vm3089, %vm3090
      %v3092 = vsel %vm3091, %v3084, %v3088
      %v3093 = vand.u32 2147483647, %v1690
      %vm3094 = vcmp.eq.f32.partialorder %v3093, 8.507059e+37
      %v3095 = vand.u32 %v1690, 2147483648
      %v3096 = vor.u32 1.1754944e-38, %v3095
      %v3097 = vsel %vm3094, %v3096, %v3092
      %v3098 = vrcp.pop %v1697
      %v3099 = vmul.f32 %v1697, %v3098
      %v3100 = vsub.f32 1.0, %v3099
      %v3101 = vmul.f32 %v3098, %v3100
      %v3102 = vadd.f32 %v3098, %v3101
      %vm3103 = vweird.f32 %v1697
      %vm3104 = vweird.f32 %v3098
      %vm3105 = vmor %vm3103, %vm3104
      %v3106 = vsel %vm3105, %v3098, %v3102
      %v3107 = vand.u32 2147483647, %v1697
      %vm3108 = vcmp.eq.f32.partialorder %v3107, 8.507059e+37
      %v3109 = vand.u32 %v1697, 2147483648
      %v3110 = vor.u32 1.1754944e-38, %v3109
      %v3111 = vsel %vm3108, %v3110, %v3106
      %v3112 = vrcp.pop %v1704
      %v3113 = vmul.f32 %v1704, %v3112
      %v3114 = vsub.f32 1.0, %v3113
      %v3115 = vmul.f32 %v3112, %v3114
      %v3116 = vadd.f32 %v3112, %v3115
      %vm3117 = vweird.f32 %v1704
      %vm3118 = vweird.f32 %v3112
      %vm3119 = vmor %vm3117, %vm3118
      %v3120 = vsel %vm3119, %v3112, %v3116
      %v3121 = vand.u32 2147483647, %v1704
      %vm3122 = vcmp.eq.f32.partialorder %v3121, 8.507059e+37
      %v3123 = vand.u32 %v1704, 2147483648
      %v3124 = vor.u32 1.1754944e-38, %v3123
      %v3125 = vsel %vm3122, %v3124, %v3120
      %v3126 = vrcp.pop %v1711
      %v3127 = vmul.f32 %v1711, %v3126
      %v3128 = vsub.f32 1.0, %v3127
      %v3129 = vmul.f32 %v3126, %v3128
      %v3130 = vadd.f32 %v3126, %v3129
      %vm3131 = vweird.f32 %v1711
      %vm3132 = vweird.f32 %v3126
      %vm3133 = vmor %vm3131, %vm3132
      %v3134 = vsel %vm3133, %v3126, %v3130
      %v3135 = vand.u32 2147483647, %v1711
      %vm3136 = vcmp.eq.f32.partialorder %v3135, 8.507059e+37
      %v3137 = vand.u32 %v1711, 2147483648
      %v3138 = vor.u32 1.1754944e-38, %v3137
      %v3139 = vsel %vm3136, %v3138, %v3134
      %v3140 = vrcp.pop %v1718
      %v3141 = vmul.f32 %v1718, %v3140
      %v3142 = vsub.f32 1.0, %v3141
      %v3143 = vmul.f32 %v3140, %v3142
      %v3144 = vadd.f32 %v3140, %v3143
      %vm3145 = vweird.f32 %v1718
      %vm3146 = vweird.f32 %v3140
      %vm3147 = vmor %vm3145, %vm3146
      %v3148 = vsel %vm3147, %v3140, %v3144
      %v3149 = vand.u32 2147483647, %v1718
      %vm3150 = vcmp.eq.f32.partialorder %v3149, 8.507059e+37
      %v3151 = vand.u32 %v1718, 2147483648
      %v3152 = vor.u32 1.1754944e-38, %v3151
      %v3153 = vsel %vm3150, %v3152, %v3148
      %v3154 = vrcp.pop %v1725
      %v3155 = vmul.f32 %v1725, %v3154
      %v3156 = vsub.f32 1.0, %v3155
      %v3157 = vmul.f32 %v3154, %v3156
      %v3158 = vadd.f32 %v3154, %v3157
      %vm3159 = vweird.f32 %v1725
      %vm3160 = vweird.f32 %v3154
      %vm3161 = vmor %vm3159, %vm3160
      %v3162 = vsel %vm3161, %v3154, %v3158
      %v3163 = vand.u32 2147483647, %v1725
      %vm3164 = vcmp.eq.f32.partialorder %v3163, 8.507059e+37
      %v3165 = vand.u32 %v1725, 2147483648
      %v3166 = vor.u32 1.1754944e-38, %v3165
      %v3167 = vsel %vm3164, %v3166, %v3162
      %v3168 = vrcp.pop %v1732
      %v3169 = vmul.f32 %v1732, %v3168
      %v3170 = vsub.f32 1.0, %v3169
      %v3171 = vmul.f32 %v3168, %v3170
      %v3172 = vadd.f32 %v3168, %v3171
      %vm3173 = vweird.f32 %v1732
      %vm3174 = vweird.f32 %v3168
      %vm3175 = vmor %vm3173, %vm3174
      %v3176 = vsel %vm3175, %v3168, %v3172
      %v3177 = vand.u32 2147483647, %v1732
      %vm3178 = vcmp.eq.f32.partialorder %v3177, 8.507059e+37
      %v3179 = vand.u32 %v1732, 2147483648
      %v3180 = vor.u32 1.1754944e-38, %v3179
      %v3181 = vsel %vm3178, %v3180, %v3176
      %v3182 = vrcp.pop %v1739
      %v3183 = vmul.f32 %v1739, %v3182
      %v3184 = vsub.f32 1.0, %v3183
      %v3185 = vmul.f32 %v3182, %v3184
      %v3186 = vadd.f32 %v3182, %v3185
      %vm3187 = vweird.f32 %v1739
      %vm3188 = vweird.f32 %v3182
      %vm3189 = vmor %vm3187, %vm3188
      %v3190 = vsel %vm3189, %v3182, %v3186
      %v3191 = vand.u32 2147483647, %v1739
      %vm3192 = vcmp.eq.f32.partialorder %v3191, 8.507059e+37
      %v3193 = vand.u32 %v1739, 2147483648
      %v3194 = vor.u32 1.1754944e-38, %v3193
      %v3195 = vsel %vm3192, %v3194, %v3190
      %v3196 = vrcp.pop %v1746
      %v3197 = vmul.f32 %v1746, %v3196
      %v3198 = vsub.f32 1.0, %v3197
      %v3199 = vmul.f32 %v3196, %v3198
      %v3200 = vadd.f32 %v3196, %v3199
      %vm3201 = vweird.f32 %v1746
      %vm3202 = vweird.f32 %v3196
      %vm3203 = vmor %vm3201, %vm3202
      %v3204 = vsel %vm3203, %v3196, %v3200
      %v3205 = vand.u32 2147483647, %v1746
      %vm3206 = vcmp.eq.f32.partialorder %v3205, 8.507059e+37
      %v3207 = vand.u32 %v1746, 2147483648
      %v3208 = vor.u32 1.1754944e-38, %v3207
      %v3209 = vsel %vm3206, %v3208, %v3204
      %v3210 = vrcp.pop %v1753
      %v3211 = vmul.f32 %v1753, %v3210
      %v3212 = vsub.f32 1.0, %v3211
      %v3213 = vmul.f32 %v3210, %v3212
      %v3214 = vadd.f32 %v3210, %v3213
      %vm3215 = vweird.f32 %v1753
      %vm3216 = vweird.f32 %v3210
      %vm3217 = vmor %vm3215, %vm3216
      %v3218 = vsel %vm3217, %v3210, %v3214
      %v3219 = vand.u32 2147483647, %v1753
      %vm3220 = vcmp.eq.f32.partialorder %v3219, 8.507059e+37
      %v3221 = vand.u32 %v1753, 2147483648
      %v3222 = vor.u32 1.1754944e-38, %v3221
      %v3223 = vsel %vm3220, %v3222, %v3218
      %v3224 = vrcp.pop %v1760
      %v3225 = vmul.f32 %v1760, %v3224
      %v3226 = vsub.f32 1.0, %v3225
      %v3227 = vmul.f32 %v3224, %v3226
      %v3228 = vadd.f32 %v3224, %v3227
      %vm3229 = vweird.f32 %v1760
      %vm3230 = vweird.f32 %v3224
      %vm3231 = vmor %vm3229, %vm3230
      %v3232 = vsel %vm3231, %v3224, %v3228
      %v3233 = vand.u32 2147483647, %v1760
      %vm3234 = vcmp.eq.f32.partialorder %v3233, 8.507059e+37
      %v3235 = vand.u32 %v1760, 2147483648
      %v3236 = vor.u32 1.1754944e-38, %v3235
      %v3237 = vsel %vm3234, %v3236, %v3232
      %v3238 = vrcp.pop %v1767
      %v3239 = vmul.f32 %v1767, %v3238
      %v3240 = vsub.f32 1.0, %v3239
      %v3241 = vmul.f32 %v3238, %v3240
      %v3242 = vadd.f32 %v3238, %v3241
      %vm3243 = vweird.f32 %v1767
      %vm3244 = vweird.f32 %v3238
      %vm3245 = vmor %vm3243, %vm3244
      %v3246 = vsel %vm3245, %v3238, %v3242
      %v3247 = vand.u32 2147483647, %v1767
      %vm3248 = vcmp.eq.f32.partialorder %v3247, 8.507059e+37
      %v3249 = vand.u32 %v1767, 2147483648
      %v3250 = vor.u32 1.1754944e-38, %v3249
      %v3251 = vsel %vm3248, %v3250, %v3246
      %v3252 = vrcp.pop %v1774
      %v3253 = vmul.f32 %v1774, %v3252
      %v3254 = vsub.f32 1.0, %v3253
      %v3255 = vmul.f32 %v3252, %v3254
      %v3256 = vadd.f32 %v3252, %v3255
      %vm3257 = vweird.f32 %v1774
      %vm3258 = vweird.f32 %v3252
      %vm3259 = vmor %vm3257, %vm3258
      %v3260 = vsel %vm3259, %v3252, %v3256
      %v3261 = vand.u32 2147483647, %v1774
      %vm3262 = vcmp.eq.f32.partialorder %v3261, 8.507059e+37
      %v3263 = vand.u32 %v1774, 2147483648
      %v3264 = vor.u32 1.1754944e-38, %v3263
      %v3265 = vsel %vm3262, %v3264, %v3260
      %v3266 = vrcp.pop %v1781
      %v3267 = vmul.f32 %v1781, %v3266
      %v3268 = vsub.f32 1.0, %v3267
      %v3269 = vmul.f32 %v3266, %v3268
      %v3270 = vadd.f32 %v3266, %v3269
      %vm3271 = vweird.f32 %v1781
      %vm3272 = vweird.f32 %v3266
      %vm3273 = vmor %vm3271, %vm3272
      %v3274 = vsel %vm3273, %v3266, %v3270
      %v3275 = vand.u32 2147483647, %v1781
      %vm3276 = vcmp.eq.f32.partialorder %v3275, 8.507059e+37
      %v3277 = vand.u32 %v1781, 2147483648
      %v3278 = vor.u32 1.1754944e-38, %v3277
      %v3279 = vsel %vm3276, %v3278, %v3274
      %v3280 = vrcp.pop %v1788
      %v3281 = vmul.f32 %v1788, %v3280
      %v3282 = vsub.f32 1.0, %v3281
      %v3283 = vmul.f32 %v3280, %v3282
      %v3284 = vadd.f32 %v3280, %v3283
      %vm3285 = vweird.f32 %v1788
      %vm3286 = vweird.f32 %v3280
      %vm3287 = vmor %vm3285, %vm3286
      %v3288 = vsel %vm3287, %v3280, %v3284
      %v3289 = vand.u32 2147483647, %v1788
      %vm3290 = vcmp.eq.f32.partialorder %v3289, 8.507059e+37
      %v3291 = vand.u32 %v1788, 2147483648
      %v3292 = vor.u32 1.1754944e-38, %v3291
      %v3293 = vsel %vm3290, %v3292, %v3288
      %v3294 = vrcp.pop %v1795
      %v3295 = vmul.f32 %v1795, %v3294
      %v3296 = vsub.f32 1.0, %v3295
      %v3297 = vmul.f32 %v3294, %v3296
      %v3298 = vadd.f32 %v3294, %v3297
      %vm3299 = vweird.f32 %v1795
      %vm3300 = vweird.f32 %v3294
      %vm3301 = vmor %vm3299, %vm3300
      %v3302 = vsel %vm3301, %v3294, %v3298
      %v3303 = vand.u32 2147483647, %v1795
      %vm3304 = vcmp.eq.f32.partialorder %v3303, 8.507059e+37
      %v3305 = vand.u32 %v1795, 2147483648
      %v3306 = vor.u32 1.1754944e-38, %v3305
      %v3307 = vsel %vm3304, %v3306, %v3302
      %v3308 = vrcp.pop %v1802
      %v3309 = vmul.f32 %v1802, %v3308
      %v3310 = vsub.f32 1.0, %v3309
      %v3311 = vmul.f32 %v3308, %v3310
      %v3312 = vadd.f32 %v3308, %v3311
      %vm3313 = vweird.f32 %v1802
      %vm3314 = vweird.f32 %v3308
      %vm3315 = vmor %vm3313, %vm3314
      %v3316 = vsel %vm3315, %v3308, %v3312
      %v3317 = vand.u32 2147483647, %v1802
      %vm3318 = vcmp.eq.f32.partialorder %v3317, 8.507059e+37
      %v3319 = vand.u32 %v1802, 2147483648
      %v3320 = vor.u32 1.1754944e-38, %v3319
      %v3321 = vsel %vm3318, %v3320, %v3316
      %v3322 = vrcp.pop %v1809
      %v3323 = vmul.f32 %v1809, %v3322
      %v3324 = vsub.f32 1.0, %v3323
      %v3325 = vmul.f32 %v3322, %v3324
      %v3326 = vadd.f32 %v3322, %v3325
      %vm3327 = vweird.f32 %v1809
      %vm3328 = vweird.f32 %v3322
      %vm3329 = vmor %vm3327, %vm3328
      %v3330 = vsel %vm3329, %v3322, %v3326
      %v3331 = vand.u32 2147483647, %v1809
      %vm3332 = vcmp.eq.f32.partialorder %v3331, 8.507059e+37
      %v3333 = vand.u32 %v1809, 2147483648
      %v3334 = vor.u32 1.1754944e-38, %v3333
      %v3335 = vsel %vm3332, %v3334, %v3330
      %v3336 = vrcp.pop %v1816
      %v3337 = vmul.f32 %v1816, %v3336
      %v3338 = vsub.f32 1.0, %v3337
      %v3339 = vmul.f32 %v3336, %v3338
      %v3340 = vadd.f32 %v3336, %v3339
      %vm3341 = vweird.f32 %v1816
      %vm3342 = vweird.f32 %v3336
      %vm3343 = vmor %vm3341, %vm3342
      %v3344 = vsel %vm3343, %v3336, %v3340
      %v3345 = vand.u32 2147483647, %v1816
      %vm3346 = vcmp.eq.f32.partialorder %v3345, 8.507059e+37
      %v3347 = vand.u32 %v1816, 2147483648
      %v3348 = vor.u32 1.1754944e-38, %v3347
      %v3349 = vsel %vm3346, %v3348, %v3344
      %v3350 = vrcp.pop %v1823
      %v3351 = vmul.f32 %v1823, %v3350
      %v3352 = vsub.f32 1.0, %v3351
      %v3353 = vmul.f32 %v3350, %v3352
      %v3354 = vadd.f32 %v3350, %v3353
      %vm3355 = vweird.f32 %v1823
      %vm3356 = vweird.f32 %v3350
      %vm3357 = vmor %vm3355, %vm3356
      %v3358 = vsel %vm3357, %v3350, %v3354
      %v3359 = vand.u32 2147483647, %v1823
      %vm3360 = vcmp.eq.f32.partialorder %v3359, 8.507059e+37
      %v3361 = vand.u32 %v1823, 2147483648
      %v3362 = vor.u32 1.1754944e-38, %v3361
      %v3363 = vsel %vm3360, %v3362, %v3358
      %v3364 = vrcp.pop %v1830
      %v3365 = vmul.f32 %v1830, %v3364
      %v3366 = vsub.f32 1.0, %v3365
      %v3367 = vmul.f32 %v3364, %v3366
      %v3368 = vadd.f32 %v3364, %v3367
      %vm3369 = vweird.f32 %v1830
      %vm3370 = vweird.f32 %v3364
      %vm3371 = vmor %vm3369, %vm3370
      %v3372 = vsel %vm3371, %v3364, %v3368
      %v3373 = vand.u32 2147483647, %v1830
      %vm3374 = vcmp.eq.f32.partialorder %v3373, 8.507059e+37
      %v3375 = vand.u32 %v1830, 2147483648
      %v3376 = vor.u32 1.1754944e-38, %v3375
      %v3377 = vsel %vm3374, %v3376, %v3372
      %v3378 = vrcp.pop %v1837
      %v3379 = vmul.f32 %v1837, %v3378
      %v3380 = vsub.f32 1.0, %v3379
      %v3381 = vmul.f32 %v3378, %v3380
      %v3382 = vadd.f32 %v3378, %v3381
      %vm3383 = vweird.f32 %v1837
      %vm3384 = vweird.f32 %v3378
      %vm3385 = vmor %vm3383, %vm3384
      %v3386 = vsel %vm3385, %v3378, %v3382
      %v3387 = vand.u32 2147483647, %v1837
      %vm3388 = vcmp.eq.f32.partialorder %v3387, 8.507059e+37
      %v3389 = vand.u32 %v1837, 2147483648
      %v3390 = vor.u32 1.1754944e-38, %v3389
      %v3391 = vsel %vm3388, %v3390, %v3386
      %v3392 = vrcp.pop %v1844
      %v3393 = vmul.f32 %v1844, %v3392
      %v3394 = vsub.f32 1.0, %v3393
      %v3395 = vmul.f32 %v3392, %v3394
      %v3396 = vadd.f32 %v3392, %v3395
      %vm3397 = vweird.f32 %v1844
      %vm3398 = vweird.f32 %v3392
      %vm3399 = vmor %vm3397, %vm3398
      %v3400 = vsel %vm3399, %v3392, %v3396
      %v3401 = vand.u32 2147483647, %v1844
      %vm3402 = vcmp.eq.f32.partialorder %v3401, 8.507059e+37
      %v3403 = vand.u32 %v1844, 2147483648
      %v3404 = vor.u32 1.1754944e-38, %v3403
      %v3405 = vsel %vm3402, %v3404, %v3400
      %v3406 = vrcp.pop %v1851
      %v3407 = vmul.f32 %v1851, %v3406
      %v3408 = vsub.f32 1.0, %v3407
      %v3409 = vmul.f32 %v3406, %v3408
      %v3410 = vadd.f32 %v3406, %v3409
      %vm3411 = vweird.f32 %v1851
      %vm3412 = vweird.f32 %v3406
      %vm3413 = vmor %vm3411, %vm3412
      %v3414 = vsel %vm3413, %v3406, %v3410
      %v3415 = vand.u32 2147483647, %v1851
      %vm3416 = vcmp.eq.f32.partialorder %v3415, 8.507059e+37
      %v3417 = vand.u32 %v1851, 2147483648
      %v3418 = vor.u32 1.1754944e-38, %v3417
      %v3419 = vsel %vm3416, %v3418, %v3414
      %v3420 = vrcp.pop %v1858
      %v3421 = vmul.f32 %v1858, %v3420
      %v3422 = vsub.f32 1.0, %v3421
      %v3423 = vmul.f32 %v3420, %v3422
      %v3424 = vadd.f32 %v3420, %v3423
      %vm3425 = vweird.f32 %v1858
      %vm3426 = vweird.f32 %v3420
      %vm3427 = vmor %vm3425, %vm3426
      %v3428 = vsel %vm3427, %v3420, %v3424
      %v3429 = vand.u32 2147483647, %v1858
      %vm3430 = vcmp.eq.f32.partialorder %v3429, 8.507059e+37
      %v3431 = vand.u32 %v1858, 2147483648
      %v3432 = vor.u32 1.1754944e-38, %v3431
      %v3433 = vsel %vm3430, %v3432, %v3428
      %v3434 = vrcp.pop %v1865
      %v3435 = vmul.f32 %v1865, %v3434
      %v3436 = vsub.f32 1.0, %v3435
      %v3437 = vmul.f32 %v3434, %v3436
      %v3438 = vadd.f32 %v3434, %v3437
      %vm3439 = vweird.f32 %v1865
      %vm3440 = vweird.f32 %v3434
      %vm3441 = vmor %vm3439, %vm3440
      %v3442 = vsel %vm3441, %v3434, %v3438
      %v3443 = vand.u32 2147483647, %v1865
      %vm3444 = vcmp.eq.f32.partialorder %v3443, 8.507059e+37
      %v3445 = vand.u32 %v1865, 2147483648
      %v3446 = vor.u32 1.1754944e-38, %v3445
      %v3447 = vsel %vm3444, %v3446, %v3442
      %v3448 = vrcp.pop %v1872
      %v3449 = vmul.f32 %v1872, %v3448
      %v3450 = vsub.f32 1.0, %v3449
      %v3451 = vmul.f32 %v3448, %v3450
      %v3452 = vadd.f32 %v3448, %v3451
      %vm3453 = vweird.f32 %v1872
      %vm3454 = vweird.f32 %v3448
      %vm3455 = vmor %vm3453, %vm3454
      %v3456 = vsel %vm3455, %v3448, %v3452
      %v3457 = vand.u32 2147483647, %v1872
      %vm3458 = vcmp.eq.f32.partialorder %v3457, 8.507059e+37
      %v3459 = vand.u32 %v1872, 2147483648
      %v3460 = vor.u32 1.1754944e-38, %v3459
      %v3461 = vsel %vm3458, %v3460, %v3456
      %v3462 = vrcp.pop %v1879
      %v3463 = vmul.f32 %v1879, %v3462
      %v3464 = vsub.f32 1.0, %v3463
      %v3465 = vmul.f32 %v3462, %v3464
      %v3466 = vadd.f32 %v3462, %v3465
      %vm3467 = vweird.f32 %v1879
      %vm3468 = vweird.f32 %v3462
      %vm3469 = vmor %vm3467, %vm3468
      %v3470 = vsel %vm3469, %v3462, %v3466
      %v3471 = vand.u32 2147483647, %v1879
      %vm3472 = vcmp.eq.f32.partialorder %v3471, 8.507059e+37
      %v3473 = vand.u32 %v1879, 2147483648
      %v3474 = vor.u32 1.1754944e-38, %v3473
      %v3475 = vsel %vm3472, %v3474, %v3470
      %v3476 = vrcp.pop %v1886
      %v3477 = vmul.f32 %v1886, %v3476
      %v3478 = vsub.f32 1.0, %v3477
      %v3479 = vmul.f32 %v3476, %v3478
      %v3480 = vadd.f32 %v3476, %v3479
      %vm3481 = vweird.f32 %v1886
      %vm3482 = vweird.f32 %v3476
      %vm3483 = vmor %vm3481, %vm3482
      %v3484 = vsel %vm3483, %v3476, %v3480
      %v3485 = vand.u32 2147483647, %v1886
      %vm3486 = vcmp.eq.f32.partialorder %v3485, 8.507059e+37
      %v3487 = vand.u32 %v1886, 2147483648
      %v3488 = vor.u32 1.1754944e-38, %v3487
      %v3489 = vsel %vm3486, %v3488, %v3484
      %v3490 = vrcp.pop %v1893
      %v3491 = vmul.f32 %v1893, %v3490
      %v3492 = vsub.f32 1.0, %v3491
      %v3493 = vmul.f32 %v3490, %v3492
      %v3494 = vadd.f32 %v3490, %v3493
      %vm3495 = vweird.f32 %v1893
      %vm3496 = vweird.f32 %v3490
      %vm3497 = vmor %vm3495, %vm3496
      %v3498 = vsel %vm3497, %v3490, %v3494
      %v3499 = vand.u32 2147483647, %v1893
      %vm3500 = vcmp.eq.f32.partialorder %v3499, 8.507059e+37
      %v3501 = vand.u32 %v1893, 2147483648
      %v3502 = vor.u32 1.1754944e-38, %v3501
      %v3503 = vsel %vm3500, %v3502, %v3498
      %v3504 = vrcp.pop %v1900
      %v3505 = vmul.f32 %v1900, %v3504
      %v3506 = vsub.f32 1.0, %v3505
      %v3507 = vmul.f32 %v3504, %v3506
      %v3508 = vadd.f32 %v3504, %v3507
      %vm3509 = vweird.f32 %v1900
      %vm3510 = vweird.f32 %v3504
      %vm3511 = vmor %vm3509, %vm3510
      %v3512 = vsel %vm3511, %v3504, %v3508
      %v3513 = vand.u32 2147483647, %v1900
      %vm3514 = vcmp.eq.f32.partialorder %v3513, 8.507059e+37
      %v3515 = vand.u32 %v1900, 2147483648
      %v3516 = vor.u32 1.1754944e-38, %v3515
      %v3517 = vsel %vm3514, %v3516, %v3512
      %v3518 = vrcp.pop %v1907
      %v3519 = vmul.f32 %v1907, %v3518
      %v3520 = vsub.f32 1.0, %v3519
      %v3521 = vmul.f32 %v3518, %v3520
      %v3522 = vadd.f32 %v3518, %v3521
      %vm3523 = vweird.f32 %v1907
      %vm3524 = vweird.f32 %v3518
      %vm3525 = vmor %vm3523, %vm3524
      %v3526 = vsel %vm3525, %v3518, %v3522
      %v3527 = vand.u32 2147483647, %v1907
      %vm3528 = vcmp.eq.f32.partialorder %v3527, 8.507059e+37
      %v3529 = vand.u32 %v1907, 2147483648
      %v3530 = vor.u32 1.1754944e-38, %v3529
      %v3531 = vsel %vm3528, %v3530, %v3526
      %v3532 = vrcp.pop %v1914
      %v3533 = vmul.f32 %v1914, %v3532
      %v3534 = vsub.f32 1.0, %v3533
      %v3535 = vmul.f32 %v3532, %v3534
      %v3536 = vadd.f32 %v3532, %v3535
      %vm3537 = vweird.f32 %v1914
      %vm3538 = vweird.f32 %v3532
      %vm3539 = vmor %vm3537, %vm3538
      %v3540 = vsel %vm3539, %v3532, %v3536
      %v3541 = vand.u32 2147483647, %v1914
      %vm3542 = vcmp.eq.f32.partialorder %v3541, 8.507059e+37
      %v3543 = vand.u32 %v1914, 2147483648
      %v3544 = vor.u32 1.1754944e-38, %v3543
      %v3545 = vsel %vm3542, %v3544, %v3540
      %v3546 = vrcp.pop %v1921
      %v3547 = vmul.f32 %v1921, %v3546
      %v3548 = vsub.f32 1.0, %v3547
      %v3549 = vmul.f32 %v3546, %v3548
      %v3550 = vadd.f32 %v3546, %v3549
      %vm3551 = vweird.f32 %v1921
      %vm3552 = vweird.f32 %v3546
      %vm3553 = vmor %vm3551, %vm3552
      %v3554 = vsel %vm3553, %v3546, %v3550
      %v3555 = vand.u32 2147483647, %v1921
      %vm3556 = vcmp.eq.f32.partialorder %v3555, 8.507059e+37
      %v3557 = vand.u32 %v1921, 2147483648
      %v3558 = vor.u32 1.1754944e-38, %v3557
      %v3559 = vsel %vm3556, %v3558, %v3554
      %v3560 = vrcp.pop %v1928
      %v3561 = vmul.f32 %v1928, %v3560
      %v3562 = vsub.f32 1.0, %v3561
      %v3563 = vmul.f32 %v3560, %v3562
      %v3564 = vadd.f32 %v3560, %v3563
      %vm3565 = vweird.f32 %v1928
      %vm3566 = vweird.f32 %v3560
      %vm3567 = vmor %vm3565, %vm3566
      %v3568 = vsel %vm3567, %v3560, %v3564
      %v3569 = vand.u32 2147483647, %v1928
      %vm3570 = vcmp.eq.f32.partialorder %v3569, 8.507059e+37
      %v3571 = vand.u32 %v1928, 2147483648
      %v3572 = vor.u32 1.1754944e-38, %v3571
      %v3573 = vsel %vm3570, %v3572, %v3568
      %v3574 = vrcp.pop %v1935
      %v3575 = vmul.f32 %v1935, %v3574
      %v3576 = vsub.f32 1.0, %v3575
      %v3577 = vmul.f32 %v3574, %v3576
      %v3578 = vadd.f32 %v3574, %v3577
      %vm3579 = vweird.f32 %v1935
      %vm3580 = vweird.f32 %v3574
      %vm3581 = vmor %vm3579, %vm3580
      %v3582 = vsel %vm3581, %v3574, %v3578
      %v3583 = vand.u32 2147483647, %v1935
      %vm3584 = vcmp.eq.f32.partialorder %v3583, 8.507059e+37
      %v3585 = vand.u32 %v1935, 2147483648
      %v3586 = vor.u32 1.1754944e-38, %v3585
      %v3587 = vsel %vm3584, %v3586, %v3582
      %v3588 = vrcp.pop %v1942
      %v3589 = vmul.f32 %v1942, %v3588
      %v3590 = vsub.f32 1.0, %v3589
      %v3591 = vmul.f32 %v3588, %v3590
      %v3592 = vadd.f32 %v3588, %v3591
      %vm3593 = vweird.f32 %v1942
      %vm3594 = vweird.f32 %v3588
      %vm3595 = vmor %vm3593, %vm3594
      %v3596 = vsel %vm3595, %v3588, %v3592
      %v3597 = vand.u32 2147483647, %v1942
      %vm3598 = vcmp.eq.f32.partialorder %v3597, 8.507059e+37
      %v3599 = vand.u32 %v1942, 2147483648
      %v3600 = vor.u32 1.1754944e-38, %v3599
      %v3601 = vsel %vm3598, %v3600, %v3596
      %v3602 = vrcp.pop %v1949
      %v3603 = vmul.f32 %v1949, %v3602
      %v3604 = vsub.f32 1.0, %v3603
      %v3605 = vmul.f32 %v3602, %v3604
      %v3606 = vadd.f32 %v3602, %v3605
      %vm3607 = vweird.f32 %v1949
      %vm3608 = vweird.f32 %v3602
      %vm3609 = vmor %vm3607, %vm3608
      %v3610 = vsel %vm3609, %v3602, %v3606
      %v3611 = vand.u32 2147483647, %v1949
      %vm3612 = vcmp.eq.f32.partialorder %v3611, 8.507059e+37
      %v3613 = vand.u32 %v1949, 2147483648
      %v3614 = vor.u32 1.1754944e-38, %v3613
      %v3615 = vsel %vm3612, %v3614, %v3610
      %v3616 = vrcp.pop %v1956
      %v3617 = vmul.f32 %v1956, %v3616
      %v3618 = vsub.f32 1.0, %v3617
      %v3619 = vmul.f32 %v3616, %v3618
      %v3620 = vadd.f32 %v3616, %v3619
      %vm3621 = vweird.f32 %v1956
      %vm3622 = vweird.f32 %v3616
      %vm3623 = vmor %vm3621, %vm3622
      %v3624 = vsel %vm3623, %v3616, %v3620
      %v3625 = vand.u32 2147483647, %v1956
      %vm3626 = vcmp.eq.f32.partialorder %v3625, 8.507059e+37
      %v3627 = vand.u32 %v1956, 2147483648
      %v3628 = vor.u32 1.1754944e-38, %v3627
      %v3629 = vsel %vm3626, %v3628, %v3624
      %v3630 = vrcp.pop %v1963
      %v3631 = vmul.f32 %v1963, %v3630
      %v3632 = vsub.f32 1.0, %v3631
      %v3633 = vmul.f32 %v3630, %v3632
      %v3634 = vadd.f32 %v3630, %v3633
      %vm3635 = vweird.f32 %v1963
      %vm3636 = vweird.f32 %v3630
      %vm3637 = vmor %vm3635, %vm3636
      %v3638 = vsel %vm3637, %v3630, %v3634
      %v3639 = vand.u32 2147483647, %v1963
      %vm3640 = vcmp.eq.f32.partialorder %v3639, 8.507059e+37
      %v3641 = vand.u32 %v1963, 2147483648
      %v3642 = vor.u32 1.1754944e-38, %v3641
      %v3643 = vsel %vm3640, %v3642, %v3638
      %v3644 = vrcp.pop %v1970
      %v3645 = vmul.f32 %v1970, %v3644
      %v3646 = vsub.f32 1.0, %v3645
      %v3647 = vmul.f32 %v3644, %v3646
      %v3648 = vadd.f32 %v3644, %v3647
      %vm3649 = vweird.f32 %v1970
      %vm3650 = vweird.f32 %v3644
      %vm3651 = vmor %vm3649, %vm3650
      %v3652 = vsel %vm3651, %v3644, %v3648
      %v3653 = vand.u32 2147483647, %v1970
      %vm3654 = vcmp.eq.f32.partialorder %v3653, 8.507059e+37
      %v3655 = vand.u32 %v1970, 2147483648
      %v3656 = vor.u32 1.1754944e-38, %v3655
      %v3657 = vsel %vm3654, %v3656, %v3652
      %v3658 = vrcp.pop %v1977
      %v3659 = vmul.f32 %v1977, %v3658
      %v3660 = vsub.f32 1.0, %v3659
      %v3661 = vmul.f32 %v3658, %v3660
      %v3662 = vadd.f32 %v3658, %v3661
      %vm3663 = vweird.f32 %v1977
      %vm3664 = vweird.f32 %v3658
      %vm3665 = vmor %vm3663, %vm3664
      %v3666 = vsel %vm3665, %v3658, %v3662
      %v3667 = vand.u32 2147483647, %v1977
      %vm3668 = vcmp.eq.f32.partialorder %v3667, 8.507059e+37
      %v3669 = vand.u32 %v1977, 2147483648
      %v3670 = vor.u32 1.1754944e-38, %v3669
      %v3671 = vsel %vm3668, %v3670, %v3666
      %v3672 = vrcp.pop %v1984
      %v3673 = vmul.f32 %v1984, %v3672
      %v3674 = vsub.f32 1.0, %v3673
      %v3675 = vmul.f32 %v3672, %v3674
      %v3676 = vadd.f32 %v3672, %v3675
      %vm3677 = vweird.f32 %v1984
      %vm3678 = vweird.f32 %v3672
      %vm3679 = vmor %vm3677, %vm3678
      %v3680 = vsel %vm3679, %v3672, %v3676
      %v3681 = vand.u32 2147483647, %v1984
      %vm3682 = vcmp.eq.f32.partialorder %v3681, 8.507059e+37
      %v3683 = vand.u32 %v1984, 2147483648
      %v3684 = vor.u32 1.1754944e-38, %v3683
      %v3685 = vsel %vm3682, %v3684, %v3680
      %v3686 = vrcp.pop %v1991
      %v3687 = vmul.f32 %v1991, %v3686
      %v3688 = vsub.f32 1.0, %v3687
      %v3689 = vmul.f32 %v3686, %v3688
      %v3690 = vadd.f32 %v3686, %v3689
      %vm3691 = vweird.f32 %v1991
      %vm3692 = vweird.f32 %v3686
      %vm3693 = vmor %vm3691, %vm3692
      %v3694 = vsel %vm3693, %v3686, %v3690
      %v3695 = vand.u32 2147483647, %v1991
      %vm3696 = vcmp.eq.f32.partialorder %v3695, 8.507059e+37
      %v3697 = vand.u32 %v1991, 2147483648
      %v3698 = vor.u32 1.1754944e-38, %v3697
      %v3699 = vsel %vm3696, %v3698, %v3694
      %v3700 = vrcp.pop %v1998
      %v3701 = vmul.f32 %v1998, %v3700
      %v3702 = vsub.f32 1.0, %v3701
      %v3703 = vmul.f32 %v3700, %v3702
      %v3704 = vadd.f32 %v3700, %v3703
      %vm3705 = vweird.f32 %v1998
      %vm3706 = vweird.f32 %v3700
      %vm3707 = vmor %vm3705, %vm3706
      %v3708 = vsel %vm3707, %v3700, %v3704
      %v3709 = vand.u32 2147483647, %v1998
      %vm3710 = vcmp.eq.f32.partialorder %v3709, 8.507059e+37
      %v3711 = vand.u32 %v1998, 2147483648
      %v3712 = vor.u32 1.1754944e-38, %v3711
      %v3713 = vsel %vm3710, %v3712, %v3708
      %v3714 = vrcp.pop %v2005
      %v3715 = vmul.f32 %v2005, %v3714
      %v3716 = vsub.f32 1.0, %v3715
      %v3717 = vmul.f32 %v3714, %v3716
      %v3718 = vadd.f32 %v3714, %v3717
      %vm3719 = vweird.f32 %v2005
      %vm3720 = vweird.f32 %v3714
      %vm3721 = vmor %vm3719, %vm3720
      %v3722 = vsel %vm3721, %v3714, %v3718
      %v3723 = vand.u32 2147483647, %v2005
      %vm3724 = vcmp.eq.f32.partialorder %v3723, 8.507059e+37
      %v3725 = vand.u32 %v2005, 2147483648
      %v3726 = vor.u32 1.1754944e-38, %v3725
      %v3727 = vsel %vm3724, %v3726, %v3722
      %v3728 = vrcp.pop %v2012
      %v3729 = vmul.f32 %v2012, %v3728
      %v3730 = vsub.f32 1.0, %v3729
      %v3731 = vmul.f32 %v3728, %v3730
      %v3732 = vadd.f32 %v3728, %v3731
      %vm3733 = vweird.f32 %v2012
      %vm3734 = vweird.f32 %v3728
      %vm3735 = vmor %vm3733, %vm3734
      %v3736 = vsel %vm3735, %v3728, %v3732
      %v3737 = vand.u32 2147483647, %v2012
      %vm3738 = vcmp.eq.f32.partialorder %v3737, 8.507059e+37
      %v3739 = vand.u32 %v2012, 2147483648
      %v3740 = vor.u32 1.1754944e-38, %v3739
      %v3741 = vsel %vm3738, %v3740, %v3736
      %v3742 = vrcp.pop %v2019
      %v3743 = vmul.f32 %v2019, %v3742
      %v3744 = vsub.f32 1.0, %v3743
      %v3745 = vmul.f32 %v3742, %v3744
      %v3746 = vadd.f32 %v3742, %v3745
      %vm3747 = vweird.f32 %v2019
      %vm3748 = vweird.f32 %v3742
      %vm3749 = vmor %vm3747, %vm3748
      %v3750 = vsel %vm3749, %v3742, %v3746
      %v3751 = vand.u32 2147483647, %v2019
      %vm3752 = vcmp.eq.f32.partialorder %v3751, 8.507059e+37
      %v3753 = vand.u32 %v2019, 2147483648
      %v3754 = vor.u32 1.1754944e-38, %v3753
      %v3755 = vsel %vm3752, %v3754, %v3750
      %v3756 = vrcp.pop %v2026
      %v3757 = vmul.f32 %v2026, %v3756
      %v3758 = vsub.f32 1.0, %v3757
      %v3759 = vmul.f32 %v3756, %v3758
      %v3760 = vadd.f32 %v3756, %v3759
      %vm3761 = vweird.f32 %v2026
      %vm3762 = vweird.f32 %v3756
      %vm3763 = vmor %vm3761, %vm3762
      %v3764 = vsel %vm3763, %v3756, %v3760
      %v3765 = vand.u32 2147483647, %v2026
      %vm3766 = vcmp.eq.f32.partialorder %v3765, 8.507059e+37
      %v3767 = vand.u32 %v2026, 2147483648
      %v3768 = vor.u32 1.1754944e-38, %v3767
      %v3769 = vsel %vm3766, %v3768, %v3764
      %v3770 = vrcp.pop %v2033
      %v3771 = vmul.f32 %v2033, %v3770
      %v3772 = vsub.f32 1.0, %v3771
      %v3773 = vmul.f32 %v3770, %v3772
      %v3774 = vadd.f32 %v3770, %v3773
      %vm3775 = vweird.f32 %v2033
      %vm3776 = vweird.f32 %v3770
      %vm3777 = vmor %vm3775, %vm3776
      %v3778 = vsel %vm3777, %v3770, %v3774
      %v3779 = vand.u32 2147483647, %v2033
      %vm3780 = vcmp.eq.f32.partialorder %v3779, 8.507059e+37
      %v3781 = vand.u32 %v2033, 2147483648
      %v3782 = vor.u32 1.1754944e-38, %v3781
      %v3783 = vsel %vm3780, %v3782, %v3778
      %v3784 = vrcp.pop %v2040
      %v3785 = vmul.f32 %v2040, %v3784
      %v3786 = vsub.f32 1.0, %v3785
      %v3787 = vmul.f32 %v3784, %v3786
      %v3788 = vadd.f32 %v3784, %v3787
      %vm3789 = vweird.f32 %v2040
      %vm3790 = vweird.f32 %v3784
      %vm3791 = vmor %vm3789, %vm3790
      %v3792 = vsel %vm3791, %v3784, %v3788
      %v3793 = vand.u32 2147483647, %v2040
      %vm3794 = vcmp.eq.f32.partialorder %v3793, 8.507059e+37
      %v3795 = vand.u32 %v2040, 2147483648
      %v3796 = vor.u32 1.1754944e-38, %v3795
      %v3797 = vsel %vm3794, %v3796, %v3792
      %v3798 = vrcp.pop %v2047
      %v3799 = vmul.f32 %v2047, %v3798
      %v3800 = vsub.f32 1.0, %v3799
      %v3801 = vmul.f32 %v3798, %v3800
      %v3802 = vadd.f32 %v3798, %v3801
      %vm3803 = vweird.f32 %v2047
      %vm3804 = vweird.f32 %v3798
      %vm3805 = vmor %vm3803, %vm3804
      %v3806 = vsel %vm3805, %v3798, %v3802
      %v3807 = vand.u32 2147483647, %v2047
      %vm3808 = vcmp.eq.f32.partialorder %v3807, 8.507059e+37
      %v3809 = vand.u32 %v2047, 2147483648
      %v3810 = vor.u32 1.1754944e-38, %v3809
      %v3811 = vsel %vm3808, %v3810, %v3806
      %v3812 = vrcp.pop %v2054
      %v3813 = vmul.f32 %v2054, %v3812
      %v3814 = vsub.f32 1.0, %v3813
      %v3815 = vmul.f32 %v3812, %v3814
      %v3816 = vadd.f32 %v3812, %v3815
      %vm3817 = vweird.f32 %v2054
      %vm3818 = vweird.f32 %v3812
      %vm3819 = vmor %vm3817, %vm3818
      %v3820 = vsel %vm3819, %v3812, %v3816
      %v3821 = vand.u32 2147483647, %v2054
      %vm3822 = vcmp.eq.f32.partialorder %v3821, 8.507059e+37
      %v3823 = vand.u32 %v2054, 2147483648
      %v3824 = vor.u32 1.1754944e-38, %v3823
      %v3825 = vsel %vm3822, %v3824, %v3820
      %v3826 = vrcp.pop %v2061
      %v3827 = vmul.f32 %v2061, %v3826
      %v3828 = vsub.f32 1.0, %v3827
      %v3829 = vmul.f32 %v3826, %v3828
      %v3830 = vadd.f32 %v3826, %v3829
      %vm3831 = vweird.f32 %v2061
      %vm3832 = vweird.f32 %v3826
      %vm3833 = vmor %vm3831, %vm3832
      %v3834 = vsel %vm3833, %v3826, %v3830
      %v3835 = vand.u32 2147483647, %v2061
      %vm3836 = vcmp.eq.f32.partialorder %v3835, 8.507059e+37
      %v3837 = vand.u32 %v2061, 2147483648
      %v3838 = vor.u32 1.1754944e-38, %v3837
      %v3839 = vsel %vm3836, %v3838, %v3834
      %v3840 = vrcp.pop %v2068
      %v3841 = vmul.f32 %v2068, %v3840
      %v3842 = vsub.f32 1.0, %v3841
      %v3843 = vmul.f32 %v3840, %v3842
      %v3844 = vadd.f32 %v3840, %v3843
      %vm3845 = vweird.f32 %v2068
      %vm3846 = vweird.f32 %v3840
      %vm3847 = vmor %vm3845, %vm3846
      %v3848 = vsel %vm3847, %v3840, %v3844
      %v3849 = vand.u32 2147483647, %v2068
      %vm3850 = vcmp.eq.f32.partialorder %v3849, 8.507059e+37
      %v3851 = vand.u32 %v2068, 2147483648
      %v3852 = vor.u32 1.1754944e-38, %v3851
      %v3853 = vsel %vm3850, %v3852, %v3848
      %v3854 = vrcp.pop %v2075
      %v3855 = vmul.f32 %v2075, %v3854
      %v3856 = vsub.f32 1.0, %v3855
      %v3857 = vmul.f32 %v3854, %v3856
      %v3858 = vadd.f32 %v3854, %v3857
      %vm3859 = vweird.f32 %v2075
      %vm3860 = vweird.f32 %v3854
      %vm3861 = vmor %vm3859, %vm3860
      %v3862 = vsel %vm3861, %v3854, %v3858
      %v3863 = vand.u32 2147483647, %v2075
      %vm3864 = vcmp.eq.f32.partialorder %v3863, 8.507059e+37
      %v3865 = vand.u32 %v2075, 2147483648
      %v3866 = vor.u32 1.1754944e-38, %v3865
      %v3867 = vsel %vm3864, %v3866, %v3862
      %v3868 = vmul.f32 %v2530, %v2985
      %v3869 = vmul.f32 %v2537, %v2999
      %v3870 = vmul.f32 %v2544, %v3013
      %v3871 = vmul.f32 %v2551, %v3027
      %v3872 = vmul.f32 %v2558, %v3041
      %v3873 = vmul.f32 %v2565, %v3055
      %v3874 = vmul.f32 %v2572, %v3069
      %v3875 = vmul.f32 %v2579, %v3083
      %v3876 = vmul.f32 %v2586, %v3097
      %v3877 = vmul.f32 %v2593, %v3111
      %v3878 = vmul.f32 %v2600, %v3125
      %v3879 = vmul.f32 %v2607, %v3139
      %v3880 = vmul.f32 %v2614, %v3153
      %v3881 = vmul.f32 %v2621, %v3167
      %v3882 = vmul.f32 %v2628, %v3181
      %v3883 = vmul.f32 %v2635, %v3195
      %v3884 = vmul.f32 %v2642, %v3209
      %v3885 = vmul.f32 %v2649, %v3223
      %v3886 = vmul.f32 %v2656, %v3237
      %v3887 = vmul.f32 %v2663, %v3251
      %v3888 = vmul.f32 %v2670, %v3265
      %v3889 = vmul.f32 %v2677, %v3279
      %v3890 = vmul.f32 %v2684, %v3293
      %v3891 = vmul.f32 %v2691, %v3307
      %v3892 = vmul.f32 %v2698, %v3321
      %v3893 = vmul.f32 %v2705, %v3335
      %v3894 = vmul.f32 %v2712, %v3349
      %v3895 = vmul.f32 %v2719, %v3363
      %v3896 = vmul.f32 %v2726, %v3377
      %v3897 = vmul.f32 %v2733, %v3391
      %v3898 = vmul.f32 %v2740, %v3405
      %v3899 = vmul.f32 %v2747, %v3419
      %v3900 = vmul.f32 %v2754, %v3433
      %v3901 = vmul.f32 %v2761, %v3447
      %v3902 = vmul.f32 %v2768, %v3461
      %v3903 = vmul.f32 %v2775, %v3475
      %v3904 = vmul.f32 %v2782, %v3489
      %v3905 = vmul.f32 %v2789, %v3503
      %v3906 = vmul.f32 %v2796, %v3517
      %v3907 = vmul.f32 %v2803, %v3531
      %v3908 = vmul.f32 %v2810, %v3545
      %v3909 = vmul.f32 %v2817, %v3559
      %v3910 = vmul.f32 %v2824, %v3573
      %v3911 = vmul.f32 %v2831, %v3587
      %v3912 = vmul.f32 %v2838, %v3601
      %v3913 = vmul.f32 %v2845, %v3615
      %v3914 = vmul.f32 %v2852, %v3629
      %v3915 = vmul.f32 %v2859, %v3643
      %v3916 = vmul.f32 %v2866, %v3657
      %v3917 = vmul.f32 %v2873, %v3671
      %v3918 = vmul.f32 %v2880, %v3685
      %v3919 = vmul.f32 %v2887, %v3699
      %v3920 = vmul.f32 %v2894, %v3713
      %v3921 = vmul.f32 %v2901, %v3727
      %v3922 = vmul.f32 %v2908, %v3741
      %v3923 = vmul.f32 %v2915, %v3755
      %v3924 = vmul.f32 %v2922, %v3769
      %v3925 = vmul.f32 %v2929, %v3783
      %v3926 = vmul.f32 %v2936, %v3797
      %v3927 = vmul.f32 %v2943, %v3811
      %v3928 = vmul.f32 %v2950, %v3825
      %v3929 = vmul.f32 %v2957, %v3839
      %v3930 = vmul.f32 %v2964, %v3853
      %v3931 = vmul.f32 %v2971, %v3867
      %s3932 = sld [smem:[#allocation2]]
      %v3933 = vstv %s3932
      %v3934 = vmul.f32 %v3933, %v3868
      %v3935 = vmul.f32 %v3933, %v3869
      %v3936 = vmul.f32 %v3933, %v3870
      %v3937 = vmul.f32 %v3933, %v3871
      %v3938 = vmul.f32 %v3933, %v3872
      %v3939 = vmul.f32 %v3933, %v3873
      %v3940 = vmul.f32 %v3933, %v3874
      %v3941 = vmul.f32 %v3933, %v3875
      %v3942 = vmul.f32 %v3933, %v3876
      %v3943 = vmul.f32 %v3933, %v3877
      %v3944 = vmul.f32 %v3933, %v3878
      %v3945 = vmul.f32 %v3933, %v3879
      %v3946 = vmul.f32 %v3933, %v3880
      %v3947 = vmul.f32 %v3933, %v3881
      %v3948 = vmul.f32 %v3933, %v3882
      %v3949 = vmul.f32 %v3933, %v3883
      %v3950 = vmul.f32 %v3933, %v3884
      %v3951 = vmul.f32 %v3933, %v3885
      %v3952 = vmul.f32 %v3933, %v3886
      %v3953 = vmul.f32 %v3933, %v3887
      %v3954 = vmul.f32 %v3933, %v3888
      %v3955 = vmul.f32 %v3933, %v3889
      %v3956 = vmul.f32 %v3933, %v3890
      %v3957 = vmul.f32 %v3933, %v3891
      %v3958 = vmul.f32 %v3933, %v3892
      %v3959 = vmul.f32 %v3933, %v3893
      %v3960 = vmul.f32 %v3933, %v3894
      %v3961 = vmul.f32 %v3933, %v3895
      %v3962 = vmul.f32 %v3933, %v3896
      %v3963 = vmul.f32 %v3933, %v3897
      %v3964 = vmul.f32 %v3933, %v3898
      %v3965 = vmul.f32 %v3933, %v3899
      %v3966 = vmul.f32 %v3933, %v3900
      %v3967 = vmul.f32 %v3933, %v3901
      %v3968 = vmul.f32 %v3933, %v3902
      %v3969 = vmul.f32 %v3933, %v3903
      %v3970 = vmul.f32 %v3933, %v3904
      %v3971 = vmul.f32 %v3933, %v3905
      %v3972 = vmul.f32 %v3933, %v3906
      %v3973 = vmul.f32 %v3933, %v3907
      %v3974 = vmul.f32 %v3933, %v3908
      %v3975 = vmul.f32 %v3933, %v3909
      %v3976 = vmul.f32 %v3933, %v3910
      %v3977 = vmul.f32 %v3933, %v3911
      %v3978 = vmul.f32 %v3933, %v3912
      %v3979 = vmul.f32 %v3933, %v3913
      %v3980 = vmul.f32 %v3933, %v3914
      %v3981 = vmul.f32 %v3933, %v3915
      %v3982 = vmul.f32 %v3933, %v3916
      %v3983 = vmul.f32 %v3933, %v3917
      %v3984 = vmul.f32 %v3933, %v3918
      %v3985 = vmul.f32 %v3933, %v3919
      %v3986 = vmul.f32 %v3933, %v3920
      %v3987 = vmul.f32 %v3933, %v3921
      %v3988 = vmul.f32 %v3933, %v3922
      %v3989 = vmul.f32 %v3933, %v3923
      %v3990 = vmul.f32 %v3933, %v3924
      %v3991 = vmul.f32 %v3933, %v3925
      %v3992 = vmul.f32 %v3933, %v3926
      %v3993 = vmul.f32 %v3933, %v3927
      %v3994 = vmul.f32 %v3933, %v3928
      %v3995 = vmul.f32 %v3933, %v3929
      %v3996 = vmul.f32 %v3933, %v3930
      %v3997 = vmul.f32 %v3933, %v3931
      %v3998 = vrot.slane %v202, 1
      %v3999 = vrot.slane %v202, 2
      %v4000 = vrot.slane %v202, 3
      %v4001 = vrot.slane %v202, 4
      %v4002 = vrot.slane %v202, 5
      %v4003 = vrot.slane %v202, 6
      %v4004 = vrot.slane %v202, 7
      %v4005 = vrot.slane %v203, 1
      %v4006 = vrot.slane %v203, 2
      %v4007 = vrot.slane %v203, 3
      %v4008 = vrot.slane %v203, 4
      %v4009 = vrot.slane %v203, 5
      %v4010 = vrot.slane %v203, 6
      %v4011 = vrot.slane %v203, 7
      %v4012 = vrot.slane %v204, 1
      %v4013 = vrot.slane %v204, 2
      %v4014 = vrot.slane %v204, 3
      %v4015 = vrot.slane %v204, 4
      %v4016 = vrot.slane %v204, 5
      %v4017 = vrot.slane %v204, 6
      %v4018 = vrot.slane %v204, 7
      %v4019 = vrot.slane %v205, 1
      %v4020 = vrot.slane %v205, 2
      %v4021 = vrot.slane %v205, 3
      %v4022 = vrot.slane %v205, 4
      %v4023 = vrot.slane %v205, 5
      %v4024 = vrot.slane %v205, 6
      %v4025 = vrot.slane %v205, 7
      %v4026 = vrot.slane %v206, 1
      %v4027 = vrot.slane %v206, 2
      %v4028 = vrot.slane %v206, 3
      %v4029 = vrot.slane %v206, 4
      %v4030 = vrot.slane %v206, 5
      %v4031 = vrot.slane %v206, 6
      %v4032 = vrot.slane %v206, 7
      %v4033 = vrot.slane %v207, 1
      %v4034 = vrot.slane %v207, 2
      %v4035 = vrot.slane %v207, 3
      %v4036 = vrot.slane %v207, 4
      %v4037 = vrot.slane %v207, 5
      %v4038 = vrot.slane %v207, 6
      %v4039 = vrot.slane %v207, 7
      %v4040 = vrot.slane %v208, 1
      %v4041 = vrot.slane %v208, 2
      %v4042 = vrot.slane %v208, 3
      %v4043 = vrot.slane %v208, 4
      %v4044 = vrot.slane %v208, 5
      %v4045 = vrot.slane %v208, 6
      %v4046 = vrot.slane %v208, 7
      %v4047 = vrot.slane %v209, 1
      %v4048 = vrot.slane %v209, 2
      %v4049 = vrot.slane %v209, 3
      %v4050 = vrot.slane %v209, 4
      %v4051 = vrot.slane %v209, 5
      %v4052 = vrot.slane %v209, 6
      %v4053 = vrot.slane %v209, 7
      %v4118 = vadd.f32 %v3934, %v202
      %v4119 = vadd.f32 %v3935, %v3998
      %v4120 = vadd.f32 %v3936, %v3999
      %v4121 = vadd.f32 %v3937, %v4000
      %v4122 = vadd.f32 %v3938, %v4001
      %v4123 = vadd.f32 %v3939, %v4002
      %v4124 = vadd.f32 %v3940, %v4003
      %v4125 = vadd.f32 %v3941, %v4004
      %v4126 = vadd.f32 %v3942, %v203
      %v4127 = vadd.f32 %v3943, %v4005
      %v4128 = vadd.f32 %v3944, %v4006
      %v4129 = vadd.f32 %v3945, %v4007
      %v4130 = vadd.f32 %v3946, %v4008
      %v4131 = vadd.f32 %v3947, %v4009
      %v4132 = vadd.f32 %v3948, %v4010
      %v4133 = vadd.f32 %v3949, %v4011
      %v4134 = vadd.f32 %v3950, %v204
      %v4135 = vadd.f32 %v3951, %v4012
      %v4136 = vadd.f32 %v3952, %v4013
      %v4137 = vadd.f32 %v3953, %v4014
      %v4138 = vadd.f32 %v3954, %v4015
      %v4139 = vadd.f32 %v3955, %v4016
      %v4140 = vadd.f32 %v3956, %v4017
      %v4141 = vadd.f32 %v3957, %v4018
      %v4142 = vadd.f32 %v3958, %v205
      %v4143 = vadd.f32 %v3959, %v4019
      %v4144 = vadd.f32 %v3960, %v4020
      %v4145 = vadd.f32 %v3961, %v4021
      %v4146 = vadd.f32 %v3962, %v4022
      %v4147 = vadd.f32 %v3963, %v4023
      %v4148 = vadd.f32 %v3964, %v4024
      %v4149 = vadd.f32 %v3965, %v4025
      %v4150 = vadd.f32 %v3966, %v206
      %v4151 = vadd.f32 %v3967, %v4026
      %v4152 = vadd.f32 %v3968, %v4027
      %v4153 = vadd.f32 %v3969, %v4028
      %v4154 = vadd.f32 %v3970, %v4029
      %v4155 = vadd.f32 %v3971, %v4030
      %v4156 = vadd.f32 %v3972, %v4031
      %v4157 = vadd.f32 %v3973, %v4032
      %v4158 = vadd.f32 %v3974, %v207
      %v4159 = vadd.f32 %v3975, %v4033
      %v4160 = vadd.f32 %v3976, %v4034
      %v4161 = vadd.f32 %v3977, %v4035
      %v4162 = vadd.f32 %v3978, %v4036
      %v4163 = vadd.f32 %v3979, %v4037
      %v4164 = vadd.f32 %v3980, %v4038
      %v4165 = vadd.f32 %v3981, %v4039
      %v4166 = vadd.f32 %v3982, %v208
      %v4167 = vadd.f32 %v3983, %v4040
      %v4168 = vadd.f32 %v3984, %v4041
      %v4169 = vadd.f32 %v3985, %v4042
      %v4170 = vadd.f32 %v3986, %v4043
      %v4171 = vadd.f32 %v3987, %v4044
      %v4172 = vadd.f32 %v3988, %v4045
      %v4173 = vadd.f32 %v3989, %v4046
      %v4174 = vadd.f32 %v3990, %v209
      %v4175 = vadd.f32 %v3991, %v4047
      %v4176 = vadd.f32 %v3992, %v4048
      %v4177 = vadd.f32 %v3993, %v4049
      %v4178 = vadd.f32 %v3994, %v4050
      %v4179 = vadd.f32 %v3995, %v4051
      %v4180 = vadd.f32 %v3996, %v4052
      %v4181 = vadd.f32 %v3997, %v4053
      %v4246 = vrot.slane %v4119, 7
      %vm4247 = vcmask 1041409
      %v4248 = vsel %vm4247, %v4246, %v4118
      %v4249 = vrot.slane %v4120, 6
      %vm4250 = vcmask 1042434
      %v4251 = vsel %vm4250, %v4249, %v4248
      %v4252 = vrot.slane %v4121, 5
      %vm4253 = vcmask 1043459
      %v4254 = vsel %vm4253, %v4252, %v4251
      %v4255 = vrot.slane %v4122, 4
      %vm4256 = vcmask 1044484
      %v4257 = vsel %vm4256, %v4255, %v4254
      %v4258 = vrot.slane %v4123, 3
      %vm4259 = vcmask 1045509
      %v4260 = vsel %vm4259, %v4258, %v4257
      %v4261 = vrot.slane %v4124, 2
      %vm4262 = vcmask 1046534
      %v4263 = vsel %vm4262, %v4261, %v4260
      %v4264 = vrot.slane %v4125, 1
      %vm4265 = vcmask 1047559
      %v4266 = vsel %vm4265, %v4264, %v4263
      %v4267 = vrot.slane %v4127, 7
      %v4268 = vsel %vm4247, %v4267, %v4126
      %v4269 = vrot.slane %v4128, 6
      %v4270 = vsel %vm4250, %v4269, %v4268
      %v4271 = vrot.slane %v4129, 5
      %v4272 = vsel %vm4253, %v4271, %v4270
      %v4273 = vrot.slane %v4130, 4
      %v4274 = vsel %vm4256, %v4273, %v4272
      %v4275 = vrot.slane %v4131, 3
      %v4276 = vsel %vm4259, %v4275, %v4274
      %v4277 = vrot.slane %v4132, 2
      %v4278 = vsel %vm4262, %v4277, %v4276
      %v4279 = vrot.slane %v4133, 1
      %v4280 = vsel %vm4265, %v4279, %v4278
      %v4281 = vrot.slane %v4135, 7
      %v4282 = vsel %vm4247, %v4281, %v4134
      %v4283 = vrot.slane %v4136, 6
      %v4284 = vsel %vm4250, %v4283, %v4282
      %v4285 = vrot.slane %v4137, 5
      %v4286 = vsel %vm4253, %v4285, %v4284
      %v4287 = vrot.slane %v4138, 4
      %v4288 = vsel %vm4256, %v4287, %v4286
      %v4289 = vrot.slane %v4139, 3
      %v4290 = vsel %vm4259, %v4289, %v4288
      %v4291 = vrot.slane %v4140, 2
      %v4292 = vsel %vm4262, %v4291, %v4290
      %v4293 = vrot.slane %v4141, 1
      %v4294 = vsel %vm4265, %v4293, %v4292
      %v4295 = vrot.slane %v4143, 7
      %v4296 = vsel %vm4247, %v4295, %v4142
      %v4297 = vrot.slane %v4144, 6
      %v4298 = vsel %vm4250, %v4297, %v4296
      %v4299 = vrot.slane %v4145, 5
      %v4300 = vsel %vm4253, %v4299, %v4298
      %v4301 = vrot.slane %v4146, 4
      %v4302 = vsel %vm4256, %v4301, %v4300
      %v4303 = vrot.slane %v4147, 3
      %v4304 = vsel %vm4259, %v4303, %v4302
      %v4305 = vrot.slane %v4148, 2
      %v4306 = vsel %vm4262, %v4305, %v4304
      %v4307 = vrot.slane %v4149, 1
      %v4308 = vsel %vm4265, %v4307, %v4306
      %v4309 = vrot.slane %v4151, 7
      %v4310 = vsel %vm4247, %v4309, %v4150
      %v4311 = vrot.slane %v4152, 6
      %v4312 = vsel %vm4250, %v4311, %v4310
      %v4313 = vrot.slane %v4153, 5
      %v4314 = vsel %vm4253, %v4313, %v4312
      %v4315 = vrot.slane %v4154, 4
      %v4316 = vsel %vm4256, %v4315, %v4314
      %v4317 = vrot.slane %v4155, 3
      %v4318 = vsel %vm4259, %v4317, %v4316
      %v4319 = vrot.slane %v4156, 2
      %v4320 = vsel %vm4262, %v4319, %v4318
      %v4321 = vrot.slane %v4157, 1
      %v4322 = vsel %vm4265, %v4321, %v4320
      %v4323 = vrot.slane %v4159, 7
      %v4324 = vsel %vm4247, %v4323, %v4158
      %v4325 = vrot.slane %v4160, 6
      %v4326 = vsel %vm4250, %v4325, %v4324
      %v4327 = vrot.slane %v4161, 5
      %v4328 = vsel %vm4253, %v4327, %v4326
      %v4329 = vrot.slane %v4162, 4
      %v4330 = vsel %vm4256, %v4329, %v4328
      %v4331 = vrot.slane %v4163, 3
      %v4332 = vsel %vm4259, %v4331, %v4330
      %v4333 = vrot.slane %v4164, 2
      %v4334 = vsel %vm4262, %v4333, %v4332
      %v4335 = vrot.slane %v4165, 1
      %v4336 = vsel %vm4265, %v4335, %v4334
      %v4337 = vrot.slane %v4167, 7
      %v4338 = vsel %vm4247, %v4337, %v4166
      %v4339 = vrot.slane %v4168, 6
      %v4340 = vsel %vm4250, %v4339, %v4338
      %v4341 = vrot.slane %v4169, 5
      %v4342 = vsel %vm4253, %v4341, %v4340
      %v4343 = vrot.slane %v4170, 4
      %v4344 = vsel %vm4256, %v4343, %v4342
      %v4345 = vrot.slane %v4171, 3
      %v4346 = vsel %vm4259, %v4345, %v4344
      %v4347 = vrot.slane %v4172, 2
      %v4348 = vsel %vm4262, %v4347, %v4346
      %v4349 = vrot.slane %v4173, 1
      %v4350 = vsel %vm4265, %v4349, %v4348
      %v4351 = vrot.slane %v4175, 7
      %v4352 = vsel %vm4247, %v4351, %v4174
      %v4353 = vrot.slane %v4176, 6
      %v4354 = vsel %vm4250, %v4353, %v4352
      %v4355 = vrot.slane %v4177, 5
      %v4356 = vsel %vm4253, %v4355, %v4354
      %v4357 = vrot.slane %v4178, 4
      %v4358 = vsel %vm4256, %v4357, %v4356
      %v4359 = vrot.slane %v4179, 3
      %v4360 = vsel %vm4259, %v4359, %v4358
      %v4361 = vrot.slane %v4180, 2
      %v4362 = vsel %vm4262, %v4361, %v4360
      %v4363 = vrot.slane %v4181, 1
      %v4364 = vsel %vm4265, %v4363, %v4362
      %4373 = vst.msk [vmem:[%s200] sm:$0xff] %vm218, %v4266
      %4374 = vst.msk [vmem:[%s200 + $0x8] sm:$0xff] %vm218, %v4280
      %4375 = vst.msk [vmem:[%s200 + $0x10] sm:$0xff] %vm218, %v4294
      %4376 = vst.msk [vmem:[%s200 + $0x18] sm:$0xff] %vm218, %v4308
      %4377 = vst.msk [vmem:[%s200 + $0x20] sm:$0xff] %vm218, %v4322
      %4378 = vst.msk [vmem:[%s200 + $0x28] sm:$0xff] %vm218, %v4336
      %4379 = vst.msk [vmem:[%s200 + $0x30] sm:$0xff] %vm218, %v4350
      %4380 = vst.msk [vmem:[%s200 + $0x38] sm:$0xff] %vm218, %v4364
      %s4381 = smul.u32 8, %s16
      %p4382 = scmp.lt.s32.totalorder %s4381, 31
      %s4383 = scalar_select %p4382, %s4381, 31
      %s4384 = smul.addr %s4383, 8
      %s4385 = scalar_lea.vmem %s4, %s4384
      // Predicated region
      $region37: #{tpu_custom_call.1} parent=35 // pred_check
        %p4386 = pneg %p123
      $region38: #{tpu_custom_call.1} parent=35 // pred_check_branch
        %4388 = sbr.rel (%p4386) target = $region40
      $region39: #{tpu_custom_call.1} parent=35 // pred_region
        %s4389 = smul.u32 8, %s16
      $region40: #{tpu_custom_call.1} parent=35 // pred_fallthru
        _
    $region36: #{tpu_custom_call.1} parent=5 // pred_fallthru
      _
    %p4390 = scmp.le.s32.totalorder 2, %s11
    // Predicated region
    $region41: #{tpu_custom_call.1} parent=5 // pred_check
      %p4391 = pneg %p4390
    $region42: #{tpu_custom_call.1} parent=5 // pred_check_branch
      %4393 = sbr.rel (%p4391) target = $region44
    $region43: #{tpu_custom_call.1} parent=5 // pred_region
      %s4394 = ssub.s32 %s11, 2
      // Predicated region
      $region45: #{tpu_custom_call.1} parent=43 // pred_check
        %p4395 = pneg %p129
      $region46: #{tpu_custom_call.1} parent=43 // pred_check_branch
        %4397 = sbr.rel (%p4395) target = $region48
      $region47: #{tpu_custom_call.1} parent=43 // pred_region
        %s4398 = smul.u32 8, %s17
        %p4399 = scmp.lt.s32.totalorder %s4398, 31
        %s4400 = scalar_select %p4399, %s4398, 31
        %s4401 = smul.addr %s4400, 8
        %s4402 = scalar_lea.vmem %s4, %s4401
      $region48: #{tpu_custom_call.1} parent=43 // pred_fallthru
        _
    $region44: #{tpu_custom_call.1} parent=5 // pred_fallthru
      _
  $region6: #{tpu_custom_call.1} parent=0 // loop_footer
    %s15 = sadd.s32 1, %s11
  $region7: #{tpu_custom_call.1} parent=0 // loop_footer_branch
    %10 = sbr.rel target = $region3
  $region8: #{tpu_custom_call.1} parent=0 // loop_exit
    _

</llo_original>
